<compile_context>
chip_gen: v6e
topology: v6e:2x2x1
jax: 0.10.0
libtpu: 0.0.40
codegen_flags: <defaults>
</compile_context>

<pallas_src>
import functools

import numpy as np
import jax
import jax.numpy as jnp
from jax.experimental import pallas as pl
from jax.experimental.pallas import tpu as pltpu


# ------------------------------ fused kernel --------------------------------

def _yolo_fused_kernel(z_ref, x_ref, wk_ref, bk_ref, ws_ref, bs_ref,
                       w1_ref, b1_ref, w2_ref, b2_ref,
                       add_ref, mul_ref, isexp_ref, o_ref,
                       *, Hz, Wz, Hx, Wx, Cin, F):
    """Whole DepthwiseXCorr + YOLO decode for one batch element.

    Layout: channels on sublanes, flattened spatial on lanes.  Valid-conv /
    xcorr results are kept in "input-row-stride" form: output pixel (i, j) of
    a conv over a width-W input lives at lane i*W + j; the trailing (W - Wout)
    lanes of each row are garbage and are compacted away after the xcorr.
    """

    def conv3x3_relu(x_flat, w, shift, H, W):
        # x_flat: (Cin, H*W); w: (Cout, Cin*9), BN scale pre-folded; shift: (Cout, 1)
        Ho, Wo = H - 2, W - 2
        L = (Ho - 1) * W + Wo
        acc = None
        for ci in range(Cin):
            for dy in range(3):
                for dx in range(3):
                    k = ci * 9 + dy * 3 + dx
                    off = dy * W + dx
                    # (Cout,1) * (1,L) broadcast MAC on the VPU.
                    term = w[:, k:k + 1] * x_flat[ci:ci + 1, off:off + L]
                    acc = term if acc is None else acc + term
        return jnp.maximum(acc + shift, 0.0)            # (Cout, L)

    def dense(w, x):
        # (M, C) @ (C, L) via VPU broadcast-MACs (C is tiny here).
        C = w.shape[1]
        acc = None
        for c in range(C):
            term = w[:, c:c + 1] * x[c:c + 1, :]
            acc = term if acc is None else acc + term
        return acc

    z_flat = z_ref[0]                                    # (Cin, Hz*Wz)
    x_flat = x_ref[0]                                    # (Cin, Hx*Wx)

    kf = conv3x3_relu(z_flat, wk_ref[...], bk_ref[...], Hz, Wz)   # (C, Lz)
    sf = conv3x3_relu(x_flat, ws_ref[...], bs_ref[...], Hx, Wx)   # (C, Ls)

    # Depthwise cross-correlation (per channel), spatial-on-lanes.
    Hk, Wk = Hz - 2, Wz - 2                              # template feature size
    Lq = (F - 1) * Wx + F
    acc = None
    for u in range(Hk):
        for v in range(Wk):
            term = (kf[:, u * Wz + v: u * Wz + v + 1] *
                    sf[:, u * Wx + v: u * Wx + v + Lq])
            acc = term if acc is None else acc + term    # (C, Lq)

    # Compact the strided rows into a dense (C, F*F) slab (drop garbage lanes).
    feat = jnp.concatenate(
        [acc[:, i * Wx: i * Wx + F] for i in range(F)], axis=1)   # (C, F*F)

    # Head: 1x1 conv + BN(shift) + ReLU, then 1x1 conv + bias.
    h = jnp.maximum(dense(w1_ref[...], feat) + b1_ref[...], 0.0)  # (C, F*F)
    raw = dense(w2_ref[...], h) + b2_ref[...]                     # (A*n_ch, F*F)

    # YOLO decode, vectorized over all anchors / box channels at once.
    sig = pl.reciprocal(1.0 + jnp.exp(-raw), approx=True)         # EUP recip
    ex = jnp.exp(jnp.minimum(raw, 80.0))     # clamp only guards f32 overflow
    base = jnp.where(isexp_ref[...] > 0.5, ex, sig)
    pred = (base + add_ref[...]) * mul_ref[...]                   # (A*n_ch, F*F)

    o_ref[0] = pred                          # single lane-dense store (18, 81)


# ------------------------- host-side postprocessing -------------------------

def nms_np(bbox, thresh, score=None, limit=None):
    if len(bbox) == 0:
        return np.zeros((0,), dtype=np.int32)
    order = None
    if score is not None:
        order = score.argsort()[::-1]
        bbox = bbox[order]
    bbox_area = np.prod(bbox[:, 2:] - bbox[:, :2], axis=1)
    selec = np.zeros(bbox.shape[0], dtype=bool)
    for i, b in enumerate(bbox):
        tl = np.maximum(b[:2], bbox[selec, :2])
        br = np.minimum(b[2:], bbox[selec, 2:])
        area = np.prod(br - tl, axis=1) * (tl < br).all(axis=1)
        iou = area / (bbox_area[i] + bbox_area[selec] - area)
        if (iou >= thresh).any():
            continue
        selec[i] = True
        if limit is not None and np.count_nonzero(selec) >= limit:
            break
    selec = np.where(selec)[0]
    if score is not None:
        selec = order[selec]
    return selec.astype(np.int32)


def postprocess_np(prediction, num_classes, conf_thre=0.7, nms_thre=0.45):
    pred = np.array(prediction, dtype=np.float32, copy=True)
    box_corner = np.empty_like(pred[..., :4])
    box_corner[:, :, 0] = pred[:, :, 0] - pred[:, :, 2] / 2
    box_corner[:, :, 1] = pred[:, :, 1] - pred[:, :, 3] / 2
    box_corner[:, :, 2] = pred[:, :, 0] + pred[:, :, 2] / 2
    box_corner[:, :, 3] = pred[:, :, 1] + pred[:, :, 3] / 2
    pred[:, :, :4] = box_corner
    output = [None for _ in range(len(pred))]
    for i, image_pred in enumerate(pred):
        class_conf_all = image_pred[:, 5:5 + num_classes].max(axis=1)
        conf_mask = (image_pred[:, 4] * class_conf_all >= conf_thre)
        image_pred_i = image_pred[conf_mask]
        if image_pred_i.shape[0] == 0:
            continue
        class_conf = image_pred_i[:, 5:5 + num_classes].max(axis=1, keepdims=True)
        class_pred = image_pred_i[:, 5:5 + num_classes].argmax(axis=1)[:, None]
        detections = np.concatenate(
            [image_pred_i[:, :5], class_conf.astype(np.float32),
             class_pred.astype(np.float32)], axis=1)
        for c in np.unique(detections[:, -1]):
            det_c = detections[detections[:, -1] == c]
            keep = nms_np(det_c[:, :4], nms_thre,
                          score=det_c[:, 4] * det_c[:, 5])
            det_c = det_c[keep]
            if output[i] is None:
                output[i] = det_c
            else:
                output[i] = np.concatenate([output[i], det_c], axis=0)
    return output


# ------------------------------ YOLOLayer port ------------------------------

class YOLOLayerPallas:
    """Inference (labels=None) forward of pysot YOLOLayer using one fused Pallas kernel."""

    def __init__(self, anchors, stride, in_ch, key):
        self.anchors = [(float(w), float(h)) for (w, h) in anchors]
        self.n_anchors = len(anchors)
        self.n_classes = 1
        self.n_ch = 5 + self.n_classes
        self.stride = float(stride)
        self.in_ch = int(in_ch)
        self.masked_anchors = [(w / self.stride, h / self.stride)
                               for (w, h) in self.anchors]
        hidden = self.in_ch
        out_ch = self.n_anchors * self.n_ch

        ks = jax.random.split(key, 8)

        def bn_fold(k, c):
            kg, kb, km, kv = jax.random.split(k, 4)
            gamma = 1.0 + 0.1 * jax.random.normal(kg, (c,), jnp.float32)
            beta = 0.1 * jax.random.normal(kb, (c,), jnp.float32)
            mean = 0.1 * jax.random.normal(km, (c,), jnp.float32)
            var = 1.0 + 0.1 * jnp.abs(jax.random.normal(kv, (c,), jnp.float32))
            scale = gamma / jnp.sqrt(var + 1e-5)
            shift = beta - mean * scale
            return scale, shift

        # conv_kernel / conv_search: torch weight layout (Cout, Cin, 3, 3),
        # BN scale folded directly into the weights.
        wk = 0.1 * jax.random.normal(ks[0], (hidden, in_ch, 3, 3), jnp.float32)
        ws = 0.1 * jax.random.normal(ks[1], (hidden, in_ch, 3, 3), jnp.float32)
        sk, bk = bn_fold(ks[2], hidden)
        ss, bs = bn_fold(ks[3], hidden)
        self.wk = (wk * sk[:, None, None, None]).reshape(hidden, in_ch * 9)
        self.ws = (ws * ss[:, None, None, None]).reshape(hidden, in_ch * 9)
        self.bk = bk.reshape(hidden, 1)
        self.bs = bs.reshape(hidden, 1)

        # head: 1x1 conv(hidden->hidden, no bias)+BN+ReLU, 1x1 conv(hidden->out_ch, bias)
        w1 = 0.1 * jax.random.normal(ks[4], (hidden, hidden), jnp.float32)   # (out, in)
        s1, b1 = bn_fold(ks[5], hidden)
        self.w1 = w1 * s1[:, None]
        self.b1 = b1.reshape(hidden, 1)
        self.w2 = 0.1 * jax.random.normal(ks[6], (out_ch, hidden), jnp.float32)
        self.b2 = (0.1 * jax.random.normal(ks[7], (out_ch,), jnp.float32)
                   ).reshape(out_ch, 1)

        self._decode_cache = {}

    # ----- fused device decode -----

    def _build_decode_fn(self, z_shape, x_shape):
        B, Cin, Hz, Wz = z_shape
        Bx, Cx, Hx, Wx = x_shape
        assert B == Bx and Cin == Cx == self.in_ch
        assert Hz == Wz and Hx == Wx, "square feature maps assumed (as in reference)"
        assert Hz >= 3 and Hx >= Hz + 1
        F = Hx - Hz + 1
        A, n_ch = self.n_anchors, self.n_ch
        AC = A * n_ch
        hidden = self.in_ch

        # Precomputed decode tables (grid shifts / per-row multipliers / exp mask).
        p = np.arange(F * F)
        xs = (p % F).astype(np.float32)
        ys = (p // F).astype(np.float32)
        add = np.zeros((AC, F * F), np.float32)
        mul = np.ones((AC, 1), np.float32)
        isexp = np.zeros((AC, 1), np.float32)
        for a in range(A):
            add[a * n_ch + 0] = xs
            add[a * n_ch + 1] = ys
            mul[a * n_ch + 0, 0] = self.stride
            mul[a * n_ch + 1, 0] = self.stride
            mul[a * n_ch + 2, 0] = self.masked_anchors[a][0] * self.stride
            mul[a * n_ch + 3, 0] = self.masked_anchors[a][1] * self.stride
            isexp[a * n_ch + 2, 0] = 1.0
            isexp[a * n_ch + 3, 0] = 1.0
        add = jnp.asarray(add)
        mul = jnp.asarray(mul)
        isexp = jnp.asarray(isexp)

        kern = functools.partial(_yolo_fused_kernel, Hz=Hz, Wz=Wz, Hx=Hx, Wx=Wx,
                                 Cin=Cin, F=F)

        def run(z_f, x_f):
            # Contiguous NCHW -> (B, C, H*W) reshape is free (no transpose).
            z2 = z_f.reshape(B, Cin, Hz * Wz).astype(jnp.float32)
            x2 = x_f.reshape(B, Cin, Hx * Wx).astype(jnp.float32)
            return pl.pallas_call(
                kern,
                out_shape=jax.ShapeDtypeStruct((B, AC, F * F), jnp.float32),
                grid=(B,),
                in_specs=[
                    pl.BlockSpec((1, Cin, Hz * Wz), lambda b: (b, 0, 0)),
                    pl.BlockSpec((1, Cin, Hx * Wx), lambda b: (b, 0, 0)),
                    pl.BlockSpec((hidden, Cin * 9), lambda b: (0, 0)),
                    pl.BlockSpec((hidden, 1), lambda b: (0, 0)),
                    pl.BlockSpec((hidden, Cin * 9), lambda b: (0, 0)),
                    pl.BlockSpec((hidden, 1), lambda b: (0, 0)),
                    pl.BlockSpec((hidden, hidden), lambda b: (0, 0)),
                    pl.BlockSpec((hidden, 1), lambda b: (0, 0)),
                    pl.BlockSpec((AC, hidden), lambda b: (0, 0)),
                    pl.BlockSpec((AC, 1), lambda b: (0, 0)),
                    pl.BlockSpec((AC, F * F), lambda b: (0, 0)),
                    pl.BlockSpec((AC, 1), lambda b: (0, 0)),
                    pl.BlockSpec((AC, 1), lambda b: (0, 0)),
                ],
                out_specs=pl.BlockSpec((1, AC, F * F), lambda b: (b, 0, 0)),
                compiler_params=pltpu.CompilerParams(
                    dimension_semantics=("parallel",)),   # batch -> 2 TCs on v7x
            )(z2, x2, self.wk, self.bk, self.ws, self.bs,
              self.w1, self.b1, self.w2, self.b2, add, mul, isexp)

        return jax.jit(run)

    def decode_device(self, z_f_nchw, x_f_nchw):
        """Single fused Pallas kernel. Returns (B, A*n_ch, F*F) float32 on device."""
        key = (tuple(z_f_nchw.shape), tuple(x_f_nchw.shape))
        fn = self._decode_cache.get(key)
        if fn is None:
            fn = self._build_decode_fn(z_f_nchw.shape, x_f_nchw.shape)
            self._decode_cache[key] = fn
        return fn(z_f_nchw, x_f_nchw)

    def decode(self, z_f_nchw, x_f_nchw):
        """Returns numpy (B, A*F*F, n_ch) predictions (host-side re-layout only)."""
        raw = np.asarray(jax.block_until_ready(self.decode_device(z_f_nchw, x_f_nchw)))
        B, AC, FF = raw.shape
        A, n_ch = self.n_anchors, self.n_ch
        return raw.reshape(B, A, n_ch, FF).transpose(0, 1, 3, 2).reshape(B, A * FF, n_ch)

    def forward(self, z_f_nchw, x_f_nchw):
        pred = self.decode(z_f_nchw, x_f_nchw)
        output = postprocess_np(pred, self.n_classes, 0.01)
        scores, bboxes = [], []
        if output[0] is not None:
            for out in output[0]:
                scores.append(float(out[4] * out[5]))
                x1, y1, x2, y2 = float(out[0]), float(out[1]), float(out[2]), float(out[3])
                bboxes.append([x1, y1, x2 - x1, y2 - y1])
        if len(bboxes):
            bboxes = np.array(bboxes).transpose(1, 0)
        else:
            bboxes = np.zeros((4, 0), dtype=np.float32)
        return scores, bboxes


# --------------------------- numpy reference check ---------------------------

def _reference_decode_np(layer, z, x):
    z = np.asarray(z, np.float32)
    x = np.asarray(x, np.float32)
    B, C, Hz, Wz = z.shape
    _, _, Hx, Wx = x.shape
    hidden, A, n_ch = layer.in_ch, layer.n_anchors, layer.n_ch
    stride = layer.stride

    def conv3x3_relu(inp, w_flat, shift):
        w = np.asarray(w_flat).reshape(hidden, C, 3, 3)
        b = np.asarray(shift).reshape(hidden)
        Bn, Cn, H, W = inp.shape
        Ho, Wo = H - 2, W - 2
        out = np.zeros((Bn, hidden, Ho, Wo), np.float32)
        for dy in range(3):
            for dx in range(3):
                patch = inp[:, :, dy:dy + Ho, dx:dx + Wo]
                out += np.einsum("bchw,oc->bohw", patch, w[:, :, dy, dx])
        return np.maximum(out + b[None, :, None, None], 0.0)

    kf = conv3x3_relu(z, layer.wk, layer.bk)
    sf = conv3x3_relu(x, layer.ws, layer.bs)
    Hk, Wk = kf.shape[2], kf.shape[3]
    F = sf.shape[2] - Hk + 1
    feat = np.zeros((B, hidden, F, F), np.float32)
    for u in range(Hk):
        for v in range(Wk):
            feat += sf[:, :, u:u + F, v:v + F] * kf[:, :, u:u + 1, v:v + 1]

    w1 = np.asarray(layer.w1); b1 = np.asarray(layer.b1).reshape(-1)
    w2 = np.asarray(layer.w2); b2 = np.asarray(layer.b2).reshape(-1)
    h = np.maximum(np.einsum("oc,bcij->boij", w1, feat) + b1[None, :, None, None], 0.0)
    raw = np.einsum("oc,bcij->boij", w2, h) + b2[None, :, None, None]

    raw = raw.reshape(B, A, n_ch, F, F).transpose(0, 1, 3, 4, 2)  # (B,A,F,F,n_ch)
    sig = 1.0 / (1.0 + np.exp(-raw))
    xs = np.arange(F, dtype=np.float32)[None, None, None, :]
    ys = np.arange(F, dtype=np.float32)[None, None, :, None]
    aw = np.array([a[0] for a in layer.masked_anchors], np.float32).reshape(1, A, 1, 1)
    ah = np.array([a[1] for a in layer.masked_anchors], np.float32).reshape(1, A, 1, 1)
    pred = np.empty_like(raw)
    pred[..., 0] = (sig[..., 0] + xs) * stride
    pred[..., 1] = (sig[..., 1] + ys) * stride
    pred[..., 2] = np.exp(raw[..., 2]) * aw * stride
    pred[..., 3] = np.exp(raw[..., 3]) * ah * stride
    pred[..., 4:] = sig[..., 4:]
    return pred.reshape(B, A * F * F, n_ch)


# ----------------------------------- main -----------------------------------

if __name__ == "__main__":
    key = jax.random.PRNGKey(0)
    k_params, k_z, k_x = jax.random.split(key, 3)

    anchors = [(12.0, 16.0), (19.0, 36.0), (40.0, 28.0)]
    stride = 8
    in_ch = 4

    layer = YOLOLayerPallas(anchors, stride, in_ch, k_params)

    # PyTorch-style NCHW inputs (small shapes).
    z_f = jax.random.normal(k_z, (2, in_ch, 8, 8), jnp.float32)    # template feat
    x_f = jax.random.normal(k_x, (2, in_ch, 16, 16), jnp.float32)  # search feat

    raw = layer.decode_device(z_f, x_f)
    raw = jax.block_until_ready(raw)
    assert raw.shape == (2, 3 * 6, 9 * 9), raw.shape
    assert bool(jnp.all(jnp.isfinite(raw)))

    pred = layer.decode(z_f, x_f)                    # (2, 243, 6) numpy
    assert pred.shape == (2, 3 * 9 * 9, 6), pred.shape
    ref = _reference_decode_np(layer, np.asarray(z_f), np.asarray(x_f))
    np.testing.assert_allclose(pred, ref, rtol=3e-2, atol=1e-2)

    scores, bboxes = layer.forward(z_f, x_f)
    assert bboxes.shape[0] == 4

    print("KERNEL_OK")
</pallas_src>

<mosaic_0001>
module attributes {stable_mosaic.version = 11 : i64} {
  func.func @_yolo_fused_kernel(%arg0: i32, %arg1: memref<1x4x64xf32, #tpu.memory_space<vmem>>, %arg2: memref<1x4x256xf32, #tpu.memory_space<vmem>>, %arg3: memref<4x36xf32, #tpu.memory_space<vmem>>, %arg4: memref<4x1xf32, #tpu.memory_space<vmem>>, %arg5: memref<4x36xf32, #tpu.memory_space<vmem>>, %arg6: memref<4x1xf32, #tpu.memory_space<vmem>>, %arg7: memref<4x4xf32, #tpu.memory_space<vmem>>, %arg8: memref<4x1xf32, #tpu.memory_space<vmem>>, %arg9: memref<18x4xf32, #tpu.memory_space<vmem>>, %arg10: memref<18x1xf32, #tpu.memory_space<vmem>>, %arg11: memref<18x81xf32, #tpu.memory_space<vmem>>, %arg12: memref<18x1xf32, #tpu.memory_space<vmem>>, %arg13: memref<18x1xf32, #tpu.memory_space<vmem>>, %arg14: memref<1x18x81xf32, #tpu.memory_space<vmem>>) attributes {dimension_semantics = [#tpu.dimension_semantics<parallel>], iteration_bounds = array<i64: 2>, scalar_prefetch = 0 : i64, scratch_operands = 0 : i64, tpu.core_type = #tpu.core_type<tc>, window_params = [{transform_indices = @transform_0, window_bounds = array<i64: 1, 4, 64>}, {transform_indices = @transform_1, window_bounds = array<i64: 1, 4, 256>}, {pipeline_mode = #tpu.pipeline_mode<synchronous>, transform_indices = @transform_2, window_bounds = array<i64: 4, 36>}, {pipeline_mode = #tpu.pipeline_mode<synchronous>, transform_indices = @transform_3, window_bounds = array<i64: 4, 1>}, {pipeline_mode = #tpu.pipeline_mode<synchronous>, transform_indices = @transform_4, window_bounds = array<i64: 4, 36>}, {pipeline_mode = #tpu.pipeline_mode<synchronous>, transform_indices = @transform_5, window_bounds = array<i64: 4, 1>}, {pipeline_mode = #tpu.pipeline_mode<synchronous>, transform_indices = @transform_6, window_bounds = array<i64: 4, 4>}, {pipeline_mode = #tpu.pipeline_mode<synchronous>, transform_indices = @transform_7, window_bounds = array<i64: 4, 1>}, {pipeline_mode = #tpu.pipeline_mode<synchronous>, transform_indices = @transform_8, window_bounds = array<i64: 18, 4>}, {pipeline_mode = #tpu.pipeline_mode<synchronous>, transform_indices = @transform_9, window_bounds = array<i64: 18, 1>}, {pipeline_mode = #tpu.pipeline_mode<synchronous>, transform_indices = @transform_10, window_bounds = array<i64: 18, 81>}, {pipeline_mode = #tpu.pipeline_mode<synchronous>, transform_indices = @transform_11, window_bounds = array<i64: 18, 1>}, {pipeline_mode = #tpu.pipeline_mode<synchronous>, transform_indices = @transform_12, window_bounds = array<i64: 18, 1>}, {transform_indices = @transform_13, window_bounds = array<i64: 1, 18, 81>}]} {
    %c0 = arith.constant 0 : index
    %c0_0 = arith.constant 0 : index
    %c0_1 = arith.constant 0 : index
    %0 = vector.load %arg1[%c0, %c0_0, %c0_1] : memref<1x4x64xf32, #tpu.memory_space<vmem>>, vector<1x4x64xf32>
    %1 = vector.shape_cast %0 : vector<1x4x64xf32> to vector<4x64xf32>
    %c0_2 = arith.constant 0 : index
    %c0_3 = arith.constant 0 : index
    %c0_4 = arith.constant 0 : index
    %2 = vector.load %arg2[%c0_2, %c0_3, %c0_4] : memref<1x4x256xf32, #tpu.memory_space<vmem>>, vector<1x4x256xf32>
    %3 = vector.shape_cast %2 : vector<1x4x256xf32> to vector<4x256xf32>
    %c0_5 = arith.constant 0 : index
    %c0_6 = arith.constant 0 : index
    %4 = vector.load %arg3[%c0_5, %c0_6] : memref<4x36xf32, #tpu.memory_space<vmem>>, vector<4x36xf32>
    %c0_7 = arith.constant 0 : index
    %c0_8 = arith.constant 0 : index
    %5 = vector.load %arg4[%c0_7, %c0_8] : memref<4x1xf32, #tpu.memory_space<vmem>>, vector<4x1xf32>
    %6 = vector.extract_strided_slice %4 {offsets = [0, 0], sizes = [4, 1], strides = [1, 1]} : vector<4x36xf32> to vector<4x1xf32>
    %7 = vector.extract_strided_slice %1 {offsets = [0, 0], sizes = [1, 46], strides = [1, 1]} : vector<4x64xf32> to vector<1x46xf32>
    %8 = vector.broadcast %6 : vector<4x1xf32> to vector<4x46xf32>
    %9 = vector.broadcast %7 : vector<1x46xf32> to vector<4x46xf32>
    %10 = arith.mulf %8, %9 : vector<4x46xf32>
    %11 = vector.extract_strided_slice %4 {offsets = [0, 1], sizes = [4, 1], strides = [1, 1]} : vector<4x36xf32> to vector<4x1xf32>
    %12 = vector.extract_strided_slice %1 {offsets = [0, 1], sizes = [1, 46], strides = [1, 1]} : vector<4x64xf32> to vector<1x46xf32>
    %13 = vector.broadcast %11 : vector<4x1xf32> to vector<4x46xf32>
    %14 = vector.broadcast %12 : vector<1x46xf32> to vector<4x46xf32>
    %15 = arith.mulf %13, %14 : vector<4x46xf32>
    %16 = arith.addf %10, %15 : vector<4x46xf32>
    %17 = vector.extract_strided_slice %4 {offsets = [0, 2], sizes = [4, 1], strides = [1, 1]} : vector<4x36xf32> to vector<4x1xf32>
    %18 = vector.extract_strided_slice %1 {offsets = [0, 2], sizes = [1, 46], strides = [1, 1]} : vector<4x64xf32> to vector<1x46xf32>
    %19 = vector.broadcast %17 : vector<4x1xf32> to vector<4x46xf32>
    %20 = vector.broadcast %18 : vector<1x46xf32> to vector<4x46xf32>
    %21 = arith.mulf %19, %20 : vector<4x46xf32>
    %22 = arith.addf %16, %21 : vector<4x46xf32>
    %23 = vector.extract_strided_slice %4 {offsets = [0, 3], sizes = [4, 1], strides = [1, 1]} : vector<4x36xf32> to vector<4x1xf32>
    %24 = vector.extract_strided_slice %1 {offsets = [0, 8], sizes = [1, 46], strides = [1, 1]} : vector<4x64xf32> to vector<1x46xf32>
    %25 = vector.broadcast %23 : vector<4x1xf32> to vector<4x46xf32>
    %26 = vector.broadcast %24 : vector<1x46xf32> to vector<4x46xf32>
    %27 = arith.mulf %25, %26 : vector<4x46xf32>
    %28 = arith.addf %22, %27 : vector<4x46xf32>
    %29 = vector.extract_strided_slice %4 {offsets = [0, 4], sizes = [4, 1], strides = [1, 1]} : vector<4x36xf32> to vector<4x1xf32>
    %30 = vector.extract_strided_slice %1 {offsets = [0, 9], sizes = [1, 46], strides = [1, 1]} : vector<4x64xf32> to vector<1x46xf32>
    %31 = vector.broadcast %29 : vector<4x1xf32> to vector<4x46xf32>
    %32 = vector.broadcast %30 : vector<1x46xf32> to vector<4x46xf32>
    %33 = arith.mulf %31, %32 : vector<4x46xf32>
    %34 = arith.addf %28, %33 : vector<4x46xf32>
    %35 = vector.extract_strided_slice %4 {offsets = [0, 5], sizes = [4, 1], strides = [1, 1]} : vector<4x36xf32> to vector<4x1xf32>
    %36 = vector.extract_strided_slice %1 {offsets = [0, 10], sizes = [1, 46], strides = [1, 1]} : vector<4x64xf32> to vector<1x46xf32>
    %37 = vector.broadcast %35 : vector<4x1xf32> to vector<4x46xf32>
    %38 = vector.broadcast %36 : vector<1x46xf32> to vector<4x46xf32>
    %39 = arith.mulf %37, %38 : vector<4x46xf32>
    %40 = arith.addf %34, %39 : vector<4x46xf32>
    %41 = vector.extract_strided_slice %4 {offsets = [0, 6], sizes = [4, 1], strides = [1, 1]} : vector<4x36xf32> to vector<4x1xf32>
    %42 = vector.extract_strided_slice %1 {offsets = [0, 16], sizes = [1, 46], strides = [1, 1]} : vector<4x64xf32> to vector<1x46xf32>
    %43 = vector.broadcast %41 : vector<4x1xf32> to vector<4x46xf32>
    %44 = vector.broadcast %42 : vector<1x46xf32> to vector<4x46xf32>
    %45 = arith.mulf %43, %44 : vector<4x46xf32>
    %46 = arith.addf %40, %45 : vector<4x46xf32>
    %47 = vector.extract_strided_slice %4 {offsets = [0, 7], sizes = [4, 1], strides = [1, 1]} : vector<4x36xf32> to vector<4x1xf32>
    %48 = vector.extract_strided_slice %1 {offsets = [0, 17], sizes = [1, 46], strides = [1, 1]} : vector<4x64xf32> to vector<1x46xf32>
    %49 = vector.broadcast %47 : vector<4x1xf32> to vector<4x46xf32>
    %50 = vector.broadcast %48 : vector<1x46xf32> to vector<4x46xf32>
    %51 = arith.mulf %49, %50 : vector<4x46xf32>
    %52 = arith.addf %46, %51 : vector<4x46xf32>
    %53 = vector.extract_strided_slice %4 {offsets = [0, 8], sizes = [4, 1], strides = [1, 1]} : vector<4x36xf32> to vector<4x1xf32>
    %54 = vector.extract_strided_slice %1 {offsets = [0, 18], sizes = [1, 46], strides = [1, 1]} : vector<4x64xf32> to vector<1x46xf32>
    %55 = vector.broadcast %53 : vector<4x1xf32> to vector<4x46xf32>
    %56 = vector.broadcast %54 : vector<1x46xf32> to vector<4x46xf32>
    %57 = arith.mulf %55, %56 : vector<4x46xf32>
    %58 = arith.addf %52, %57 : vector<4x46xf32>
    %59 = vector.extract_strided_slice %4 {offsets = [0, 9], sizes = [4, 1], strides = [1, 1]} : vector<4x36xf32> to vector<4x1xf32>
    %60 = vector.extract_strided_slice %1 {offsets = [1, 0], sizes = [1, 46], strides = [1, 1]} : vector<4x64xf32> to vector<1x46xf32>
    %61 = vector.broadcast %59 : vector<4x1xf32> to vector<4x46xf32>
    %62 = vector.broadcast %60 : vector<1x46xf32> to vector<4x46xf32>
    %63 = arith.mulf %61, %62 : vector<4x46xf32>
    %64 = arith.addf %58, %63 : vector<4x46xf32>
    %65 = vector.extract_strided_slice %4 {offsets = [0, 10], sizes = [4, 1], strides = [1, 1]} : vector<4x36xf32> to vector<4x1xf32>
    %66 = vector.extract_strided_slice %1 {offsets = [1, 1], sizes = [1, 46], strides = [1, 1]} : vector<4x64xf32> to vector<1x46xf32>
    %67 = vector.broadcast %65 : vector<4x1xf32> to vector<4x46xf32>
    %68 = vector.broadcast %66 : vector<1x46xf32> to vector<4x46xf32>
    %69 = arith.mulf %67, %68 : vector<4x46xf32>
    %70 = arith.addf %64, %69 : vector<4x46xf32>
    %71 = vector.extract_strided_slice %4 {offsets = [0, 11], sizes = [4, 1], strides = [1, 1]} : vector<4x36xf32> to vector<4x1xf32>
    %72 = vector.extract_strided_slice %1 {offsets = [1, 2], sizes = [1, 46], strides = [1, 1]} : vector<4x64xf32> to vector<1x46xf32>
    %73 = vector.broadcast %71 : vector<4x1xf32> to vector<4x46xf32>
    %74 = vector.broadcast %72 : vector<1x46xf32> to vector<4x46xf32>
    %75 = arith.mulf %73, %74 : vector<4x46xf32>
    %76 = arith.addf %70, %75 : vector<4x46xf32>
    %77 = vector.extract_strided_slice %4 {offsets = [0, 12], sizes = [4, 1], strides = [1, 1]} : vector<4x36xf32> to vector<4x1xf32>
    %78 = vector.extract_strided_slice %1 {offsets = [1, 8], sizes = [1, 46], strides = [1, 1]} : vector<4x64xf32> to vector<1x46xf32>
    %79 = vector.broadcast %77 : vector<4x1xf32> to vector<4x46xf32>
    %80 = vector.broadcast %78 : vector<1x46xf32> to vector<4x46xf32>
    %81 = arith.mulf %79, %80 : vector<4x46xf32>
    %82 = arith.addf %76, %81 : vector<4x46xf32>
    %83 = vector.extract_strided_slice %4 {offsets = [0, 13], sizes = [4, 1], strides = [1, 1]} : vector<4x36xf32> to vector<4x1xf32>
    %84 = vector.extract_strided_slice %1 {offsets = [1, 9], sizes = [1, 46], strides = [1, 1]} : vector<4x64xf32> to vector<1x46xf32>
    %85 = vector.broadcast %83 : vector<4x1xf32> to vector<4x46xf32>
    %86 = vector.broadcast %84 : vector<1x46xf32> to vector<4x46xf32>
    %87 = arith.mulf %85, %86 : vector<4x46xf32>
    %88 = arith.addf %82, %87 : vector<4x46xf32>
    %89 = vector.extract_strided_slice %4 {offsets = [0, 14], sizes = [4, 1], strides = [1, 1]} : vector<4x36xf32> to vector<4x1xf32>
    %90 = vector.extract_strided_slice %1 {offsets = [1, 10], sizes = [1, 46], strides = [1, 1]} : vector<4x64xf32> to vector<1x46xf32>
    %91 = vector.broadcast %89 : vector<4x1xf32> to vector<4x46xf32>
    %92 = vector.broadcast %90 : vector<1x46xf32> to vector<4x46xf32>
    %93 = arith.mulf %91, %92 : vector<4x46xf32>
    %94 = arith.addf %88, %93 : vector<4x46xf32>
    %95 = vector.extract_strided_slice %4 {offsets = [0, 15], sizes = [4, 1], strides = [1, 1]} : vector<4x36xf32> to vector<4x1xf32>
    %96 = vector.extract_strided_slice %1 {offsets = [1, 16], sizes = [1, 46], strides = [1, 1]} : vector<4x64xf32> to vector<1x46xf32>
    %97 = vector.broadcast %95 : vector<4x1xf32> to vector<4x46xf32>
    %98 = vector.broadcast %96 : vector<1x46xf32> to vector<4x46xf32>
    %99 = arith.mulf %97, %98 : vector<4x46xf32>
    %100 = arith.addf %94, %99 : vector<4x46xf32>
    %101 = vector.extract_strided_slice %4 {offsets = [0, 16], sizes = [4, 1], strides = [1, 1]} : vector<4x36xf32> to vector<4x1xf32>
    %102 = vector.extract_strided_slice %1 {offsets = [1, 17], sizes = [1, 46], strides = [1, 1]} : vector<4x64xf32> to vector<1x46xf32>
    %103 = vector.broadcast %101 : vector<4x1xf32> to vector<4x46xf32>
    %104 = vector.broadcast %102 : vector<1x46xf32> to vector<4x46xf32>
    %105 = arith.mulf %103, %104 : vector<4x46xf32>
    %106 = arith.addf %100, %105 : vector<4x46xf32>
    %107 = vector.extract_strided_slice %4 {offsets = [0, 17], sizes = [4, 1], strides = [1, 1]} : vector<4x36xf32> to vector<4x1xf32>
    %108 = vector.extract_strided_slice %1 {offsets = [1, 18], sizes = [1, 46], strides = [1, 1]} : vector<4x64xf32> to vector<1x46xf32>
    %109 = vector.broadcast %107 : vector<4x1xf32> to vector<4x46xf32>
    %110 = vector.broadcast %108 : vector<1x46xf32> to vector<4x46xf32>
    %111 = arith.mulf %109, %110 : vector<4x46xf32>
    %112 = arith.addf %106, %111 : vector<4x46xf32>
    %113 = vector.extract_strided_slice %4 {offsets = [0, 18], sizes = [4, 1], strides = [1, 1]} : vector<4x36xf32> to vector<4x1xf32>
    %114 = vector.extract_strided_slice %1 {offsets = [2, 0], sizes = [1, 46], strides = [1, 1]} : vector<4x64xf32> to vector<1x46xf32>
    %115 = vector.broadcast %113 : vector<4x1xf32> to vector<4x46xf32>
    %116 = vector.broadcast %114 : vector<1x46xf32> to vector<4x46xf32>
    %117 = arith.mulf %115, %116 : vector<4x46xf32>
    %118 = arith.addf %112, %117 : vector<4x46xf32>
    %119 = vector.extract_strided_slice %4 {offsets = [0, 19], sizes = [4, 1], strides = [1, 1]} : vector<4x36xf32> to vector<4x1xf32>
    %120 = vector.extract_strided_slice %1 {offsets = [2, 1], sizes = [1, 46], strides = [1, 1]} : vector<4x64xf32> to vector<1x46xf32>
    %121 = vector.broadcast %119 : vector<4x1xf32> to vector<4x46xf32>
    %122 = vector.broadcast %120 : vector<1x46xf32> to vector<4x46xf32>
    %123 = arith.mulf %121, %122 : vector<4x46xf32>
    %124 = arith.addf %118, %123 : vector<4x46xf32>
    %125 = vector.extract_strided_slice %4 {offsets = [0, 20], sizes = [4, 1], strides = [1, 1]} : vector<4x36xf32> to vector<4x1xf32>
    %126 = vector.extract_strided_slice %1 {offsets = [2, 2], sizes = [1, 46], strides = [1, 1]} : vector<4x64xf32> to vector<1x46xf32>
    %127 = vector.broadcast %125 : vector<4x1xf32> to vector<4x46xf32>
    %128 = vector.broadcast %126 : vector<1x46xf32> to vector<4x46xf32>
    %129 = arith.mulf %127, %128 : vector<4x46xf32>
    %130 = arith.addf %124, %129 : vector<4x46xf32>
    %131 = vector.extract_strided_slice %4 {offsets = [0, 21], sizes = [4, 1], strides = [1, 1]} : vector<4x36xf32> to vector<4x1xf32>
    %132 = vector.extract_strided_slice %1 {offsets = [2, 8], sizes = [1, 46], strides = [1, 1]} : vector<4x64xf32> to vector<1x46xf32>
    %133 = vector.broadcast %131 : vector<4x1xf32> to vector<4x46xf32>
    %134 = vector.broadcast %132 : vector<1x46xf32> to vector<4x46xf32>
    %135 = arith.mulf %133, %134 : vector<4x46xf32>
    %136 = arith.addf %130, %135 : vector<4x46xf32>
    %137 = vector.extract_strided_slice %4 {offsets = [0, 22], sizes = [4, 1], strides = [1, 1]} : vector<4x36xf32> to vector<4x1xf32>
    %138 = vector.extract_strided_slice %1 {offsets = [2, 9], sizes = [1, 46], strides = [1, 1]} : vector<4x64xf32> to vector<1x46xf32>
    %139 = vector.broadcast %137 : vector<4x1xf32> to vector<4x46xf32>
    %140 = vector.broadcast %138 : vector<1x46xf32> to vector<4x46xf32>
    %141 = arith.mulf %139, %140 : vector<4x46xf32>
    %142 = arith.addf %136, %141 : vector<4x46xf32>
    %143 = vector.extract_strided_slice %4 {offsets = [0, 23], sizes = [4, 1], strides = [1, 1]} : vector<4x36xf32> to vector<4x1xf32>
    %144 = vector.extract_strided_slice %1 {offsets = [2, 10], sizes = [1, 46], strides = [1, 1]} : vector<4x64xf32> to vector<1x46xf32>
    %145 = vector.broadcast %143 : vector<4x1xf32> to vector<4x46xf32>
    %146 = vector.broadcast %144 : vector<1x46xf32> to vector<4x46xf32>
    %147 = arith.mulf %145, %146 : vector<4x46xf32>
    %148 = arith.addf %142, %147 : vector<4x46xf32>
    %149 = vector.extract_strided_slice %4 {offsets = [0, 24], sizes = [4, 1], strides = [1, 1]} : vector<4x36xf32> to vector<4x1xf32>
    %150 = vector.extract_strided_slice %1 {offsets = [2, 16], sizes = [1, 46], strides = [1, 1]} : vector<4x64xf32> to vector<1x46xf32>
    %151 = vector.broadcast %149 : vector<4x1xf32> to vector<4x46xf32>
    %152 = vector.broadcast %150 : vector<1x46xf32> to vector<4x46xf32>
    %153 = arith.mulf %151, %152 : vector<4x46xf32>
    %154 = arith.addf %148, %153 : vector<4x46xf32>
    %155 = vector.extract_strided_slice %4 {offsets = [0, 25], sizes = [4, 1], strides = [1, 1]} : vector<4x36xf32> to vector<4x1xf32>
    %156 = vector.extract_strided_slice %1 {offsets = [2, 17], sizes = [1, 46], strides = [1, 1]} : vector<4x64xf32> to vector<1x46xf32>
    %157 = vector.broadcast %155 : vector<4x1xf32> to vector<4x46xf32>
    %158 = vector.broadcast %156 : vector<1x46xf32> to vector<4x46xf32>
    %159 = arith.mulf %157, %158 : vector<4x46xf32>
    %160 = arith.addf %154, %159 : vector<4x46xf32>
    %161 = vector.extract_strided_slice %4 {offsets = [0, 26], sizes = [4, 1], strides = [1, 1]} : vector<4x36xf32> to vector<4x1xf32>
    %162 = vector.extract_strided_slice %1 {offsets = [2, 18], sizes = [1, 46], strides = [1, 1]} : vector<4x64xf32> to vector<1x46xf32>
    %163 = vector.broadcast %161 : vector<4x1xf32> to vector<4x46xf32>
    %164 = vector.broadcast %162 : vector<1x46xf32> to vector<4x46xf32>
    %165 = arith.mulf %163, %164 : vector<4x46xf32>
    %166 = arith.addf %160, %165 : vector<4x46xf32>
    %167 = vector.extract_strided_slice %4 {offsets = [0, 27], sizes = [4, 1], strides = [1, 1]} : vector<4x36xf32> to vector<4x1xf32>
    %168 = vector.extract_strided_slice %1 {offsets = [3, 0], sizes = [1, 46], strides = [1, 1]} : vector<4x64xf32> to vector<1x46xf32>
    %169 = vector.broadcast %167 : vector<4x1xf32> to vector<4x46xf32>
    %170 = vector.broadcast %168 : vector<1x46xf32> to vector<4x46xf32>
    %171 = arith.mulf %169, %170 : vector<4x46xf32>
    %172 = arith.addf %166, %171 : vector<4x46xf32>
    %173 = vector.extract_strided_slice %4 {offsets = [0, 28], sizes = [4, 1], strides = [1, 1]} : vector<4x36xf32> to vector<4x1xf32>
    %174 = vector.extract_strided_slice %1 {offsets = [3, 1], sizes = [1, 46], strides = [1, 1]} : vector<4x64xf32> to vector<1x46xf32>
    %175 = vector.broadcast %173 : vector<4x1xf32> to vector<4x46xf32>
    %176 = vector.broadcast %174 : vector<1x46xf32> to vector<4x46xf32>
    %177 = arith.mulf %175, %176 : vector<4x46xf32>
    %178 = arith.addf %172, %177 : vector<4x46xf32>
    %179 = vector.extract_strided_slice %4 {offsets = [0, 29], sizes = [4, 1], strides = [1, 1]} : vector<4x36xf32> to vector<4x1xf32>
    %180 = vector.extract_strided_slice %1 {offsets = [3, 2], sizes = [1, 46], strides = [1, 1]} : vector<4x64xf32> to vector<1x46xf32>
    %181 = vector.broadcast %179 : vector<4x1xf32> to vector<4x46xf32>
    %182 = vector.broadcast %180 : vector<1x46xf32> to vector<4x46xf32>
    %183 = arith.mulf %181, %182 : vector<4x46xf32>
    %184 = arith.addf %178, %183 : vector<4x46xf32>
    %185 = vector.extract_strided_slice %4 {offsets = [0, 30], sizes = [4, 1], strides = [1, 1]} : vector<4x36xf32> to vector<4x1xf32>
    %186 = vector.extract_strided_slice %1 {offsets = [3, 8], sizes = [1, 46], strides = [1, 1]} : vector<4x64xf32> to vector<1x46xf32>
    %187 = vector.broadcast %185 : vector<4x1xf32> to vector<4x46xf32>
    %188 = vector.broadcast %186 : vector<1x46xf32> to vector<4x46xf32>
    %189 = arith.mulf %187, %188 : vector<4x46xf32>
    %190 = arith.addf %184, %189 : vector<4x46xf32>
    %191 = vector.extract_strided_slice %4 {offsets = [0, 31], sizes = [4, 1], strides = [1, 1]} : vector<4x36xf32> to vector<4x1xf32>
    %192 = vector.extract_strided_slice %1 {offsets = [3, 9], sizes = [1, 46], strides = [1, 1]} : vector<4x64xf32> to vector<1x46xf32>
    %193 = vector.broadcast %191 : vector<4x1xf32> to vector<4x46xf32>
    %194 = vector.broadcast %192 : vector<1x46xf32> to vector<4x46xf32>
    %195 = arith.mulf %193, %194 : vector<4x46xf32>
    %196 = arith.addf %190, %195 : vector<4x46xf32>
    %197 = vector.extract_strided_slice %4 {offsets = [0, 32], sizes = [4, 1], strides = [1, 1]} : vector<4x36xf32> to vector<4x1xf32>
    %198 = vector.extract_strided_slice %1 {offsets = [3, 10], sizes = [1, 46], strides = [1, 1]} : vector<4x64xf32> to vector<1x46xf32>
    %199 = vector.broadcast %197 : vector<4x1xf32> to vector<4x46xf32>
    %200 = vector.broadcast %198 : vector<1x46xf32> to vector<4x46xf32>
    %201 = arith.mulf %199, %200 : vector<4x46xf32>
    %202 = arith.addf %196, %201 : vector<4x46xf32>
    %203 = vector.extract_strided_slice %4 {offsets = [0, 33], sizes = [4, 1], strides = [1, 1]} : vector<4x36xf32> to vector<4x1xf32>
    %204 = vector.extract_strided_slice %1 {offsets = [3, 16], sizes = [1, 46], strides = [1, 1]} : vector<4x64xf32> to vector<1x46xf32>
    %205 = vector.broadcast %203 : vector<4x1xf32> to vector<4x46xf32>
    %206 = vector.broadcast %204 : vector<1x46xf32> to vector<4x46xf32>
    %207 = arith.mulf %205, %206 : vector<4x46xf32>
    %208 = arith.addf %202, %207 : vector<4x46xf32>
    %209 = vector.extract_strided_slice %4 {offsets = [0, 34], sizes = [4, 1], strides = [1, 1]} : vector<4x36xf32> to vector<4x1xf32>
    %210 = vector.extract_strided_slice %1 {offsets = [3, 17], sizes = [1, 46], strides = [1, 1]} : vector<4x64xf32> to vector<1x46xf32>
    %211 = vector.broadcast %209 : vector<4x1xf32> to vector<4x46xf32>
    %212 = vector.broadcast %210 : vector<1x46xf32> to vector<4x46xf32>
    %213 = arith.mulf %211, %212 : vector<4x46xf32>
    %214 = arith.addf %208, %213 : vector<4x46xf32>
    %215 = vector.extract_strided_slice %4 {offsets = [0, 35], sizes = [4, 1], strides = [1, 1]} : vector<4x36xf32> to vector<4x1xf32>
    %216 = vector.extract_strided_slice %1 {offsets = [3, 18], sizes = [1, 46], strides = [1, 1]} : vector<4x64xf32> to vector<1x46xf32>
    %217 = vector.broadcast %215 : vector<4x1xf32> to vector<4x46xf32>
    %218 = vector.broadcast %216 : vector<1x46xf32> to vector<4x46xf32>
    %219 = arith.mulf %217, %218 : vector<4x46xf32>
    %220 = arith.addf %214, %219 : vector<4x46xf32>
    %221 = vector.broadcast %5 : vector<4x1xf32> to vector<4x46xf32>
    %222 = arith.addf %220, %221 : vector<4x46xf32>
    %cst = arith.constant 0.000000e+00 : f32
    %223 = vector.broadcast %cst : f32 to vector<4x46xf32>
    %224 = arith.maximumf %222, %223 : vector<4x46xf32>
    %c0_9 = arith.constant 0 : index
    %c0_10 = arith.constant 0 : index
    %225 = vector.load %arg5[%c0_9, %c0_10] : memref<4x36xf32, #tpu.memory_space<vmem>>, vector<4x36xf32>
    %c0_11 = arith.constant 0 : index
    %c0_12 = arith.constant 0 : index
    %226 = vector.load %arg6[%c0_11, %c0_12] : memref<4x1xf32, #tpu.memory_space<vmem>>, vector<4x1xf32>
    %227 = vector.extract_strided_slice %225 {offsets = [0, 0], sizes = [4, 1], strides = [1, 1]} : vector<4x36xf32> to vector<4x1xf32>
    %228 = vector.extract_strided_slice %3 {offsets = [0, 0], sizes = [1, 222], strides = [1, 1]} : vector<4x256xf32> to vector<1x222xf32>
    %229 = vector.broadcast %227 : vector<4x1xf32> to vector<4x222xf32>
    %230 = vector.broadcast %228 : vector<1x222xf32> to vector<4x222xf32>
    %231 = arith.mulf %229, %230 : vector<4x222xf32>
    %232 = vector.extract_strided_slice %225 {offsets = [0, 1], sizes = [4, 1], strides = [1, 1]} : vector<4x36xf32> to vector<4x1xf32>
    %233 = vector.extract_strided_slice %3 {offsets = [0, 1], sizes = [1, 222], strides = [1, 1]} : vector<4x256xf32> to vector<1x222xf32>
    %234 = vector.broadcast %232 : vector<4x1xf32> to vector<4x222xf32>
    %235 = vector.broadcast %233 : vector<1x222xf32> to vector<4x222xf32>
    %236 = arith.mulf %234, %235 : vector<4x222xf32>
    %237 = arith.addf %231, %236 : vector<4x222xf32>
    %238 = vector.extract_strided_slice %225 {offsets = [0, 2], sizes = [4, 1], strides = [1, 1]} : vector<4x36xf32> to vector<4x1xf32>
    %239 = vector.extract_strided_slice %3 {offsets = [0, 2], sizes = [1, 222], strides = [1, 1]} : vector<4x256xf32> to vector<1x222xf32>
    %240 = vector.broadcast %238 : vector<4x1xf32> to vector<4x222xf32>
    %241 = vector.broadcast %239 : vector<1x222xf32> to vector<4x222xf32>
    %242 = arith.mulf %240, %241 : vector<4x222xf32>
    %243 = arith.addf %237, %242 : vector<4x222xf32>
    %244 = vector.extract_strided_slice %225 {offsets = [0, 3], sizes = [4, 1], strides = [1, 1]} : vector<4x36xf32> to vector<4x1xf32>
    %245 = vector.extract_strided_slice %3 {offsets = [0, 16], sizes = [1, 222], strides = [1, 1]} : vector<4x256xf32> to vector<1x222xf32>
    %246 = vector.broadcast %244 : vector<4x1xf32> to vector<4x222xf32>
    %247 = vector.broadcast %245 : vector<1x222xf32> to vector<4x222xf32>
    %248 = arith.mulf %246, %247 : vector<4x222xf32>
    %249 = arith.addf %243, %248 : vector<4x222xf32>
    %250 = vector.extract_strided_slice %225 {offsets = [0, 4], sizes = [4, 1], strides = [1, 1]} : vector<4x36xf32> to vector<4x1xf32>
    %251 = vector.extract_strided_slice %3 {offsets = [0, 17], sizes = [1, 222], strides = [1, 1]} : vector<4x256xf32> to vector<1x222xf32>
    %252 = vector.broadcast %250 : vector<4x1xf32> to vector<4x222xf32>
    %253 = vector.broadcast %251 : vector<1x222xf32> to vector<4x222xf32>
    %254 = arith.mulf %252, %253 : vector<4x222xf32>
    %255 = arith.addf %249, %254 : vector<4x222xf32>
    %256 = vector.extract_strided_slice %225 {offsets = [0, 5], sizes = [4, 1], strides = [1, 1]} : vector<4x36xf32> to vector<4x1xf32>
    %257 = vector.extract_strided_slice %3 {offsets = [0, 18], sizes = [1, 222], strides = [1, 1]} : vector<4x256xf32> to vector<1x222xf32>
    %258 = vector.broadcast %256 : vector<4x1xf32> to vector<4x222xf32>
    %259 = vector.broadcast %257 : vector<1x222xf32> to vector<4x222xf32>
    %260 = arith.mulf %258, %259 : vector<4x222xf32>
    %261 = arith.addf %255, %260 : vector<4x222xf32>
    %262 = vector.extract_strided_slice %225 {offsets = [0, 6], sizes = [4, 1], strides = [1, 1]} : vector<4x36xf32> to vector<4x1xf32>
    %263 = vector.extract_strided_slice %3 {offsets = [0, 32], sizes = [1, 222], strides = [1, 1]} : vector<4x256xf32> to vector<1x222xf32>
    %264 = vector.broadcast %262 : vector<4x1xf32> to vector<4x222xf32>
    %265 = vector.broadcast %263 : vector<1x222xf32> to vector<4x222xf32>
    %266 = arith.mulf %264, %265 : vector<4x222xf32>
    %267 = arith.addf %261, %266 : vector<4x222xf32>
    %268 = vector.extract_strided_slice %225 {offsets = [0, 7], sizes = [4, 1], strides = [1, 1]} : vector<4x36xf32> to vector<4x1xf32>
    %269 = vector.extract_strided_slice %3 {offsets = [0, 33], sizes = [1, 222], strides = [1, 1]} : vector<4x256xf32> to vector<1x222xf32>
    %270 = vector.broadcast %268 : vector<4x1xf32> to vector<4x222xf32>
    %271 = vector.broadcast %269 : vector<1x222xf32> to vector<4x222xf32>
    %272 = arith.mulf %270, %271 : vector<4x222xf32>
    %273 = arith.addf %267, %272 : vector<4x222xf32>
    %274 = vector.extract_strided_slice %225 {offsets = [0, 8], sizes = [4, 1], strides = [1, 1]} : vector<4x36xf32> to vector<4x1xf32>
    %275 = vector.extract_strided_slice %3 {offsets = [0, 34], sizes = [1, 222], strides = [1, 1]} : vector<4x256xf32> to vector<1x222xf32>
    %276 = vector.broadcast %274 : vector<4x1xf32> to vector<4x222xf32>
    %277 = vector.broadcast %275 : vector<1x222xf32> to vector<4x222xf32>
    %278 = arith.mulf %276, %277 : vector<4x222xf32>
    %279 = arith.addf %273, %278 : vector<4x222xf32>
    %280 = vector.extract_strided_slice %225 {offsets = [0, 9], sizes = [4, 1], strides = [1, 1]} : vector<4x36xf32> to vector<4x1xf32>
    %281 = vector.extract_strided_slice %3 {offsets = [1, 0], sizes = [1, 222], strides = [1, 1]} : vector<4x256xf32> to vector<1x222xf32>
    %282 = vector.broadcast %280 : vector<4x1xf32> to vector<4x222xf32>
    %283 = vector.broadcast %281 : vector<1x222xf32> to vector<4x222xf32>
    %284 = arith.mulf %282, %283 : vector<4x222xf32>
    %285 = arith.addf %279, %284 : vector<4x222xf32>
    %286 = vector.extract_strided_slice %225 {offsets = [0, 10], sizes = [4, 1], strides = [1, 1]} : vector<4x36xf32> to vector<4x1xf32>
    %287 = vector.extract_strided_slice %3 {offsets = [1, 1], sizes = [1, 222], strides = [1, 1]} : vector<4x256xf32> to vector<1x222xf32>
    %288 = vector.broadcast %286 : vector<4x1xf32> to vector<4x222xf32>
    %289 = vector.broadcast %287 : vector<1x222xf32> to vector<4x222xf32>
    %290 = arith.mulf %288, %289 : vector<4x222xf32>
    %291 = arith.addf %285, %290 : vector<4x222xf32>
    %292 = vector.extract_strided_slice %225 {offsets = [0, 11], sizes = [4, 1], strides = [1, 1]} : vector<4x36xf32> to vector<4x1xf32>
    %293 = vector.extract_strided_slice %3 {offsets = [1, 2], sizes = [1, 222], strides = [1, 1]} : vector<4x256xf32> to vector<1x222xf32>
    %294 = vector.broadcast %292 : vector<4x1xf32> to vector<4x222xf32>
    %295 = vector.broadcast %293 : vector<1x222xf32> to vector<4x222xf32>
    %296 = arith.mulf %294, %295 : vector<4x222xf32>
    %297 = arith.addf %291, %296 : vector<4x222xf32>
    %298 = vector.extract_strided_slice %225 {offsets = [0, 12], sizes = [4, 1], strides = [1, 1]} : vector<4x36xf32> to vector<4x1xf32>
    %299 = vector.extract_strided_slice %3 {offsets = [1, 16], sizes = [1, 222], strides = [1, 1]} : vector<4x256xf32> to vector<1x222xf32>
    %300 = vector.broadcast %298 : vector<4x1xf32> to vector<4x222xf32>
    %301 = vector.broadcast %299 : vector<1x222xf32> to vector<4x222xf32>
    %302 = arith.mulf %300, %301 : vector<4x222xf32>
    %303 = arith.addf %297, %302 : vector<4x222xf32>
    %304 = vector.extract_strided_slice %225 {offsets = [0, 13], sizes = [4, 1], strides = [1, 1]} : vector<4x36xf32> to vector<4x1xf32>
    %305 = vector.extract_strided_slice %3 {offsets = [1, 17], sizes = [1, 222], strides = [1, 1]} : vector<4x256xf32> to vector<1x222xf32>
    %306 = vector.broadcast %304 : vector<4x1xf32> to vector<4x222xf32>
    %307 = vector.broadcast %305 : vector<1x222xf32> to vector<4x222xf32>
    %308 = arith.mulf %306, %307 : vector<4x222xf32>
    %309 = arith.addf %303, %308 : vector<4x222xf32>
    %310 = vector.extract_strided_slice %225 {offsets = [0, 14], sizes = [4, 1], strides = [1, 1]} : vector<4x36xf32> to vector<4x1xf32>
    %311 = vector.extract_strided_slice %3 {offsets = [1, 18], sizes = [1, 222], strides = [1, 1]} : vector<4x256xf32> to vector<1x222xf32>
    %312 = vector.broadcast %310 : vector<4x1xf32> to vector<4x222xf32>
    %313 = vector.broadcast %311 : vector<1x222xf32> to vector<4x222xf32>
    %314 = arith.mulf %312, %313 : vector<4x222xf32>
    %315 = arith.addf %309, %314 : vector<4x222xf32>
    %316 = vector.extract_strided_slice %225 {offsets = [0, 15], sizes = [4, 1], strides = [1, 1]} : vector<4x36xf32> to vector<4x1xf32>
    %317 = vector.extract_strided_slice %3 {offsets = [1, 32], sizes = [1, 222], strides = [1, 1]} : vector<4x256xf32> to vector<1x222xf32>
    %318 = vector.broadcast %316 : vector<4x1xf32> to vector<4x222xf32>
    %319 = vector.broadcast %317 : vector<1x222xf32> to vector<4x222xf32>
    %320 = arith.mulf %318, %319 : vector<4x222xf32>
    %321 = arith.addf %315, %320 : vector<4x222xf32>
    %322 = vector.extract_strided_slice %225 {offsets = [0, 16], sizes = [4, 1], strides = [1, 1]} : vector<4x36xf32> to vector<4x1xf32>
    %323 = vector.extract_strided_slice %3 {offsets = [1, 33], sizes = [1, 222], strides = [1, 1]} : vector<4x256xf32> to vector<1x222xf32>
    %324 = vector.broadcast %322 : vector<4x1xf32> to vector<4x222xf32>
    %325 = vector.broadcast %323 : vector<1x222xf32> to vector<4x222xf32>
    %326 = arith.mulf %324, %325 : vector<4x222xf32>
    %327 = arith.addf %321, %326 : vector<4x222xf32>
    %328 = vector.extract_strided_slice %225 {offsets = [0, 17], sizes = [4, 1], strides = [1, 1]} : vector<4x36xf32> to vector<4x1xf32>
    %329 = vector.extract_strided_slice %3 {offsets = [1, 34], sizes = [1, 222], strides = [1, 1]} : vector<4x256xf32> to vector<1x222xf32>
    %330 = vector.broadcast %328 : vector<4x1xf32> to vector<4x222xf32>
    %331 = vector.broadcast %329 : vector<1x222xf32> to vector<4x222xf32>
    %332 = arith.mulf %330, %331 : vector<4x222xf32>
    %333 = arith.addf %327, %332 : vector<4x222xf32>
    %334 = vector.extract_strided_slice %225 {offsets = [0, 18], sizes = [4, 1], strides = [1, 1]} : vector<4x36xf32> to vector<4x1xf32>
    %335 = vector.extract_strided_slice %3 {offsets = [2, 0], sizes = [1, 222], strides = [1, 1]} : vector<4x256xf32> to vector<1x222xf32>
    %336 = vector.broadcast %334 : vector<4x1xf32> to vector<4x222xf32>
    %337 = vector.broadcast %335 : vector<1x222xf32> to vector<4x222xf32>
    %338 = arith.mulf %336, %337 : vector<4x222xf32>
    %339 = arith.addf %333, %338 : vector<4x222xf32>
    %340 = vector.extract_strided_slice %225 {offsets = [0, 19], sizes = [4, 1], strides = [1, 1]} : vector<4x36xf32> to vector<4x1xf32>
    %341 = vector.extract_strided_slice %3 {offsets = [2, 1], sizes = [1, 222], strides = [1, 1]} : vector<4x256xf32> to vector<1x222xf32>
    %342 = vector.broadcast %340 : vector<4x1xf32> to vector<4x222xf32>
    %343 = vector.broadcast %341 : vector<1x222xf32> to vector<4x222xf32>
    %344 = arith.mulf %342, %343 : vector<4x222xf32>
    %345 = arith.addf %339, %344 : vector<4x222xf32>
    %346 = vector.extract_strided_slice %225 {offsets = [0, 20], sizes = [4, 1], strides = [1, 1]} : vector<4x36xf32> to vector<4x1xf32>
    %347 = vector.extract_strided_slice %3 {offsets = [2, 2], sizes = [1, 222], strides = [1, 1]} : vector<4x256xf32> to vector<1x222xf32>
    %348 = vector.broadcast %346 : vector<4x1xf32> to vector<4x222xf32>
    %349 = vector.broadcast %347 : vector<1x222xf32> to vector<4x222xf32>
    %350 = arith.mulf %348, %349 : vector<4x222xf32>
    %351 = arith.addf %345, %350 : vector<4x222xf32>
    %352 = vector.extract_strided_slice %225 {offsets = [0, 21], sizes = [4, 1], strides = [1, 1]} : vector<4x36xf32> to vector<4x1xf32>
    %353 = vector.extract_strided_slice %3 {offsets = [2, 16], sizes = [1, 222], strides = [1, 1]} : vector<4x256xf32> to vector<1x222xf32>
    %354 = vector.broadcast %352 : vector<4x1xf32> to vector<4x222xf32>
    %355 = vector.broadcast %353 : vector<1x222xf32> to vector<4x222xf32>
    %356 = arith.mulf %354, %355 : vector<4x222xf32>
    %357 = arith.addf %351, %356 : vector<4x222xf32>
    %358 = vector.extract_strided_slice %225 {offsets = [0, 22], sizes = [4, 1], strides = [1, 1]} : vector<4x36xf32> to vector<4x1xf32>
    %359 = vector.extract_strided_slice %3 {offsets = [2, 17], sizes = [1, 222], strides = [1, 1]} : vector<4x256xf32> to vector<1x222xf32>
    %360 = vector.broadcast %358 : vector<4x1xf32> to vector<4x222xf32>
    %361 = vector.broadcast %359 : vector<1x222xf32> to vector<4x222xf32>
    %362 = arith.mulf %360, %361 : vector<4x222xf32>
    %363 = arith.addf %357, %362 : vector<4x222xf32>
    %364 = vector.extract_strided_slice %225 {offsets = [0, 23], sizes = [4, 1], strides = [1, 1]} : vector<4x36xf32> to vector<4x1xf32>
    %365 = vector.extract_strided_slice %3 {offsets = [2, 18], sizes = [1, 222], strides = [1, 1]} : vector<4x256xf32> to vector<1x222xf32>
    %366 = vector.broadcast %364 : vector<4x1xf32> to vector<4x222xf32>
    %367 = vector.broadcast %365 : vector<1x222xf32> to vector<4x222xf32>
    %368 = arith.mulf %366, %367 : vector<4x222xf32>
    %369 = arith.addf %363, %368 : vector<4x222xf32>
    %370 = vector.extract_strided_slice %225 {offsets = [0, 24], sizes = [4, 1], strides = [1, 1]} : vector<4x36xf32> to vector<4x1xf32>
    %371 = vector.extract_strided_slice %3 {offsets = [2, 32], sizes = [1, 222], strides = [1, 1]} : vector<4x256xf32> to vector<1x222xf32>
    %372 = vector.broadcast %370 : vector<4x1xf32> to vector<4x222xf32>
    %373 = vector.broadcast %371 : vector<1x222xf32> to vector<4x222xf32>
    %374 = arith.mulf %372, %373 : vector<4x222xf32>
    %375 = arith.addf %369, %374 : vector<4x222xf32>
    %376 = vector.extract_strided_slice %225 {offsets = [0, 25], sizes = [4, 1], strides = [1, 1]} : vector<4x36xf32> to vector<4x1xf32>
    %377 = vector.extract_strided_slice %3 {offsets = [2, 33], sizes = [1, 222], strides = [1, 1]} : vector<4x256xf32> to vector<1x222xf32>
    %378 = vector.broadcast %376 : vector<4x1xf32> to vector<4x222xf32>
    %379 = vector.broadcast %377 : vector<1x222xf32> to vector<4x222xf32>
    %380 = arith.mulf %378, %379 : vector<4x222xf32>
    %381 = arith.addf %375, %380 : vector<4x222xf32>
    %382 = vector.extract_strided_slice %225 {offsets = [0, 26], sizes = [4, 1], strides = [1, 1]} : vector<4x36xf32> to vector<4x1xf32>
    %383 = vector.extract_strided_slice %3 {offsets = [2, 34], sizes = [1, 222], strides = [1, 1]} : vector<4x256xf32> to vector<1x222xf32>
    %384 = vector.broadcast %382 : vector<4x1xf32> to vector<4x222xf32>
    %385 = vector.broadcast %383 : vector<1x222xf32> to vector<4x222xf32>
    %386 = arith.mulf %384, %385 : vector<4x222xf32>
    %387 = arith.addf %381, %386 : vector<4x222xf32>
    %388 = vector.extract_strided_slice %225 {offsets = [0, 27], sizes = [4, 1], strides = [1, 1]} : vector<4x36xf32> to vector<4x1xf32>
    %389 = vector.extract_strided_slice %3 {offsets = [3, 0], sizes = [1, 222], strides = [1, 1]} : vector<4x256xf32> to vector<1x222xf32>
    %390 = vector.broadcast %388 : vector<4x1xf32> to vector<4x222xf32>
    %391 = vector.broadcast %389 : vector<1x222xf32> to vector<4x222xf32>
    %392 = arith.mulf %390, %391 : vector<4x222xf32>
    %393 = arith.addf %387, %392 : vector<4x222xf32>
    %394 = vector.extract_strided_slice %225 {offsets = [0, 28], sizes = [4, 1], strides = [1, 1]} : vector<4x36xf32> to vector<4x1xf32>
    %395 = vector.extract_strided_slice %3 {offsets = [3, 1], sizes = [1, 222], strides = [1, 1]} : vector<4x256xf32> to vector<1x222xf32>
    %396 = vector.broadcast %394 : vector<4x1xf32> to vector<4x222xf32>
    %397 = vector.broadcast %395 : vector<1x222xf32> to vector<4x222xf32>
    %398 = arith.mulf %396, %397 : vector<4x222xf32>
    %399 = arith.addf %393, %398 : vector<4x222xf32>
    %400 = vector.extract_strided_slice %225 {offsets = [0, 29], sizes = [4, 1], strides = [1, 1]} : vector<4x36xf32> to vector<4x1xf32>
    %401 = vector.extract_strided_slice %3 {offsets = [3, 2], sizes = [1, 222], strides = [1, 1]} : vector<4x256xf32> to vector<1x222xf32>
    %402 = vector.broadcast %400 : vector<4x1xf32> to vector<4x222xf32>
    %403 = vector.broadcast %401 : vector<1x222xf32> to vector<4x222xf32>
    %404 = arith.mulf %402, %403 : vector<4x222xf32>
    %405 = arith.addf %399, %404 : vector<4x222xf32>
    %406 = vector.extract_strided_slice %225 {offsets = [0, 30], sizes = [4, 1], strides = [1, 1]} : vector<4x36xf32> to vector<4x1xf32>
    %407 = vector.extract_strided_slice %3 {offsets = [3, 16], sizes = [1, 222], strides = [1, 1]} : vector<4x256xf32> to vector<1x222xf32>
    %408 = vector.broadcast %406 : vector<4x1xf32> to vector<4x222xf32>
    %409 = vector.broadcast %407 : vector<1x222xf32> to vector<4x222xf32>
    %410 = arith.mulf %408, %409 : vector<4x222xf32>
    %411 = arith.addf %405, %410 : vector<4x222xf32>
    %412 = vector.extract_strided_slice %225 {offsets = [0, 31], sizes = [4, 1], strides = [1, 1]} : vector<4x36xf32> to vector<4x1xf32>
    %413 = vector.extract_strided_slice %3 {offsets = [3, 17], sizes = [1, 222], strides = [1, 1]} : vector<4x256xf32> to vector<1x222xf32>
    %414 = vector.broadcast %412 : vector<4x1xf32> to vector<4x222xf32>
    %415 = vector.broadcast %413 : vector<1x222xf32> to vector<4x222xf32>
    %416 = arith.mulf %414, %415 : vector<4x222xf32>
    %417 = arith.addf %411, %416 : vector<4x222xf32>
    %418 = vector.extract_strided_slice %225 {offsets = [0, 32], sizes = [4, 1], strides = [1, 1]} : vector<4x36xf32> to vector<4x1xf32>
    %419 = vector.extract_strided_slice %3 {offsets = [3, 18], sizes = [1, 222], strides = [1, 1]} : vector<4x256xf32> to vector<1x222xf32>
    %420 = vector.broadcast %418 : vector<4x1xf32> to vector<4x222xf32>
    %421 = vector.broadcast %419 : vector<1x222xf32> to vector<4x222xf32>
    %422 = arith.mulf %420, %421 : vector<4x222xf32>
    %423 = arith.addf %417, %422 : vector<4x222xf32>
    %424 = vector.extract_strided_slice %225 {offsets = [0, 33], sizes = [4, 1], strides = [1, 1]} : vector<4x36xf32> to vector<4x1xf32>
    %425 = vector.extract_strided_slice %3 {offsets = [3, 32], sizes = [1, 222], strides = [1, 1]} : vector<4x256xf32> to vector<1x222xf32>
    %426 = vector.broadcast %424 : vector<4x1xf32> to vector<4x222xf32>
    %427 = vector.broadcast %425 : vector<1x222xf32> to vector<4x222xf32>
    %428 = arith.mulf %426, %427 : vector<4x222xf32>
    %429 = arith.addf %423, %428 : vector<4x222xf32>
    %430 = vector.extract_strided_slice %225 {offsets = [0, 34], sizes = [4, 1], strides = [1, 1]} : vector<4x36xf32> to vector<4x1xf32>
    %431 = vector.extract_strided_slice %3 {offsets = [3, 33], sizes = [1, 222], strides = [1, 1]} : vector<4x256xf32> to vector<1x222xf32>
    %432 = vector.broadcast %430 : vector<4x1xf32> to vector<4x222xf32>
    %433 = vector.broadcast %431 : vector<1x222xf32> to vector<4x222xf32>
    %434 = arith.mulf %432, %433 : vector<4x222xf32>
    %435 = arith.addf %429, %434 : vector<4x222xf32>
    %436 = vector.extract_strided_slice %225 {offsets = [0, 35], sizes = [4, 1], strides = [1, 1]} : vector<4x36xf32> to vector<4x1xf32>
    %437 = vector.extract_strided_slice %3 {offsets = [3, 34], sizes = [1, 222], strides = [1, 1]} : vector<4x256xf32> to vector<1x222xf32>
    %438 = vector.broadcast %436 : vector<4x1xf32> to vector<4x222xf32>
    %439 = vector.broadcast %437 : vector<1x222xf32> to vector<4x222xf32>
    %440 = arith.mulf %438, %439 : vector<4x222xf32>
    %441 = arith.addf %435, %440 : vector<4x222xf32>
    %442 = vector.broadcast %226 : vector<4x1xf32> to vector<4x222xf32>
    %443 = arith.addf %441, %442 : vector<4x222xf32>
    %cst_13 = arith.constant 0.000000e+00 : f32
    %444 = vector.broadcast %cst_13 : f32 to vector<4x222xf32>
    %445 = arith.maximumf %443, %444 : vector<4x222xf32>
    %446 = vector.extract_strided_slice %224 {offsets = [0, 0], sizes = [4, 1], strides = [1, 1]} : vector<4x46xf32> to vector<4x1xf32>
    %447 = vector.extract_strided_slice %445 {offsets = [0, 0], sizes = [4, 137], strides = [1, 1]} : vector<4x222xf32> to vector<4x137xf32>
    %448 = vector.broadcast %446 : vector<4x1xf32> to vector<4x137xf32>
    %449 = arith.mulf %448, %447 : vector<4x137xf32>
    %450 = vector.extract_strided_slice %224 {offsets = [0, 1], sizes = [4, 1], strides = [1, 1]} : vector<4x46xf32> to vector<4x1xf32>
    %451 = vector.extract_strided_slice %445 {offsets = [0, 1], sizes = [4, 137], strides = [1, 1]} : vector<4x222xf32> to vector<4x137xf32>
    %452 = vector.broadcast %450 : vector<4x1xf32> to vector<4x137xf32>
    %453 = arith.mulf %452, %451 : vector<4x137xf32>
    %454 = arith.addf %449, %453 : vector<4x137xf32>
    %455 = vector.extract_strided_slice %224 {offsets = [0, 2], sizes = [4, 1], strides = [1, 1]} : vector<4x46xf32> to vector<4x1xf32>
    %456 = vector.extract_strided_slice %445 {offsets = [0, 2], sizes = [4, 137], strides = [1, 1]} : vector<4x222xf32> to vector<4x137xf32>
    %457 = vector.broadcast %455 : vector<4x1xf32> to vector<4x137xf32>
    %458 = arith.mulf %457, %456 : vector<4x137xf32>
    %459 = arith.addf %454, %458 : vector<4x137xf32>
    %460 = vector.extract_strided_slice %224 {offsets = [0, 3], sizes = [4, 1], strides = [1, 1]} : vector<4x46xf32> to vector<4x1xf32>
    %461 = vector.extract_strided_slice %445 {offsets = [0, 3], sizes = [4, 137], strides = [1, 1]} : vector<4x222xf32> to vector<4x137xf32>
    %462 = vector.broadcast %460 : vector<4x1xf32> to vector<4x137xf32>
    %463 = arith.mulf %462, %461 : vector<4x137xf32>
    %464 = arith.addf %459, %463 : vector<4x137xf32>
    %465 = vector.extract_strided_slice %224 {offsets = [0, 4], sizes = [4, 1], strides = [1, 1]} : vector<4x46xf32> to vector<4x1xf32>
    %466 = vector.extract_strided_slice %445 {offsets = [0, 4], sizes = [4, 137], strides = [1, 1]} : vector<4x222xf32> to vector<4x137xf32>
    %467 = vector.broadcast %465 : vector<4x1xf32> to vector<4x137xf32>
    %468 = arith.mulf %467, %466 : vector<4x137xf32>
    %469 = arith.addf %464, %468 : vector<4x137xf32>
    %470 = vector.extract_strided_slice %224 {offsets = [0, 5], sizes = [4, 1], strides = [1, 1]} : vector<4x46xf32> to vector<4x1xf32>
    %471 = vector.extract_strided_slice %445 {offsets = [0, 5], sizes = [4, 137], strides = [1, 1]} : vector<4x222xf32> to vector<4x137xf32>
    %472 = vector.broadcast %470 : vector<4x1xf32> to vector<4x137xf32>
    %473 = arith.mulf %472, %471 : vector<4x137xf32>
    %474 = arith.addf %469, %473 : vector<4x137xf32>
    %475 = vector.extract_strided_slice %224 {offsets = [0, 8], sizes = [4, 1], strides = [1, 1]} : vector<4x46xf32> to vector<4x1xf32>
    %476 = vector.extract_strided_slice %445 {offsets = [0, 16], sizes = [4, 137], strides = [1, 1]} : vector<4x222xf32> to vector<4x137xf32>
    %477 = vector.broadcast %475 : vector<4x1xf32> to vector<4x137xf32>
    %478 = arith.mulf %477, %476 : vector<4x137xf32>
    %479 = arith.addf %474, %478 : vector<4x137xf32>
    %480 = vector.extract_strided_slice %224 {offsets = [0, 9], sizes = [4, 1], strides = [1, 1]} : vector<4x46xf32> to vector<4x1xf32>
    %481 = vector.extract_strided_slice %445 {offsets = [0, 17], sizes = [4, 137], strides = [1, 1]} : vector<4x222xf32> to vector<4x137xf32>
    %482 = vector.broadcast %480 : vector<4x1xf32> to vector<4x137xf32>
    %483 = arith.mulf %482, %481 : vector<4x137xf32>
    %484 = arith.addf %479, %483 : vector<4x137xf32>
    %485 = vector.extract_strided_slice %224 {offsets = [0, 10], sizes = [4, 1], strides = [1, 1]} : vector<4x46xf32> to vector<4x1xf32>
    %486 = vector.extract_strided_slice %445 {offsets = [0, 18], sizes = [4, 137], strides = [1, 1]} : vector<4x222xf32> to vector<4x137xf32>
    %487 = vector.broadcast %485 : vector<4x1xf32> to vector<4x137xf32>
    %488 = arith.mulf %487, %486 : vector<4x137xf32>
    %489 = arith.addf %484, %488 : vector<4x137xf32>
    %490 = vector.extract_strided_slice %224 {offsets = [0, 11], sizes = [4, 1], strides = [1, 1]} : vector<4x46xf32> to vector<4x1xf32>
    %491 = vector.extract_strided_slice %445 {offsets = [0, 19], sizes = [4, 137], strides = [1, 1]} : vector<4x222xf32> to vector<4x137xf32>
    %492 = vector.broadcast %490 : vector<4x1xf32> to vector<4x137xf32>
    %493 = arith.mulf %492, %491 : vector<4x137xf32>
    %494 = arith.addf %489, %493 : vector<4x137xf32>
    %495 = vector.extract_strided_slice %224 {offsets = [0, 12], sizes = [4, 1], strides = [1, 1]} : vector<4x46xf32> to vector<4x1xf32>
    %496 = vector.extract_strided_slice %445 {offsets = [0, 20], sizes = [4, 137], strides = [1, 1]} : vector<4x222xf32> to vector<4x137xf32>
    %497 = vector.broadcast %495 : vector<4x1xf32> to vector<4x137xf32>
    %498 = arith.mulf %497, %496 : vector<4x137xf32>
    %499 = arith.addf %494, %498 : vector<4x137xf32>
    %500 = vector.extract_strided_slice %224 {offsets = [0, 13], sizes = [4, 1], strides = [1, 1]} : vector<4x46xf32> to vector<4x1xf32>
    %501 = vector.extract_strided_slice %445 {offsets = [0, 21], sizes = [4, 137], strides = [1, 1]} : vector<4x222xf32> to vector<4x137xf32>
    %502 = vector.broadcast %500 : vector<4x1xf32> to vector<4x137xf32>
    %503 = arith.mulf %502, %501 : vector<4x137xf32>
    %504 = arith.addf %499, %503 : vector<4x137xf32>
    %505 = vector.extract_strided_slice %224 {offsets = [0, 16], sizes = [4, 1], strides = [1, 1]} : vector<4x46xf32> to vector<4x1xf32>
    %506 = vector.extract_strided_slice %445 {offsets = [0, 32], sizes = [4, 137], strides = [1, 1]} : vector<4x222xf32> to vector<4x137xf32>
    %507 = vector.broadcast %505 : vector<4x1xf32> to vector<4x137xf32>
    %508 = arith.mulf %507, %506 : vector<4x137xf32>
    %509 = arith.addf %504, %508 : vector<4x137xf32>
    %510 = vector.extract_strided_slice %224 {offsets = [0, 17], sizes = [4, 1], strides = [1, 1]} : vector<4x46xf32> to vector<4x1xf32>
    %511 = vector.extract_strided_slice %445 {offsets = [0, 33], sizes = [4, 137], strides = [1, 1]} : vector<4x222xf32> to vector<4x137xf32>
    %512 = vector.broadcast %510 : vector<4x1xf32> to vector<4x137xf32>
    %513 = arith.mulf %512, %511 : vector<4x137xf32>
    %514 = arith.addf %509, %513 : vector<4x137xf32>
    %515 = vector.extract_strided_slice %224 {offsets = [0, 18], sizes = [4, 1], strides = [1, 1]} : vector<4x46xf32> to vector<4x1xf32>
    %516 = vector.extract_strided_slice %445 {offsets = [0, 34], sizes = [4, 137], strides = [1, 1]} : vector<4x222xf32> to vector<4x137xf32>
    %517 = vector.broadcast %515 : vector<4x1xf32> to vector<4x137xf32>
    %518 = arith.mulf %517, %516 : vector<4x137xf32>
    %519 = arith.addf %514, %518 : vector<4x137xf32>
    %520 = vector.extract_strided_slice %224 {offsets = [0, 19], sizes = [4, 1], strides = [1, 1]} : vector<4x46xf32> to vector<4x1xf32>
    %521 = vector.extract_strided_slice %445 {offsets = [0, 35], sizes = [4, 137], strides = [1, 1]} : vector<4x222xf32> to vector<4x137xf32>
    %522 = vector.broadcast %520 : vector<4x1xf32> to vector<4x137xf32>
    %523 = arith.mulf %522, %521 : vector<4x137xf32>
    %524 = arith.addf %519, %523 : vector<4x137xf32>
    %525 = vector.extract_strided_slice %224 {offsets = [0, 20], sizes = [4, 1], strides = [1, 1]} : vector<4x46xf32> to vector<4x1xf32>
    %526 = vector.extract_strided_slice %445 {offsets = [0, 36], sizes = [4, 137], strides = [1, 1]} : vector<4x222xf32> to vector<4x137xf32>
    %527 = vector.broadcast %525 : vector<4x1xf32> to vector<4x137xf32>
    %528 = arith.mulf %527, %526 : vector<4x137xf32>
    %529 = arith.addf %524, %528 : vector<4x137xf32>
    %530 = vector.extract_strided_slice %224 {offsets = [0, 21], sizes = [4, 1], strides = [1, 1]} : vector<4x46xf32> to vector<4x1xf32>
    %531 = vector.extract_strided_slice %445 {offsets = [0, 37], sizes = [4, 137], strides = [1, 1]} : vector<4x222xf32> to vector<4x137xf32>
    %532 = vector.broadcast %530 : vector<4x1xf32> to vector<4x137xf32>
    %533 = arith.mulf %532, %531 : vector<4x137xf32>
    %534 = arith.addf %529, %533 : vector<4x137xf32>
    %535 = vector.extract_strided_slice %224 {offsets = [0, 24], sizes = [4, 1], strides = [1, 1]} : vector<4x46xf32> to vector<4x1xf32>
    %536 = vector.extract_strided_slice %445 {offsets = [0, 48], sizes = [4, 137], strides = [1, 1]} : vector<4x222xf32> to vector<4x137xf32>
    %537 = vector.broadcast %535 : vector<4x1xf32> to vector<4x137xf32>
    %538 = arith.mulf %537, %536 : vector<4x137xf32>
    %539 = arith.addf %534, %538 : vector<4x137xf32>
    %540 = vector.extract_strided_slice %224 {offsets = [0, 25], sizes = [4, 1], strides = [1, 1]} : vector<4x46xf32> to vector<4x1xf32>
    %541 = vector.extract_strided_slice %445 {offsets = [0, 49], sizes = [4, 137], strides = [1, 1]} : vector<4x222xf32> to vector<4x137xf32>
    %542 = vector.broadcast %540 : vector<4x1xf32> to vector<4x137xf32>
    %543 = arith.mulf %542, %541 : vector<4x137xf32>
    %544 = arith.addf %539, %543 : vector<4x137xf32>
    %545 = vector.extract_strided_slice %224 {offsets = [0, 26], sizes = [4, 1], strides = [1, 1]} : vector<4x46xf32> to vector<4x1xf32>
    %546 = vector.extract_strided_slice %445 {offsets = [0, 50], sizes = [4, 137], strides = [1, 1]} : vector<4x222xf32> to vector<4x137xf32>
    %547 = vector.broadcast %545 : vector<4x1xf32> to vector<4x137xf32>
    %548 = arith.mulf %547, %546 : vector<4x137xf32>
    %549 = arith.addf %544, %548 : vector<4x137xf32>
    %550 = vector.extract_strided_slice %224 {offsets = [0, 27], sizes = [4, 1], strides = [1, 1]} : vector<4x46xf32> to vector<4x1xf32>
    %551 = vector.extract_strided_slice %445 {offsets = [0, 51], sizes = [4, 137], strides = [1, 1]} : vector<4x222xf32> to vector<4x137xf32>
    %552 = vector.broadcast %550 : vector<4x1xf32> to vector<4x137xf32>
    %553 = arith.mulf %552, %551 : vector<4x137xf32>
    %554 = arith.addf %549, %553 : vector<4x137xf32>
    %555 = vector.extract_strided_slice %224 {offsets = [0, 28], sizes = [4, 1], strides = [1, 1]} : vector<4x46xf32> to vector<4x1xf32>
    %556 = vector.extract_strided_slice %445 {offsets = [0, 52], sizes = [4, 137], strides = [1, 1]} : vector<4x222xf32> to vector<4x137xf32>
    %557 = vector.broadcast %555 : vector<4x1xf32> to vector<4x137xf32>
    %558 = arith.mulf %557, %556 : vector<4x137xf32>
    %559 = arith.addf %554, %558 : vector<4x137xf32>
    %560 = vector.extract_strided_slice %224 {offsets = [0, 29], sizes = [4, 1], strides = [1, 1]} : vector<4x46xf32> to vector<4x1xf32>
    %561 = vector.extract_strided_slice %445 {offsets = [0, 53], sizes = [4, 137], strides = [1, 1]} : vector<4x222xf32> to vector<4x137xf32>
    %562 = vector.broadcast %560 : vector<4x1xf32> to vector<4x137xf32>
    %563 = arith.mulf %562, %561 : vector<4x137xf32>
    %564 = arith.addf %559, %563 : vector<4x137xf32>
    %565 = vector.extract_strided_slice %224 {offsets = [0, 32], sizes = [4, 1], strides = [1, 1]} : vector<4x46xf32> to vector<4x1xf32>
    %566 = vector.extract_strided_slice %445 {offsets = [0, 64], sizes = [4, 137], strides = [1, 1]} : vector<4x222xf32> to vector<4x137xf32>
    %567 = vector.broadcast %565 : vector<4x1xf32> to vector<4x137xf32>
    %568 = arith.mulf %567, %566 : vector<4x137xf32>
    %569 = arith.addf %564, %568 : vector<4x137xf32>
    %570 = vector.extract_strided_slice %224 {offsets = [0, 33], sizes = [4, 1], strides = [1, 1]} : vector<4x46xf32> to vector<4x1xf32>
    %571 = vector.extract_strided_slice %445 {offsets = [0, 65], sizes = [4, 137], strides = [1, 1]} : vector<4x222xf32> to vector<4x137xf32>
    %572 = vector.broadcast %570 : vector<4x1xf32> to vector<4x137xf32>
    %573 = arith.mulf %572, %571 : vector<4x137xf32>
    %574 = arith.addf %569, %573 : vector<4x137xf32>
    %575 = vector.extract_strided_slice %224 {offsets = [0, 34], sizes = [4, 1], strides = [1, 1]} : vector<4x46xf32> to vector<4x1xf32>
    %576 = vector.extract_strided_slice %445 {offsets = [0, 66], sizes = [4, 137], strides = [1, 1]} : vector<4x222xf32> to vector<4x137xf32>
    %577 = vector.broadcast %575 : vector<4x1xf32> to vector<4x137xf32>
    %578 = arith.mulf %577, %576 : vector<4x137xf32>
    %579 = arith.addf %574, %578 : vector<4x137xf32>
    %580 = vector.extract_strided_slice %224 {offsets = [0, 35], sizes = [4, 1], strides = [1, 1]} : vector<4x46xf32> to vector<4x1xf32>
    %581 = vector.extract_strided_slice %445 {offsets = [0, 67], sizes = [4, 137], strides = [1, 1]} : vector<4x222xf32> to vector<4x137xf32>
    %582 = vector.broadcast %580 : vector<4x1xf32> to vector<4x137xf32>
    %583 = arith.mulf %582, %581 : vector<4x137xf32>
    %584 = arith.addf %579, %583 : vector<4x137xf32>
    %585 = vector.extract_strided_slice %224 {offsets = [0, 36], sizes = [4, 1], strides = [1, 1]} : vector<4x46xf32> to vector<4x1xf32>
    %586 = vector.extract_strided_slice %445 {offsets = [0, 68], sizes = [4, 137], strides = [1, 1]} : vector<4x222xf32> to vector<4x137xf32>
    %587 = vector.broadcast %585 : vector<4x1xf32> to vector<4x137xf32>
    %588 = arith.mulf %587, %586 : vector<4x137xf32>
    %589 = arith.addf %584, %588 : vector<4x137xf32>
    %590 = vector.extract_strided_slice %224 {offsets = [0, 37], sizes = [4, 1], strides = [1, 1]} : vector<4x46xf32> to vector<4x1xf32>
    %591 = vector.extract_strided_slice %445 {offsets = [0, 69], sizes = [4, 137], strides = [1, 1]} : vector<4x222xf32> to vector<4x137xf32>
    %592 = vector.broadcast %590 : vector<4x1xf32> to vector<4x137xf32>
    %593 = arith.mulf %592, %591 : vector<4x137xf32>
    %594 = arith.addf %589, %593 : vector<4x137xf32>
    %595 = vector.extract_strided_slice %224 {offsets = [0, 40], sizes = [4, 1], strides = [1, 1]} : vector<4x46xf32> to vector<4x1xf32>
    %596 = vector.extract_strided_slice %445 {offsets = [0, 80], sizes = [4, 137], strides = [1, 1]} : vector<4x222xf32> to vector<4x137xf32>
    %597 = vector.broadcast %595 : vector<4x1xf32> to vector<4x137xf32>
    %598 = arith.mulf %597, %596 : vector<4x137xf32>
    %599 = arith.addf %594, %598 : vector<4x137xf32>
    %600 = vector.extract_strided_slice %224 {offsets = [0, 41], sizes = [4, 1], strides = [1, 1]} : vector<4x46xf32> to vector<4x1xf32>
    %601 = vector.extract_strided_slice %445 {offsets = [0, 81], sizes = [4, 137], strides = [1, 1]} : vector<4x222xf32> to vector<4x137xf32>
    %602 = vector.broadcast %600 : vector<4x1xf32> to vector<4x137xf32>
    %603 = arith.mulf %602, %601 : vector<4x137xf32>
    %604 = arith.addf %599, %603 : vector<4x137xf32>
    %605 = vector.extract_strided_slice %224 {offsets = [0, 42], sizes = [4, 1], strides = [1, 1]} : vector<4x46xf32> to vector<4x1xf32>
    %606 = vector.extract_strided_slice %445 {offsets = [0, 82], sizes = [4, 137], strides = [1, 1]} : vector<4x222xf32> to vector<4x137xf32>
    %607 = vector.broadcast %605 : vector<4x1xf32> to vector<4x137xf32>
    %608 = arith.mulf %607, %606 : vector<4x137xf32>
    %609 = arith.addf %604, %608 : vector<4x137xf32>
    %610 = vector.extract_strided_slice %224 {offsets = [0, 43], sizes = [4, 1], strides = [1, 1]} : vector<4x46xf32> to vector<4x1xf32>
    %611 = vector.extract_strided_slice %445 {offsets = [0, 83], sizes = [4, 137], strides = [1, 1]} : vector<4x222xf32> to vector<4x137xf32>
    %612 = vector.broadcast %610 : vector<4x1xf32> to vector<4x137xf32>
    %613 = arith.mulf %612, %611 : vector<4x137xf32>
    %614 = arith.addf %609, %613 : vector<4x137xf32>
    %615 = vector.extract_strided_slice %224 {offsets = [0, 44], sizes = [4, 1], strides = [1, 1]} : vector<4x46xf32> to vector<4x1xf32>
    %616 = vector.extract_strided_slice %445 {offsets = [0, 84], sizes = [4, 137], strides = [1, 1]} : vector<4x222xf32> to vector<4x137xf32>
    %617 = vector.broadcast %615 : vector<4x1xf32> to vector<4x137xf32>
    %618 = arith.mulf %617, %616 : vector<4x137xf32>
    %619 = arith.addf %614, %618 : vector<4x137xf32>
    %620 = vector.extract_strided_slice %224 {offsets = [0, 45], sizes = [4, 1], strides = [1, 1]} : vector<4x46xf32> to vector<4x1xf32>
    %621 = vector.extract_strided_slice %445 {offsets = [0, 85], sizes = [4, 137], strides = [1, 1]} : vector<4x222xf32> to vector<4x137xf32>
    %622 = vector.broadcast %620 : vector<4x1xf32> to vector<4x137xf32>
    %623 = arith.mulf %622, %621 : vector<4x137xf32>
    %624 = arith.addf %619, %623 : vector<4x137xf32>
    %625 = vector.extract_strided_slice %624 {offsets = [0, 0], sizes = [4, 9], strides = [1, 1]} : vector<4x137xf32> to vector<4x9xf32>
    %626 = vector.extract_strided_slice %624 {offsets = [0, 16], sizes = [4, 9], strides = [1, 1]} : vector<4x137xf32> to vector<4x9xf32>
    %627 = vector.extract_strided_slice %624 {offsets = [0, 32], sizes = [4, 9], strides = [1, 1]} : vector<4x137xf32> to vector<4x9xf32>
    %628 = vector.extract_strided_slice %624 {offsets = [0, 48], sizes = [4, 9], strides = [1, 1]} : vector<4x137xf32> to vector<4x9xf32>
    %629 = vector.extract_strided_slice %624 {offsets = [0, 64], sizes = [4, 9], strides = [1, 1]} : vector<4x137xf32> to vector<4x9xf32>
    %630 = vector.extract_strided_slice %624 {offsets = [0, 80], sizes = [4, 9], strides = [1, 1]} : vector<4x137xf32> to vector<4x9xf32>
    %631 = vector.extract_strided_slice %624 {offsets = [0, 96], sizes = [4, 9], strides = [1, 1]} : vector<4x137xf32> to vector<4x9xf32>
    %632 = vector.extract_strided_slice %624 {offsets = [0, 112], sizes = [4, 9], strides = [1, 1]} : vector<4x137xf32> to vector<4x9xf32>
    %633 = vector.extract_strided_slice %624 {offsets = [0, 128], sizes = [4, 9], strides = [1, 1]} : vector<4x137xf32> to vector<4x9xf32>
    %634 = tpu.concatenate %625, %626, %627, %628, %629, %630, %631, %632, %633 in 1 : vector<4x9xf32>, vector<4x9xf32>, vector<4x9xf32>, vector<4x9xf32>, vector<4x9xf32>, vector<4x9xf32>, vector<4x9xf32>, vector<4x9xf32>, vector<4x9xf32> -> vector<4x81xf32>
    %c0_14 = arith.constant 0 : index
    %c0_15 = arith.constant 0 : index
    %635 = vector.load %arg7[%c0_14, %c0_15] : memref<4x4xf32, #tpu.memory_space<vmem>>, vector<4x4xf32>
    %636 = vector.extract_strided_slice %635 {offsets = [0, 0], sizes = [4, 1], strides = [1, 1]} : vector<4x4xf32> to vector<4x1xf32>
    %637 = vector.extract_strided_slice %634 {offsets = [0, 0], sizes = [1, 81], strides = [1, 1]} : vector<4x81xf32> to vector<1x81xf32>
    %638 = vector.broadcast %636 : vector<4x1xf32> to vector<4x81xf32>
    %639 = vector.broadcast %637 : vector<1x81xf32> to vector<4x81xf32>
    %640 = arith.mulf %638, %639 : vector<4x81xf32>
    %641 = vector.extract_strided_slice %635 {offsets = [0, 1], sizes = [4, 1], strides = [1, 1]} : vector<4x4xf32> to vector<4x1xf32>
    %642 = vector.extract_strided_slice %634 {offsets = [1, 0], sizes = [1, 81], strides = [1, 1]} : vector<4x81xf32> to vector<1x81xf32>
    %643 = vector.broadcast %641 : vector<4x1xf32> to vector<4x81xf32>
    %644 = vector.broadcast %642 : vector<1x81xf32> to vector<4x81xf32>
    %645 = arith.mulf %643, %644 : vector<4x81xf32>
    %646 = arith.addf %640, %645 : vector<4x81xf32>
    %647 = vector.extract_strided_slice %635 {offsets = [0, 2], sizes = [4, 1], strides = [1, 1]} : vector<4x4xf32> to vector<4x1xf32>
    %648 = vector.extract_strided_slice %634 {offsets = [2, 0], sizes = [1, 81], strides = [1, 1]} : vector<4x81xf32> to vector<1x81xf32>
    %649 = vector.broadcast %647 : vector<4x1xf32> to vector<4x81xf32>
    %650 = vector.broadcast %648 : vector<1x81xf32> to vector<4x81xf32>
    %651 = arith.mulf %649, %650 : vector<4x81xf32>
    %652 = arith.addf %646, %651 : vector<4x81xf32>
    %653 = vector.extract_strided_slice %635 {offsets = [0, 3], sizes = [4, 1], strides = [1, 1]} : vector<4x4xf32> to vector<4x1xf32>
    %654 = vector.extract_strided_slice %634 {offsets = [3, 0], sizes = [1, 81], strides = [1, 1]} : vector<4x81xf32> to vector<1x81xf32>
    %655 = vector.broadcast %653 : vector<4x1xf32> to vector<4x81xf32>
    %656 = vector.broadcast %654 : vector<1x81xf32> to vector<4x81xf32>
    %657 = arith.mulf %655, %656 : vector<4x81xf32>
    %658 = arith.addf %652, %657 : vector<4x81xf32>
    %c0_16 = arith.constant 0 : index
    %c0_17 = arith.constant 0 : index
    %659 = vector.load %arg8[%c0_16, %c0_17] : memref<4x1xf32, #tpu.memory_space<vmem>>, vector<4x1xf32>
    %660 = vector.broadcast %659 : vector<4x1xf32> to vector<4x81xf32>
    %661 = arith.addf %658, %660 : vector<4x81xf32>
    %cst_18 = arith.constant 0.000000e+00 : f32
    %662 = vector.broadcast %cst_18 : f32 to vector<4x81xf32>
    %663 = arith.maximumf %661, %662 : vector<4x81xf32>
    %c0_19 = arith.constant 0 : index
    %c0_20 = arith.constant 0 : index
    %664 = vector.load %arg9[%c0_19, %c0_20] : memref<18x4xf32, #tpu.memory_space<vmem>>, vector<18x4xf32>
    %665 = vector.extract_strided_slice %664 {offsets = [0, 0], sizes = [18, 1], strides = [1, 1]} : vector<18x4xf32> to vector<18x1xf32>
    %666 = vector.extract_strided_slice %663 {offsets = [0, 0], sizes = [1, 81], strides = [1, 1]} : vector<4x81xf32> to vector<1x81xf32>
    %667 = vector.broadcast %665 : vector<18x1xf32> to vector<18x81xf32>
    %668 = vector.broadcast %666 : vector<1x81xf32> to vector<18x81xf32>
    %669 = arith.mulf %667, %668 : vector<18x81xf32>
    %670 = vector.extract_strided_slice %664 {offsets = [0, 1], sizes = [18, 1], strides = [1, 1]} : vector<18x4xf32> to vector<18x1xf32>
    %671 = vector.extract_strided_slice %663 {offsets = [1, 0], sizes = [1, 81], strides = [1, 1]} : vector<4x81xf32> to vector<1x81xf32>
    %672 = vector.broadcast %670 : vector<18x1xf32> to vector<18x81xf32>
    %673 = vector.broadcast %671 : vector<1x81xf32> to vector<18x81xf32>
    %674 = arith.mulf %672, %673 : vector<18x81xf32>
    %675 = arith.addf %669, %674 : vector<18x81xf32>
    %676 = vector.extract_strided_slice %664 {offsets = [0, 2], sizes = [18, 1], strides = [1, 1]} : vector<18x4xf32> to vector<18x1xf32>
    %677 = vector.extract_strided_slice %663 {offsets = [2, 0], sizes = [1, 81], strides = [1, 1]} : vector<4x81xf32> to vector<1x81xf32>
    %678 = vector.broadcast %676 : vector<18x1xf32> to vector<18x81xf32>
    %679 = vector.broadcast %677 : vector<1x81xf32> to vector<18x81xf32>
    %680 = arith.mulf %678, %679 : vector<18x81xf32>
    %681 = arith.addf %675, %680 : vector<18x81xf32>
    %682 = vector.extract_strided_slice %664 {offsets = [0, 3], sizes = [18, 1], strides = [1, 1]} : vector<18x4xf32> to vector<18x1xf32>
    %683 = vector.extract_strided_slice %663 {offsets = [3, 0], sizes = [1, 81], strides = [1, 1]} : vector<4x81xf32> to vector<1x81xf32>
    %684 = vector.broadcast %682 : vector<18x1xf32> to vector<18x81xf32>
    %685 = vector.broadcast %683 : vector<1x81xf32> to vector<18x81xf32>
    %686 = arith.mulf %684, %685 : vector<18x81xf32>
    %687 = arith.addf %681, %686 : vector<18x81xf32>
    %c0_21 = arith.constant 0 : index
    %c0_22 = arith.constant 0 : index
    %688 = vector.load %arg10[%c0_21, %c0_22] : memref<18x1xf32, #tpu.memory_space<vmem>>, vector<18x1xf32>
    %689 = vector.broadcast %688 : vector<18x1xf32> to vector<18x81xf32>
    %690 = arith.addf %687, %689 : vector<18x81xf32>
    %cst_23 = arith.constant 0.000000e+00 : f32
    %691 = vector.broadcast %cst_23 : f32 to vector<18x81xf32>
    %692 = arith.subf %691, %690 : vector<18x81xf32>
    %693 = math.exp %692 : vector<18x81xf32>
    %cst_24 = arith.constant 1.000000e+00 : f32
    %694 = vector.broadcast %cst_24 : f32 to vector<18x81xf32>
    %695 = arith.addf %694, %693 : vector<18x81xf32>
    %696 = tpu.reciprocal %695 {approx = true} : vector<18x81xf32> -> vector<18x81xf32>
    %cst_25 = arith.constant 8.000000e+01 : f32
    %697 = vector.broadcast %cst_25 : f32 to vector<18x81xf32>
    %698 = arith.minimumf %690, %697 : vector<18x81xf32>
    %699 = math.exp %698 : vector<18x81xf32>
    %c0_26 = arith.constant 0 : index
    %c0_27 = arith.constant 0 : index
    %700 = vector.load %arg13[%c0_26, %c0_27] : memref<18x1xf32, #tpu.memory_space<vmem>>, vector<18x1xf32>
    %cst_28 = arith.constant 5.000000e-01 : f32
    %701 = vector.broadcast %cst_28 : f32 to vector<18x1xf32>
    %702 = arith.cmpf ogt, %700, %701 : vector<18x1xf32>
    %703 = vector.shape_cast %702 : vector<18x1xi1> to vector<18x1xi1>
    %704 = vector.broadcast %703 : vector<18x1xi1> to vector<18x81xi1>
    %705 = arith.select %704, %699, %696 : vector<18x81xi1>, vector<18x81xf32>
    %c0_29 = arith.constant 0 : index
    %c0_30 = arith.constant 0 : index
    %706 = vector.load %arg11[%c0_29, %c0_30] : memref<18x81xf32, #tpu.memory_space<vmem>>, vector<18x81xf32>
    %707 = arith.addf %705, %706 : vector<18x81xf32>
    %c0_31 = arith.constant 0 : index
    %c0_32 = arith.constant 0 : index
    %708 = vector.load %arg12[%c0_31, %c0_32] : memref<18x1xf32, #tpu.memory_space<vmem>>, vector<18x1xf32>
    %709 = vector.broadcast %708 : vector<18x1xf32> to vector<18x81xf32>
    %710 = arith.mulf %707, %709 : vector<18x81xf32>
    %c0_33 = arith.constant 0 : index
    %c0_34 = arith.constant 0 : index
    %c0_35 = arith.constant 0 : index
    %711 = vector.load %arg14[%c0_33, %c0_34, %c0_35] : memref<1x18x81xf32, #tpu.memory_space<vmem>>, vector<1x18x81xf32>
    %712 = vector.shape_cast %711 : vector<1x18x81xf32> to vector<18x81xf32>
    %713 = vector.shape_cast %710 : vector<18x81xf32> to vector<1x18x81xf32>
    tpu.vector_store %arg14[%c0_33, %c0_34, %c0_35], %713 {strides = array<i32>} : memref<1x18x81xf32, #tpu.memory_space<vmem>>, vector<1x18x81xf32>,
    return
  }
  func.func @transform_0(%arg0: i32) -> (i32, i32, i32) {
    %c0_i32 = arith.constant 0 : i32
    %c0_i32_0 = arith.constant 0 : i32
    %c0_i32_1 = arith.constant 0 : i32
    return %arg0, %c0_i32, %c0_i32_0 : i32, i32, i32
  }
  func.func @transform_1(%arg0: i32) -> (i32, i32, i32) {
    %c0_i32 = arith.constant 0 : i32
    %c0_i32_0 = arith.constant 0 : i32
    %c0_i32_1 = arith.constant 0 : i32
    return %arg0, %c0_i32, %c0_i32_0 : i32, i32, i32
  }
  func.func @transform_2(%arg0: i32) -> (i32, i32) {
    %c0_i32 = arith.constant 0 : i32
    %c0_i32_0 = arith.constant 0 : i32
    %c0_i32_1 = arith.constant 0 : i32
    return %c0_i32, %c0_i32_0 : i32, i32
  }
  func.func @transform_3(%arg0: i32) -> (i32, i32) {
    %c0_i32 = arith.constant 0 : i32
    %c0_i32_0 = arith.constant 0 : i32
    %c0_i32_1 = arith.constant 0 : i32
    return %c0_i32, %c0_i32_0 : i32, i32
  }
  func.func @transform_4(%arg0: i32) -> (i32, i32) {
    %c0_i32 = arith.constant 0 : i32
    %c0_i32_0 = arith.constant 0 : i32
    %c0_i32_1 = arith.constant 0 : i32
    return %c0_i32, %c0_i32_0 : i32, i32
  }
  func.func @transform_5(%arg0: i32) -> (i32, i32) {
    %c0_i32 = arith.constant 0 : i32
    %c0_i32_0 = arith.constant 0 : i32
    %c0_i32_1 = arith.constant 0 : i32
    return %c0_i32, %c0_i32_0 : i32, i32
  }
  func.func @transform_6(%arg0: i32) -> (i32, i32) {
    %c0_i32 = arith.constant 0 : i32
    %c0_i32_0 = arith.constant 0 : i32
    %c0_i32_1 = arith.constant 0 : i32
    return %c0_i32, %c0_i32_0 : i32, i32
  }
  func.func @transform_7(%arg0: i32) -> (i32, i32) {
    %c0_i32 = arith.constant 0 : i32
    %c0_i32_0 = arith.constant 0 : i32
    %c0_i32_1 = arith.constant 0 : i32
    return %c0_i32, %c0_i32_0 : i32, i32
  }
  func.func @transform_8(%arg0: i32) -> (i32, i32) {
    %c0_i32 = arith.constant 0 : i32
    %c0_i32_0 = arith.constant 0 : i32
    %c0_i32_1 = arith.constant 0 : i32
    return %c0_i32, %c0_i32_0 : i32, i32
  }
  func.func @transform_9(%arg0: i32) -> (i32, i32) {
    %c0_i32 = arith.constant 0 : i32
    %c0_i32_0 = arith.constant 0 : i32
    %c0_i32_1 = arith.constant 0 : i32
    return %c0_i32, %c0_i32_0 : i32, i32
  }
  func.func @transform_10(%arg0: i32) -> (i32, i32) {
    %c0_i32 = arith.constant 0 : i32
    %c0_i32_0 = arith.constant 0 : i32
    %c0_i32_1 = arith.constant 0 : i32
    return %c0_i32, %c0_i32_0 : i32, i32
  }
  func.func @transform_11(%arg0: i32) -> (i32, i32) {
    %c0_i32 = arith.constant 0 : i32
    %c0_i32_0 = arith.constant 0 : i32
    %c0_i32_1 = arith.constant 0 : i32
    return %c0_i32, %c0_i32_0 : i32, i32
  }
  func.func @transform_12(%arg0: i32) -> (i32, i32) {
    %c0_i32 = arith.constant 0 : i32
    %c0_i32_0 = arith.constant 0 : i32
    %c0_i32_1 = arith.constant 0 : i32
    return %c0_i32, %c0_i32_0 : i32, i32
  }
  func.func @transform_13(%arg0: i32) -> (i32, i32, i32) {
    %c0_i32 = arith.constant 0 : i32
    %c0_i32_0 = arith.constant 0 : i32
    %c0_i32_1 = arith.constant 0 : i32
    return %arg0, %c0_i32, %c0_i32_0 : i32, i32, i32
  }
}

</mosaic_0001>

<llo_original>
// kernel: run.1
$region0: #{run.1}
  #allocation0 [shape = 'u32[]', space=smem, size = 0x4, offset = 0x4, fixed_abs, tag = 'smem constant byte address 0x4 - core index']
  #allocation1 [shape = 'u32[144,128]{1,0:T(1,128)}', space=vmem, size = 0x12000, scoped, tag = 'internal scratch']
  %s0 = inlined_call_operand.vmem [shape: f32[2,4,64], index: 0, kind: input, shape index: {}]
  %s1 = inlined_call_operand.vmem [shape: f32[2,4,256], index: 1, kind: input, shape index: {}]
  %s2 = inlined_call_operand.vmem [shape: f32[4,36], index: 2, kind: input, shape index: {}]
  %s3 = inlined_call_operand.vmem [shape: f32[4,1], index: 3, kind: input, shape index: {}]
  %s4 = inlined_call_operand.vmem [shape: f32[4,36], index: 4, kind: input, shape index: {}]
  %s5 = inlined_call_operand.vmem [shape: f32[4,1], index: 5, kind: input, shape index: {}]
  %s6 = inlined_call_operand.vmem [shape: f32[4,4], index: 6, kind: input, shape index: {}]
  %s7 = inlined_call_operand.vmem [shape: f32[4,1], index: 7, kind: input, shape index: {}]
  %s8 = inlined_call_operand.vmem [shape: f32[18,4], index: 8, kind: input, shape index: {}]
  %s9 = inlined_call_operand.vmem [shape: f32[18,1], index: 9, kind: input, shape index: {}]
  %s10 = inlined_call_operand.vmem [shape: f32[18,81], index: 10, kind: input, shape index: {}]
  %s11 = inlined_call_operand.vmem [shape: f32[18,1], index: 11, kind: input, shape index: {}]
  %s12 = inlined_call_operand.vmem [shape: f32[18,1], index: 12, kind: input, shape index: {}]
  %s13 = inlined_call_operand.vmem [shape: f32[2,18,81], index: 13, kind: output, shape index: {}]
  %s14 = sld [smem:[#allocation0]]
  $region85: #{run.1} parent=0
    _
  %s16 = ssub.s32 1, %s14
  %s17 = scalar_select 0, %s16, %s14
  loop: start=0, step=1, limit=4
  $region2: #{run.1} parent=0 // loop_pre_header
    _
  $region3: #{run.1} parent=0 // loop_header
    %s19 = sphi 0, %s23
    %p20 = scmp.ge.s32.totalorder %s19, 4
    %s29 = sphi 0, %s31
    %s32 = sphi 0, %s29
    %s33 = sphi 0, %s32
    %s49 = sphi 0, %s33
    %s55 = sphi 0, %s57
    %s58 = sphi 0, %s55
    %s59 = sphi 0, %s58
    %s75 = sphi 0, %s59
    %s79 = sphi 0, %s79
    %s81 = sphi 0, %s79
    %s82 = sphi 0, %s81
    %s96 = sphi 0, %s82
    %s100 = sphi 0, %s100
    %s102 = sphi 0, %s100
    %s103 = sphi 0, %s102
    %s117 = sphi 0, %s103
    %s121 = sphi 0, %s121
    %s123 = sphi 0, %s121
    %s124 = sphi 0, %s123
    %s138 = sphi 0, %s124
    %s142 = sphi 0, %s142
    %s144 = sphi 0, %s142
    %s145 = sphi 0, %s144
    %s159 = sphi 0, %s145
    %s163 = sphi 0, %s163
    %s165 = sphi 0, %s163
    %s166 = sphi 0, %s165
    %s180 = sphi 0, %s166
    %s184 = sphi 0, %s184
    %s186 = sphi 0, %s184
    %s187 = sphi 0, %s186
    %s201 = sphi 0, %s187
    %s205 = sphi 0, %s205
    %s207 = sphi 0, %s205
    %s208 = sphi 0, %s207
    %s222 = sphi 0, %s208
    %s226 = sphi 0, %s226
    %s228 = sphi 0, %s226
    %s229 = sphi 0, %s228
    %s243 = sphi 0, %s229
    %s247 = sphi 0, %s247
    %s249 = sphi 0, %s247
    %s250 = sphi 0, %s249
    %s264 = sphi 0, %s250
    %s268 = sphi 0, %s268
    %s270 = sphi 0, %s268
    %s271 = sphi 0, %s270
    %s285 = sphi 0, %s271
    %s289 = sphi 0, %s289
    %s291 = sphi 0, %s289
    %s292 = sphi 0, %s291
    %s306 = sphi 0, %s292
    %s312 = sphi 0, %s314
    %s315 = sphi 0, %s312
    %s316 = sphi 0, %s315
    %s332 = sphi 0, %s316
  $region4: #{run.1} parent=0 // loop_header_branch
    %22 = sbr.rel (%p20) target = $region8
  $region5: #{run.1} parent=0 // loop_body
    %s24 = ssub.s32 %s19, 1
    %s25 = ssub.s32 %s19, 2
    %s26 = sadd.s32 %s19, 1
    %s27 = ssub.s32 %s19, %s26
    %p28 = scmp.eq.s32.totalorder %s27, 0
    %s30 = sadd.s32 %s29, 1
    %s31 = scalar_select %p28, %s29, %s30
    %p34 = pneg %p28
    %p35 = scmp.eq.s32.totalorder %s19, 1
    %p36 = por %p34, %p35
    %p37 = scmp.ne.s32.totalorder %s29, %s32
    %p38 = scmp.eq.s32.totalorder %s19, 0
    %p39 = por %p37, %p38
    %p40 = scmp.ne.s32.totalorder %s29, %s32
    %p41 = scmp.eq.s32.totalorder %s24, 1
    %p42 = por %p40, %p41
    %p43 = scmp.ne.s32.totalorder %s32, %s33
    %p44 = scmp.eq.s32.totalorder %s24, 0
    %p45 = por %p43, %p44
    %p46 = scmp.ne.s32.totalorder %s32, %s33
    %p47 = scmp.eq.s32.totalorder %s25, 1
    %p48 = por %p46, %p47
    %p50 = scmp.ne.s32.totalorder %s33, %s49
    %p51 = scmp.eq.s32.totalorder %s25, 0
    %p52 = por %p50, %p51
    %s53 = ssub.s32 %s19, %s26
    %p54 = scmp.eq.s32.totalorder %s53, 0
    %s56 = sadd.s32 %s55, 1
    %s57 = scalar_select %p54, %s55, %s56
    %p60 = pneg %p54
    %p61 = scmp.eq.s32.totalorder %s19, 1
    %p62 = por %p60, %p61
    %p63 = scmp.ne.s32.totalorder %s55, %s58
    %p64 = scmp.eq.s32.totalorder %s19, 0
    %p65 = por %p63, %p64
    %p66 = scmp.ne.s32.totalorder %s55, %s58
    %p67 = scmp.eq.s32.totalorder %s24, 1
    %p68 = por %p66, %p67
    %p69 = scmp.ne.s32.totalorder %s58, %s59
    %p70 = scmp.eq.s32.totalorder %s24, 0
    %p71 = por %p69, %p70
    %p72 = scmp.ne.s32.totalorder %s58, %s59
    %p73 = scmp.eq.s32.totalorder %s25, 1
    %p74 = por %p72, %p73
    %p76 = scmp.ne.s32.totalorder %s59, %s75
    %p77 = scmp.eq.s32.totalorder %s25, 0
    %p78 = por %p76, %p77
    %s80 = sadd.s32 %s79, 1
    %p83 = scmp.eq.s32.totalorder %s19, 1
    %p84 = scmp.ne.s32.totalorder %s79, %s81
    %p85 = scmp.eq.s32.totalorder %s19, 0
    %p86 = por %p84, %p85
    %p87 = scmp.ne.s32.totalorder %s79, %s81
    %p88 = scmp.eq.s32.totalorder %s24, 1
    %p89 = por %p87, %p88
    %p90 = scmp.ne.s32.totalorder %s81, %s82
    %p91 = scmp.eq.s32.totalorder %s24, 0
    %p92 = por %p90, %p91
    %p93 = scmp.ne.s32.totalorder %s81, %s82
    %p94 = scmp.eq.s32.totalorder %s25, 1
    %p95 = por %p93, %p94
    %p97 = scmp.ne.s32.totalorder %s82, %s96
    %p98 = scmp.eq.s32.totalorder %s25, 0
    %p99 = por %p97, %p98
    %s101 = sadd.s32 %s100, 1
    %p104 = scmp.eq.s32.totalorder %s19, 1
    %p105 = scmp.ne.s32.totalorder %s100, %s102
    %p106 = scmp.eq.s32.totalorder %s19, 0
    %p107 = por %p105, %p106
    %p108 = scmp.ne.s32.totalorder %s100, %s102
    %p109 = scmp.eq.s32.totalorder %s24, 1
    %p110 = por %p108, %p109
    %p111 = scmp.ne.s32.totalorder %s102, %s103
    %p112 = scmp.eq.s32.totalorder %s24, 0
    %p113 = por %p111, %p112
    %p114 = scmp.ne.s32.totalorder %s102, %s103
    %p115 = scmp.eq.s32.totalorder %s25, 1
    %p116 = por %p114, %p115
    %p118 = scmp.ne.s32.totalorder %s103, %s117
    %p119 = scmp.eq.s32.totalorder %s25, 0
    %p120 = por %p118, %p119
    %s122 = sadd.s32 %s121, 1
    %p125 = scmp.eq.s32.totalorder %s19, 1
    %p126 = scmp.ne.s32.totalorder %s121, %s123
    %p127 = scmp.eq.s32.totalorder %s19, 0
    %p128 = por %p126, %p127
    %p129 = scmp.ne.s32.totalorder %s121, %s123
    %p130 = scmp.eq.s32.totalorder %s24, 1
    %p131 = por %p129, %p130
    %p132 = scmp.ne.s32.totalorder %s123, %s124
    %p133 = scmp.eq.s32.totalorder %s24, 0
    %p134 = por %p132, %p133
    %p135 = scmp.ne.s32.totalorder %s123, %s124
    %p136 = scmp.eq.s32.totalorder %s25, 1
    %p137 = por %p135, %p136
    %p139 = scmp.ne.s32.totalorder %s124, %s138
    %p140 = scmp.eq.s32.totalorder %s25, 0
    %p141 = por %p139, %p140
    %s143 = sadd.s32 %s142, 1
    %p146 = scmp.eq.s32.totalorder %s19, 1
    %p147 = scmp.ne.s32.totalorder %s142, %s144
    %p148 = scmp.eq.s32.totalorder %s19, 0
    %p149 = por %p147, %p148
    %p150 = scmp.ne.s32.totalorder %s142, %s144
    %p151 = scmp.eq.s32.totalorder %s24, 1
    %p152 = por %p150, %p151
    %p153 = scmp.ne.s32.totalorder %s144, %s145
    %p154 = scmp.eq.s32.totalorder %s24, 0
    %p155 = por %p153, %p154
    %p156 = scmp.ne.s32.totalorder %s144, %s145
    %p157 = scmp.eq.s32.totalorder %s25, 1
    %p158 = por %p156, %p157
    %p160 = scmp.ne.s32.totalorder %s145, %s159
    %p161 = scmp.eq.s32.totalorder %s25, 0
    %p162 = por %p160, %p161
    %s164 = sadd.s32 %s163, 1
    %p167 = scmp.eq.s32.totalorder %s19, 1
    %p168 = scmp.ne.s32.totalorder %s163, %s165
    %p169 = scmp.eq.s32.totalorder %s19, 0
    %p170 = por %p168, %p169
    %p171 = scmp.ne.s32.totalorder %s163, %s165
    %p172 = scmp.eq.s32.totalorder %s24, 1
    %p173 = por %p171, %p172
    %p174 = scmp.ne.s32.totalorder %s165, %s166
    %p175 = scmp.eq.s32.totalorder %s24, 0
    %p176 = por %p174, %p175
    %p177 = scmp.ne.s32.totalorder %s165, %s166
    %p178 = scmp.eq.s32.totalorder %s25, 1
    %p179 = por %p177, %p178
    %p181 = scmp.ne.s32.totalorder %s166, %s180
    %p182 = scmp.eq.s32.totalorder %s25, 0
    %p183 = por %p181, %p182
    %s185 = sadd.s32 %s184, 1
    %p188 = scmp.eq.s32.totalorder %s19, 1
    %p189 = scmp.ne.s32.totalorder %s184, %s186
    %p190 = scmp.eq.s32.totalorder %s19, 0
    %p191 = por %p189, %p190
    %p192 = scmp.ne.s32.totalorder %s184, %s186
    %p193 = scmp.eq.s32.totalorder %s24, 1
    %p194 = por %p192, %p193
    %p195 = scmp.ne.s32.totalorder %s186, %s187
    %p196 = scmp.eq.s32.totalorder %s24, 0
    %p197 = por %p195, %p196
    %p198 = scmp.ne.s32.totalorder %s186, %s187
    %p199 = scmp.eq.s32.totalorder %s25, 1
    %p200 = por %p198, %p199
    %p202 = scmp.ne.s32.totalorder %s187, %s201
    %p203 = scmp.eq.s32.totalorder %s25, 0
    %p204 = por %p202, %p203
    %s206 = sadd.s32 %s205, 1
    %p209 = scmp.eq.s32.totalorder %s19, 1
    %p210 = scmp.ne.s32.totalorder %s205, %s207
    %p211 = scmp.eq.s32.totalorder %s19, 0
    %p212 = por %p210, %p211
    %p213 = scmp.ne.s32.totalorder %s205, %s207
    %p214 = scmp.eq.s32.totalorder %s24, 1
    %p215 = por %p213, %p214
    %p216 = scmp.ne.s32.totalorder %s207, %s208
    %p217 = scmp.eq.s32.totalorder %s24, 0
    %p218 = por %p216, %p217
    %p219 = scmp.ne.s32.totalorder %s207, %s208
    %p220 = scmp.eq.s32.totalorder %s25, 1
    %p221 = por %p219, %p220
    %p223 = scmp.ne.s32.totalorder %s208, %s222
    %p224 = scmp.eq.s32.totalorder %s25, 0
    %p225 = por %p223, %p224
    %s227 = sadd.s32 %s226, 1
    %p230 = scmp.eq.s32.totalorder %s19, 1
    %p231 = scmp.ne.s32.totalorder %s226, %s228
    %p232 = scmp.eq.s32.totalorder %s19, 0
    %p233 = por %p231, %p232
    %p234 = scmp.ne.s32.totalorder %s226, %s228
    %p235 = scmp.eq.s32.totalorder %s24, 1
    %p236 = por %p234, %p235
    %p237 = scmp.ne.s32.totalorder %s228, %s229
    %p238 = scmp.eq.s32.totalorder %s24, 0
    %p239 = por %p237, %p238
    %p240 = scmp.ne.s32.totalorder %s228, %s229
    %p241 = scmp.eq.s32.totalorder %s25, 1
    %p242 = por %p240, %p241
    %p244 = scmp.ne.s32.totalorder %s229, %s243
    %p245 = scmp.eq.s32.totalorder %s25, 0
    %p246 = por %p244, %p245
    %s248 = sadd.s32 %s247, 1
    %p251 = scmp.eq.s32.totalorder %s19, 1
    %p252 = scmp.ne.s32.totalorder %s247, %s249
    %p253 = scmp.eq.s32.totalorder %s19, 0
    %p254 = por %p252, %p253
    %p255 = scmp.ne.s32.totalorder %s247, %s249
    %p256 = scmp.eq.s32.totalorder %s24, 1
    %p257 = por %p255, %p256
    %p258 = scmp.ne.s32.totalorder %s249, %s250
    %p259 = scmp.eq.s32.totalorder %s24, 0
    %p260 = por %p258, %p259
    %p261 = scmp.ne.s32.totalorder %s249, %s250
    %p262 = scmp.eq.s32.totalorder %s25, 1
    %p263 = por %p261, %p262
    %p265 = scmp.ne.s32.totalorder %s250, %s264
    %p266 = scmp.eq.s32.totalorder %s25, 0
    %p267 = por %p265, %p266
    %s269 = sadd.s32 %s268, 1
    %p272 = scmp.eq.s32.totalorder %s19, 1
    %p273 = scmp.ne.s32.totalorder %s268, %s270
    %p274 = scmp.eq.s32.totalorder %s19, 0
    %p275 = por %p273, %p274
    %p276 = scmp.ne.s32.totalorder %s268, %s270
    %p277 = scmp.eq.s32.totalorder %s24, 1
    %p278 = por %p276, %p277
    %p279 = scmp.ne.s32.totalorder %s270, %s271
    %p280 = scmp.eq.s32.totalorder %s24, 0
    %p281 = por %p279, %p280
    %p282 = scmp.ne.s32.totalorder %s270, %s271
    %p283 = scmp.eq.s32.totalorder %s25, 1
    %p284 = por %p282, %p283
    %p286 = scmp.ne.s32.totalorder %s271, %s285
    %p287 = scmp.eq.s32.totalorder %s25, 0
    %p288 = por %p286, %p287
    %s290 = sadd.s32 %s289, 1
    %p293 = scmp.eq.s32.totalorder %s19, 1
    %p294 = scmp.ne.s32.totalorder %s289, %s291
    %p295 = scmp.eq.s32.totalorder %s19, 0
    %p296 = por %p294, %p295
    %p297 = scmp.ne.s32.totalorder %s289, %s291
    %p298 = scmp.eq.s32.totalorder %s24, 1
    %p299 = por %p297, %p298
    %p300 = scmp.ne.s32.totalorder %s291, %s292
    %p301 = scmp.eq.s32.totalorder %s24, 0
    %p302 = por %p300, %p301
    %p303 = scmp.ne.s32.totalorder %s291, %s292
    %p304 = scmp.eq.s32.totalorder %s25, 1
    %p305 = por %p303, %p304
    %p307 = scmp.ne.s32.totalorder %s292, %s306
    %p308 = scmp.eq.s32.totalorder %s25, 0
    %p309 = por %p307, %p308
    %s310 = ssub.s32 %s19, %s26
    %p311 = scmp.eq.s32.totalorder %s310, 0
    %s313 = sadd.s32 %s312, 1
    %s314 = scalar_select %p311, %s312, %s313
    %p317 = pneg %p311
    %p318 = scmp.eq.s32.totalorder %s19, 1
    %p319 = por %p317, %p318
    %p320 = scmp.ne.s32.totalorder %s312, %s315
    %p321 = scmp.eq.s32.totalorder %s19, 0
    %p322 = por %p320, %p321
    %p323 = scmp.ne.s32.totalorder %s312, %s315
    %p324 = scmp.eq.s32.totalorder %s24, 1
    %p325 = por %p323, %p324
    %p326 = scmp.ne.s32.totalorder %s315, %s316
    %p327 = scmp.eq.s32.totalorder %s24, 0
    %p328 = por %p326, %p327
    %p329 = scmp.ne.s32.totalorder %s315, %s316
    %p330 = scmp.eq.s32.totalorder %s25, 1
    %p331 = por %p329, %p330
    %p333 = scmp.ne.s32.totalorder %s316, %s332
    %p334 = scmp.eq.s32.totalorder %s25, 0
    %p335 = por %p333, %p334
    %p336 = scmp.le.s32.totalorder 1, %s19
    %p337 = scmp.lt.s32.totalorder %s19, 3
    %p338 = pnand %p336, %p337
    %p339 = pneg %p338
    // Predicated region
    $region9: #{run.1} parent=5 // pred_check
      _
    $region10: #{run.1} parent=5 // pred_check_branch
      %341 = sbr.rel (%p338) target = $region12
    $region11: #{run.1} parent=5 // pred_region
      %s342 = ssub.s32 %s19, 1
      // Predicated region
      $region13: #{run.1} parent=11 // pred_check
        %p343 = pneg %p92
      $region14: #{run.1} parent=11 // pred_check_branch
        %345 = sbr.rel (%p343) target = $region16
      $region15: #{run.1} parent=11 // pred_region
        _
      $region16: #{run.1} parent=11 // pred_fallthru
        _
      // Predicated region
      $region17: #{run.1} parent=11 // pred_check
        %p346 = pneg %p113
      $region18: #{run.1} parent=11 // pred_check_branch
        %348 = sbr.rel (%p346) target = $region20
      $region19: #{run.1} parent=11 // pred_region
        _
      $region20: #{run.1} parent=11 // pred_fallthru
        _
      // Predicated region
      $region21: #{run.1} parent=11 // pred_check
        %p349 = pneg %p134
      $region22: #{run.1} parent=11 // pred_check_branch
        %351 = sbr.rel (%p349) target = $region24
      $region23: #{run.1} parent=11 // pred_region
        _
      $region24: #{run.1} parent=11 // pred_fallthru
        _
      // Predicated region
      $region25: #{run.1} parent=11 // pred_check
        %p352 = pneg %p155
      $region26: #{run.1} parent=11 // pred_check_branch
        %354 = sbr.rel (%p352) target = $region28
      $region27: #{run.1} parent=11 // pred_region
        _
      $region28: #{run.1} parent=11 // pred_fallthru
        _
      // Predicated region
      $region29: #{run.1} parent=11 // pred_check
        %p355 = pneg %p176
      $region30: #{run.1} parent=11 // pred_check_branch
        %357 = sbr.rel (%p355) target = $region32
      $region31: #{run.1} parent=11 // pred_region
        _
      $region32: #{run.1} parent=11 // pred_fallthru
        _
      // Predicated region
      $region33: #{run.1} parent=11 // pred_check
        %p358 = pneg %p197
      $region34: #{run.1} parent=11 // pred_check_branch
        %360 = sbr.rel (%p358) target = $region36
      $region35: #{run.1} parent=11 // pred_region
        _
      $region36: #{run.1} parent=11 // pred_fallthru
        _
      // Predicated region
      $region37: #{run.1} parent=11 // pred_check
        %p361 = pneg %p218
      $region38: #{run.1} parent=11 // pred_check_branch
        %363 = sbr.rel (%p361) target = $region40
      $region39: #{run.1} parent=11 // pred_region
        _
      $region40: #{run.1} parent=11 // pred_fallthru
        _
      // Predicated region
      $region41: #{run.1} parent=11 // pred_check
        %p364 = pneg %p239
      $region42: #{run.1} parent=11 // pred_check_branch
        %366 = sbr.rel (%p364) target = $region44
      $region43: #{run.1} parent=11 // pred_region
        _
      $region44: #{run.1} parent=11 // pred_fallthru
        _
      // Predicated region
      $region45: #{run.1} parent=11 // pred_check
        %p367 = pneg %p260
      $region46: #{run.1} parent=11 // pred_check_branch
        %369 = sbr.rel (%p367) target = $region48
      $region47: #{run.1} parent=11 // pred_region
        _
      $region48: #{run.1} parent=11 // pred_fallthru
        _
      // Predicated region
      $region49: #{run.1} parent=11 // pred_check
        %p370 = pneg %p281
      $region50: #{run.1} parent=11 // pred_check_branch
        %372 = sbr.rel (%p370) target = $region52
      $region51: #{run.1} parent=11 // pred_region
        _
      $region52: #{run.1} parent=11 // pred_fallthru
        _
      // Predicated region
      $region53: #{run.1} parent=11 // pred_check
        %p373 = pneg %p302
      $region54: #{run.1} parent=11 // pred_check_branch
        %375 = sbr.rel (%p373) target = $region56
      $region55: #{run.1} parent=11 // pred_region
        _
      $region56: #{run.1} parent=11 // pred_fallthru
        _
    $region12: #{run.1} parent=5 // pred_fallthru
      _
    %p376 = scmp.lt.s32.totalorder %s19, 2
    // Predicated region
    $region57: #{run.1} parent=5 // pred_check
      %p377 = pneg %p376
    $region58: #{run.1} parent=5 // pred_check_branch
      %379 = sbr.rel (%p377) target = $region60
    $region59: #{run.1} parent=5 // pred_region
      // Predicated region
      $region61: #{run.1} parent=59 // pred_check
        %p380 = pneg %p39
      $region62: #{run.1} parent=59 // pred_check_branch
        %382 = sbr.rel (%p380) target = $region64
      $region63: #{run.1} parent=59 // pred_region
        %p383 = scmp.lt.s32.totalorder %s19, 1
        %s384 = scalar_select %p383, %s19, 1
        %s385 = smul.addr %s384, 4
        %s386 = scalar_lea.vmem %s0, %s385
      $region64: #{run.1} parent=59 // pred_fallthru
        _
      // Predicated region
      $region65: #{run.1} parent=59 // pred_check
        %p387 = pneg %p65
      $region66: #{run.1} parent=59 // pred_check_branch
        %389 = sbr.rel (%p387) target = $region68
      $region67: #{run.1} parent=59 // pred_region
        %p390 = scmp.lt.s32.totalorder %s19, 1
        %s391 = scalar_select %p390, %s19, 1
        %s392 = smul.addr %s391, 2
        %s393 = smul.addr %s392, 4
        %s394 = scalar_lea.vmem %s1, %s393
      $region68: #{run.1} parent=59 // pred_fallthru
        _
    $region60: #{run.1} parent=5 // pred_fallthru
      _
    %p395 = scmp.le.s32.totalorder 1, %s19
    %p396 = scmp.lt.s32.totalorder %s19, 3
    %p397 = pnand %p395, %p396
    %p398 = pneg %p397
    // Predicated region
    $region69: #{run.1} parent=5 // pred_check
      _
    $region70: #{run.1} parent=5 // pred_check_branch
      %400 = sbr.rel (%p397) target = $region72
    $region71: #{run.1} parent=5 // pred_region
      %s401 = ssub.s32 %s19, 1
      %p402 = scmp.lt.s32.totalorder %s24, 1
      %s403 = scalar_select %p402, %s24, 1
      %s404 = smul.addr %s403, 4
      %s405 = scalar_lea.vmem %s0, %s404
      %p406 = pneg %p45
      %p407 = pneg %p42
      %p408 = scmp.lt.s32.totalorder %s24, 1
      %s409 = scalar_select %p408, %s24, 1
      %s410 = smul.addr %s409, 2
      %s411 = smul.addr %s410, 4
      %s412 = scalar_lea.vmem %s1, %s411
      %p413 = pneg %p71
      %p414 = pneg %p68
      %p415 = pneg %p92
      %p416 = pneg %p89
      %p417 = pneg %p113
      %p418 = pneg %p110
      %p419 = pneg %p134
      %p420 = pneg %p131
      %p421 = pneg %p155
      %p422 = pneg %p152
      %p423 = pneg %p176
      %p424 = pneg %p173
      %p425 = pneg %p197
      %p426 = pneg %p194
      %p427 = pneg %p218
      %p428 = pneg %p215
      %p429 = pneg %p239
      %p430 = pneg %p236
      %p431 = pneg %p260
      %p432 = pneg %p257
      %p433 = pneg %p281
      %p434 = pneg %p278
      %p435 = pneg %p302
      %p436 = pneg %p299
      %p437 = pneg %p328
      %p438 = pneg %p325
      %p439 = scmp.lt.s32.totalorder %s24, 1
      %s440 = scalar_select %p439, %s24, 1
      %s441 = smul.addr %s440, 3
      %s442 = smul.addr %s441, 8
      %s443 = scalar_lea.vmem %s13, %s442
      %p444 = scmp.lt.s32.totalorder %s24, 1
      %s445 = scalar_select %p444, %s24, 1
      %s446 = smul.addr %s445, 4
      %s447 = scalar_lea.vmem %s0, %s446
      %p448 = scmp.lt.s32.totalorder %s24, 1
      %s449 = scalar_select %p448, %s24, 1
      %s450 = smul.addr %s449, 2
      %s451 = smul.addr %s450, 4
      %s452 = scalar_lea.vmem %s1, %s451
      %p453 = scmp.lt.s32.totalorder %s24, 1
      %s454 = scalar_select %p453, %s24, 1
      %s455 = smul.addr %s454, 3
      %s456 = smul.addr %s455, 8
      %s457 = scalar_lea.vmem %s13, %s456
      %v458 = vld [vmem:[%s447] sm:$0xf]
      %v459 = vld [vmem:[%s452] sm:$0xff]
      %v460 = vld [vmem:[%s2] sm:$0xf]
      %v461 = vld [vmem:[%s3] sm:$0xf]
      %463 = vset.pattern.permute.xlu0 0
      %464 = vperm.xlu0 %463, %v460
      %v465 = vpop.permute.xlu0 %464
      %v467 = vlaneseq
      %v468 = vshrl.u32 %v467, 7
      %v469 = vsub.s32 0, %v468
      %v470 = vrot.slane %v458, %v469
      %v471 = vmul.f32 %v465, %v470
      %472 = vset.pattern.permute.xlu0 1
      %473 = vperm.xlu0 %472, %v460
      %v474 = vpop.permute.xlu0 %473
      %v476 = vmul.f32 %v474, %v470
      %478 = vrot.lane.b32.xlu0 %v476, 127
      %v479 = vpop.permute.xlu0 %478
      %v481 = vadd.f32 %v471, %v479
      %482 = vset.pattern.permute.xlu0 2
      %483 = vperm.xlu0 %482, %v460
      %v484 = vpop.permute.xlu0 %483
      %v486 = vmul.f32 %v484, %v470
      %488 = vrot.lane.b32.xlu0 %v486, 126
      %v489 = vpop.permute.xlu0 %488
      %v491 = vadd.f32 %v481, %v489
      %492 = vset.pattern.permute.xlu0 3
      %493 = vperm.xlu0 %492, %v460
      %v494 = vpop.permute.xlu0 %493
      %v496 = vmul.f32 %v494, %v470
      %498 = vrot.lane.b32.xlu0 %v496, 120
      %v499 = vpop.permute.xlu0 %498
      %v501 = vadd.f32 %v491, %v499
      %502 = vset.pattern.permute.xlu0 4
      %503 = vperm.xlu0 %502, %v460
      %v504 = vpop.permute.xlu0 %503
      %v506 = vmul.f32 %v504, %v470
      %508 = vrot.lane.b32.xlu0 %v506, 119
      %v509 = vpop.permute.xlu0 %508
      %v511 = vadd.f32 %v501, %v509
      %512 = vset.pattern.permute.xlu0 5
      %513 = vperm.xlu0 %512, %v460
      %v514 = vpop.permute.xlu0 %513
      %v516 = vmul.f32 %v514, %v470
      %518 = vrot.lane.b32.xlu0 %v516, 118
      %v519 = vpop.permute.xlu0 %518
      %v521 = vadd.f32 %v511, %v519
      %522 = vset.pattern.permute.xlu0 6
      %523 = vperm.xlu0 %522, %v460
      %v524 = vpop.permute.xlu0 %523
      %v526 = vmul.f32 %v524, %v470
      %528 = vrot.lane.b32.xlu0 %v526, 112
      %v529 = vpop.permute.xlu0 %528
      %v531 = vadd.f32 %v521, %v529
      %532 = vset.pattern.permute.xlu0 7
      %533 = vperm.xlu0 %532, %v460
      %v534 = vpop.permute.xlu0 %533
      %v536 = vmul.f32 %v534, %v470
      %538 = vrot.lane.b32.xlu0 %v536, 111
      %v539 = vpop.permute.xlu0 %538
      %v541 = vadd.f32 %v531, %v539
      %542 = vset.pattern.permute.xlu0 8
      %543 = vperm.xlu0 %542, %v460
      %v544 = vpop.permute.xlu0 %543
      %v546 = vmul.f32 %v544, %v470
      %548 = vrot.lane.b32.xlu0 %v546, 110
      %v549 = vpop.permute.xlu0 %548
      %v551 = vadd.f32 %v541, %v549
      %552 = vset.pattern.permute.xlu0 9
      %553 = vperm.xlu0 %552, %v460
      %v554 = vpop.permute.xlu0 %553
      %v556 = vlaneseq
      %v557 = vshrl.u32 %v556, 7
      %v558 = vsub.s32 1, %v557
      %v559 = vrot.slane %v458, %v558
      %v560 = vmul.f32 %v554, %v559
      %v561 = vadd.f32 %v551, %v560
      %562 = vset.pattern.permute.xlu0 10
      %563 = vperm.xlu0 %562, %v460
      %v564 = vpop.permute.xlu0 %563
      %v566 = vmul.f32 %v564, %v559
      %568 = vrot.lane.b32.xlu0 %v566, 127
      %v569 = vpop.permute.xlu0 %568
      %v571 = vadd.f32 %v561, %v569
      %572 = vset.pattern.permute.xlu0 11
      %573 = vperm.xlu0 %572, %v460
      %v574 = vpop.permute.xlu0 %573
      %v576 = vmul.f32 %v574, %v559
      %578 = vrot.lane.b32.xlu0 %v576, 126
      %v579 = vpop.permute.xlu0 %578
      %v581 = vadd.f32 %v571, %v579
      %582 = vset.pattern.permute.xlu0 12
      %583 = vperm.xlu0 %582, %v460
      %v584 = vpop.permute.xlu0 %583
      %v586 = vmul.f32 %v584, %v559
      %588 = vrot.lane.b32.xlu0 %v586, 120
      %v589 = vpop.permute.xlu0 %588
      %v591 = vadd.f32 %v581, %v589
      %592 = vset.pattern.permute.xlu0 13
      %593 = vperm.xlu0 %592, %v460
      %v594 = vpop.permute.xlu0 %593
      %v596 = vmul.f32 %v594, %v559
      %598 = vrot.lane.b32.xlu0 %v596, 119
      %v599 = vpop.permute.xlu0 %598
      %v601 = vadd.f32 %v591, %v599
      %602 = vset.pattern.permute.xlu0 14
      %603 = vperm.xlu0 %602, %v460
      %v604 = vpop.permute.xlu0 %603
      %v606 = vmul.f32 %v604, %v559
      %608 = vrot.lane.b32.xlu0 %v606, 118
      %v609 = vpop.permute.xlu0 %608
      %v611 = vadd.f32 %v601, %v609
      %612 = vset.pattern.permute.xlu0 15
      %613 = vperm.xlu0 %612, %v460
      %v614 = vpop.permute.xlu0 %613
      %v616 = vmul.f32 %v614, %v559
      %618 = vrot.lane.b32.xlu0 %v616, 112
      %v619 = vpop.permute.xlu0 %618
      %v621 = vadd.f32 %v611, %v619
      %622 = vset.pattern.permute.xlu0 16
      %623 = vperm.xlu0 %622, %v460
      %v624 = vpop.permute.xlu0 %623
      %v626 = vmul.f32 %v624, %v559
      %628 = vrot.lane.b32.xlu0 %v626, 111
      %v629 = vpop.permute.xlu0 %628
      %v631 = vadd.f32 %v621, %v629
      %632 = vset.pattern.permute.xlu0 17
      %633 = vperm.xlu0 %632, %v460
      %v634 = vpop.permute.xlu0 %633
      %v636 = vmul.f32 %v634, %v559
      %638 = vrot.lane.b32.xlu0 %v636, 110
      %v639 = vpop.permute.xlu0 %638
      %v641 = vadd.f32 %v631, %v639
      %642 = vset.pattern.permute.xlu0 18
      %643 = vperm.xlu0 %642, %v460
      %v644 = vpop.permute.xlu0 %643
      %v646 = vlaneseq
      %v647 = vshrl.u32 %v646, 7
      %v648 = vsub.s32 2, %v647
      %v649 = vrot.slane %v458, %v648
      %v650 = vmul.f32 %v644, %v649
      %v651 = vadd.f32 %v641, %v650
      %652 = vset.pattern.permute.xlu0 19
      %653 = vperm.xlu0 %652, %v460
      %v654 = vpop.permute.xlu0 %653
      %v656 = vmul.f32 %v654, %v649
      %658 = vrot.lane.b32.xlu0 %v656, 127
      %v659 = vpop.permute.xlu0 %658
      %v661 = vadd.f32 %v651, %v659
      %662 = vset.pattern.permute.xlu0 20
      %663 = vperm.xlu0 %662, %v460
      %v664 = vpop.permute.xlu0 %663
      %v666 = vmul.f32 %v664, %v649
      %668 = vrot.lane.b32.xlu0 %v666, 126
      %v669 = vpop.permute.xlu0 %668
      %v671 = vadd.f32 %v661, %v669
      %672 = vset.pattern.permute.xlu0 21
      %673 = vperm.xlu0 %672, %v460
      %v674 = vpop.permute.xlu0 %673
      %v676 = vmul.f32 %v674, %v649
      %678 = vrot.lane.b32.xlu0 %v676, 120
      %v679 = vpop.permute.xlu0 %678
      %v681 = vadd.f32 %v671, %v679
      %682 = vset.pattern.permute.xlu0 22
      %683 = vperm.xlu0 %682, %v460
      %v684 = vpop.permute.xlu0 %683
      %v686 = vmul.f32 %v684, %v649
      %688 = vrot.lane.b32.xlu0 %v686, 119
      %v689 = vpop.permute.xlu0 %688
      %v691 = vadd.f32 %v681, %v689
      %692 = vset.pattern.permute.xlu0 23
      %693 = vperm.xlu0 %692, %v460
      %v694 = vpop.permute.xlu0 %693
      %v696 = vmul.f32 %v694, %v649
      %698 = vrot.lane.b32.xlu0 %v696, 118
      %v699 = vpop.permute.xlu0 %698
      %v701 = vadd.f32 %v691, %v699
      %702 = vset.pattern.permute.xlu0 24
      %703 = vperm.xlu0 %702, %v460
      %v704 = vpop.permute.xlu0 %703
      %v706 = vmul.f32 %v704, %v649
      %708 = vrot.lane.b32.xlu0 %v706, 112
      %v709 = vpop.permute.xlu0 %708
      %v711 = vadd.f32 %v701, %v709
      %712 = vset.pattern.permute.xlu0 25
      %713 = vperm.xlu0 %712, %v460
      %v714 = vpop.permute.xlu0 %713
      %v716 = vmul.f32 %v714, %v649
      %718 = vrot.lane.b32.xlu0 %v716, 111
      %v719 = vpop.permute.xlu0 %718
      %v721 = vadd.f32 %v711, %v719
      %722 = vset.pattern.permute.xlu0 26
      %723 = vperm.xlu0 %722, %v460
      %v724 = vpop.permute.xlu0 %723
      %v726 = vmul.f32 %v724, %v649
      %728 = vrot.lane.b32.xlu0 %v726, 110
      %v729 = vpop.permute.xlu0 %728
      %v731 = vadd.f32 %v721, %v729
      %732 = vset.pattern.permute.xlu0 27
      %733 = vperm.xlu0 %732, %v460
      %v734 = vpop.permute.xlu0 %733
      %v736 = vlaneseq
      %v737 = vshrl.u32 %v736, 7
      %v738 = vsub.s32 3, %v737
      %v739 = vrot.slane %v458, %v738
      %v740 = vmul.f32 %v734, %v739
      %v741 = vadd.f32 %v731, %v740
      %742 = vset.pattern.permute.xlu0 28
      %743 = vperm.xlu0 %742, %v460
      %v744 = vpop.permute.xlu0 %743
      %v746 = vmul.f32 %v744, %v739
      %748 = vrot.lane.b32.xlu0 %v746, 127
      %v749 = vpop.permute.xlu0 %748
      %v751 = vadd.f32 %v741, %v749
      %752 = vset.pattern.permute.xlu0 29
      %753 = vperm.xlu0 %752, %v460
      %v754 = vpop.permute.xlu0 %753
      %v756 = vmul.f32 %v754, %v739
      %758 = vrot.lane.b32.xlu0 %v756, 126
      %v759 = vpop.permute.xlu0 %758
      %v761 = vadd.f32 %v751, %v759
      %762 = vset.pattern.permute.xlu0 30
      %763 = vperm.xlu0 %762, %v460
      %v764 = vpop.permute.xlu0 %763
      %v766 = vmul.f32 %v764, %v739
      %768 = vrot.lane.b32.xlu0 %v766, 120
      %v769 = vpop.permute.xlu0 %768
      %v771 = vadd.f32 %v761, %v769
      %772 = vset.pattern.permute.xlu0 31
      %773 = vperm.xlu0 %772, %v460
      %v774 = vpop.permute.xlu0 %773
      %v776 = vmul.f32 %v774, %v739
      %778 = vrot.lane.b32.xlu0 %v776, 119
      %v779 = vpop.permute.xlu0 %778
      %v781 = vadd.f32 %v771, %v779
      %782 = vset.pattern.permute.xlu0 32
      %783 = vperm.xlu0 %782, %v460
      %v784 = vpop.permute.xlu0 %783
      %v786 = vmul.f32 %v784, %v739
      %788 = vrot.lane.b32.xlu0 %v786, 118
      %v789 = vpop.permute.xlu0 %788
      %v791 = vadd.f32 %v781, %v789
      %792 = vset.pattern.permute.xlu0 33
      %793 = vperm.xlu0 %792, %v460
      %v794 = vpop.permute.xlu0 %793
      %v796 = vmul.f32 %v794, %v739
      %798 = vrot.lane.b32.xlu0 %v796, 112
      %v799 = vpop.permute.xlu0 %798
      %v801 = vadd.f32 %v791, %v799
      %802 = vset.pattern.permute.xlu0 34
      %803 = vperm.xlu0 %802, %v460
      %v804 = vpop.permute.xlu0 %803
      %v806 = vmul.f32 %v804, %v739
      %808 = vrot.lane.b32.xlu0 %v806, 111
      %v809 = vpop.permute.xlu0 %808
      %v811 = vadd.f32 %v801, %v809
      %812 = vset.pattern.permute.xlu0 35
      %813 = vperm.xlu0 %812, %v460
      %v814 = vpop.permute.xlu0 %813
      %v816 = vmul.f32 %v814, %v739
      %818 = vrot.lane.b32.xlu0 %v816, 110
      %v819 = vpop.permute.xlu0 %818
      %v821 = vadd.f32 %v811, %v819
      %823 = vset.pattern.permute.xlu0 0
      %824 = vperm.xlu0 %823, %v461
      %v825 = vpop.permute.xlu0 %824
      %v827 = vadd.f32 %v821, %v825
      %v828 = vmax.f32 %v827, 0.0
      %v829 = vld [vmem:[%s4] sm:$0xf]
      %v830 = vld [vmem:[%s5] sm:$0xf]
      %832 = vset.pattern.permute.xlu0 0
      %833 = vperm.xlu0 %832, %v829
      %v834 = vpop.permute.xlu0 %833
      %v837 = vlaneseq
      %v838 = vshrl.u32 %v837, 7
      %v839 = vsub.s32 0, %v838
      %v840 = vrot.slane %v459, %v839
      %v841 = vlaneseq
      %v842 = vshrl.u32 %v841, 7
      %v843 = vsub.s32 4, %v842
      %v844 = vrot.slane %v459, %v843
      %v847 = vlaneseq
      %v848 = vshrl.u32 %v847, 7
      %v849 = vsub.s32 0, %v848
      %v850 = vrot.slane %v840, %v849
      %v851 = vlaneseq
      %v852 = vshrl.u32 %v851, 7
      %v853 = vsub.s32 0, %v852
      %v854 = vrot.slane %v844, %v853
      %v855 = vmul.f32 %v834, %v850
      %v856 = vmul.f32 %v834, %v854
      %857 = vset.pattern.permute.xlu0 1
      %858 = vperm.xlu0 %857, %v829
      %v859 = vpop.permute.xlu0 %858
      %v861 = vmul.f32 %v859, %v850
      %v862 = vmul.f32 %v859, %v854
      %865 = vrot.lane.b32.xlu0 %v861, 127
      %v866 = vpop.permute.xlu0 %865
      %867 = vrot.lane.b32.xlu0 %v862, 127
      %v868 = vpop.permute.xlu0 %867
      %vm869 = vcmask 1039360
      %v870 = vsel %vm869, %v866, %v868
      %v873 = vadd.f32 %v855, %v870
      %v874 = vadd.f32 %v856, %v868
      %875 = vset.pattern.permute.xlu0 2
      %876 = vperm.xlu0 %875, %v829
      %v877 = vpop.permute.xlu0 %876
      %v879 = vmul.f32 %v877, %v850
      %v880 = vmul.f32 %v877, %v854
      %883 = vrot.lane.b32.xlu0 %v879, 126
      %v884 = vpop.permute.xlu0 %883
      %885 = vrot.lane.b32.xlu0 %v880, 126
      %v886 = vpop.permute.xlu0 %885
      %vm887 = vcmask 1031168
      %v888 = vsel %vm887, %v884, %v886
      %v891 = vadd.f32 %v873, %v888
      %v892 = vadd.f32 %v874, %v886
      %893 = vset.pattern.permute.xlu0 3
      %894 = vperm.xlu0 %893, %v829
      %v895 = vpop.permute.xlu0 %894
      %v897 = vmul.f32 %v895, %v850
      %v898 = vmul.f32 %v895, %v854
      %901 = vrot.lane.b32.xlu0 %v897, 112
      %v902 = vpop.permute.xlu0 %901
      %903 = vrot.lane.b32.xlu0 %v898, 112
      %v904 = vpop.permute.xlu0 %903
      %vm905 = vcmask 916480
      %v906 = vsel %vm905, %v902, %v904
      %v909 = vadd.f32 %v891, %v906
      %v910 = vadd.f32 %v892, %v904
      %911 = vset.pattern.permute.xlu0 4
      %912 = vperm.xlu0 %911, %v829
      %v913 = vpop.permute.xlu0 %912
      %v915 = vmul.f32 %v913, %v850
      %v916 = vmul.f32 %v913, %v854
      %919 = vrot.lane.b32.xlu0 %v915, 111
      %v920 = vpop.permute.xlu0 %919
      %921 = vrot.lane.b32.xlu0 %v916, 111
      %v922 = vpop.permute.xlu0 %921
      %vm923 = vcmask 908288
      %v924 = vsel %vm923, %v920, %v922
      %v927 = vadd.f32 %v909, %v924
      %v928 = vadd.f32 %v910, %v922
      %929 = vset.pattern.permute.xlu0 5
      %930 = vperm.xlu0 %929, %v829
      %v931 = vpop.permute.xlu0 %930
      %v933 = vmul.f32 %v931, %v850
      %v934 = vmul.f32 %v931, %v854
      %937 = vrot.lane.b32.xlu0 %v933, 110
      %v938 = vpop.permute.xlu0 %937
      %939 = vrot.lane.b32.xlu0 %v934, 110
      %v940 = vpop.permute.xlu0 %939
      %vm941 = vcmask 900096
      %v942 = vsel %vm941, %v938, %v940
      %v945 = vadd.f32 %v927, %v942
      %v946 = vadd.f32 %v928, %v940
      %947 = vset.pattern.permute.xlu0 6
      %948 = vperm.xlu0 %947, %v829
      %v949 = vpop.permute.xlu0 %948
      %v951 = vmul.f32 %v949, %v850
      %v952 = vmul.f32 %v949, %v854
      %955 = vrot.lane.b32.xlu0 %v951, 96
      %v956 = vpop.permute.xlu0 %955
      %957 = vrot.lane.b32.xlu0 %v952, 96
      %v958 = vpop.permute.xlu0 %957
      %vm959 = vcmask 785408
      %v960 = vsel %vm959, %v956, %v958
      %v963 = vadd.f32 %v945, %v960
      %v964 = vadd.f32 %v946, %v958
      %965 = vset.pattern.permute.xlu0 7
      %966 = vperm.xlu0 %965, %v829
      %v967 = vpop.permute.xlu0 %966
      %v969 = vmul.f32 %v967, %v850
      %v970 = vmul.f32 %v967, %v854
      %973 = vrot.lane.b32.xlu0 %v969, 95
      %v974 = vpop.permute.xlu0 %973
      %975 = vrot.lane.b32.xlu0 %v970, 95
      %v976 = vpop.permute.xlu0 %975
      %vm977 = vcmask 777216
      %v978 = vsel %vm977, %v974, %v976
      %v981 = vadd.f32 %v963, %v978
      %v982 = vadd.f32 %v964, %v976
      %983 = vset.pattern.permute.xlu0 8
      %984 = vperm.xlu0 %983, %v829
      %v985 = vpop.permute.xlu0 %984
      %v987 = vmul.f32 %v985, %v850
      %v988 = vmul.f32 %v985, %v854
      %991 = vrot.lane.b32.xlu0 %v987, 94
      %v992 = vpop.permute.xlu0 %991
      %993 = vrot.lane.b32.xlu0 %v988, 94
      %v994 = vpop.permute.xlu0 %993
      %vm995 = vcmask 769024
      %v996 = vsel %vm995, %v992, %v994
      %v999 = vadd.f32 %v981, %v996
      %v1000 = vadd.f32 %v982, %v994
      %1001 = vset.pattern.permute.xlu0 9
      %1002 = vperm.xlu0 %1001, %v829
      %v1003 = vpop.permute.xlu0 %1002
      %v1005 = vlaneseq
      %v1006 = vshrl.u32 %v1005, 7
      %v1007 = vsub.s32 1, %v1006
      %v1008 = vrot.slane %v459, %v1007
      %v1009 = vlaneseq
      %v1010 = vshrl.u32 %v1009, 7
      %v1011 = vsub.s32 5, %v1010
      %v1012 = vrot.slane %v459, %v1011
      %v1015 = vlaneseq
      %v1016 = vshrl.u32 %v1015, 7
      %v1017 = vsub.s32 1, %v1016
      %v1018 = vrot.slane %v1008, %v1017
      %v1019 = vlaneseq
      %v1020 = vshrl.u32 %v1019, 7
      %v1021 = vsub.s32 1, %v1020
      %v1022 = vrot.slane %v1012, %v1021
      %v1023 = vmul.f32 %v1003, %v1018
      %v1024 = vmul.f32 %v1003, %v1022
      %v1025 = vadd.f32 %v999, %v1023
      %v1026 = vadd.f32 %v1000, %v1024
      %1027 = vset.pattern.permute.xlu0 10
      %1028 = vperm.xlu0 %1027, %v829
      %v1029 = vpop.permute.xlu0 %1028
      %v1031 = vmul.f32 %v1029, %v1018
      %v1032 = vmul.f32 %v1029, %v1022
      %1035 = vrot.lane.b32.xlu0 %v1031, 127
      %v1036 = vpop.permute.xlu0 %1035
      %1037 = vrot.lane.b32.xlu0 %v1032, 127
      %v1038 = vpop.permute.xlu0 %1037
      %v1039 = vsel %vm869, %v1036, %v1038
      %v1042 = vadd.f32 %v1025, %v1039
      %v1043 = vadd.f32 %v1026, %v1038
      %1044 = vset.pattern.permute.xlu0 11
      %1045 = vperm.xlu0 %1044, %v829
      %v1046 = vpop.permute.xlu0 %1045
      %v1048 = vmul.f32 %v1046, %v1018
      %v1049 = vmul.f32 %v1046, %v1022
      %1052 = vrot.lane.b32.xlu0 %v1048, 126
      %v1053 = vpop.permute.xlu0 %1052
      %1054 = vrot.lane.b32.xlu0 %v1049, 126
      %v1055 = vpop.permute.xlu0 %1054
      %v1056 = vsel %vm887, %v1053, %v1055
      %v1059 = vadd.f32 %v1042, %v1056
      %v1060 = vadd.f32 %v1043, %v1055
      %1061 = vset.pattern.permute.xlu0 12
      %1062 = vperm.xlu0 %1061, %v829
      %v1063 = vpop.permute.xlu0 %1062
      %v1065 = vmul.f32 %v1063, %v1018
      %v1066 = vmul.f32 %v1063, %v1022
      %1069 = vrot.lane.b32.xlu0 %v1065, 112
      %v1070 = vpop.permute.xlu0 %1069
      %1071 = vrot.lane.b32.xlu0 %v1066, 112
      %v1072 = vpop.permute.xlu0 %1071
      %v1073 = vsel %vm905, %v1070, %v1072
      %v1076 = vadd.f32 %v1059, %v1073
      %v1077 = vadd.f32 %v1060, %v1072
      %1078 = vset.pattern.permute.xlu0 13
      %1079 = vperm.xlu0 %1078, %v829
      %v1080 = vpop.permute.xlu0 %1079
      %v1082 = vmul.f32 %v1080, %v1018
      %v1083 = vmul.f32 %v1080, %v1022
      %1086 = vrot.lane.b32.xlu0 %v1082, 111
      %v1087 = vpop.permute.xlu0 %1086
      %1088 = vrot.lane.b32.xlu0 %v1083, 111
      %v1089 = vpop.permute.xlu0 %1088
      %v1090 = vsel %vm923, %v1087, %v1089
      %v1093 = vadd.f32 %v1076, %v1090
      %v1094 = vadd.f32 %v1077, %v1089
      %1095 = vset.pattern.permute.xlu0 14
      %1096 = vperm.xlu0 %1095, %v829
      %v1097 = vpop.permute.xlu0 %1096
      %v1099 = vmul.f32 %v1097, %v1018
      %v1100 = vmul.f32 %v1097, %v1022
      %1103 = vrot.lane.b32.xlu0 %v1099, 110
      %v1104 = vpop.permute.xlu0 %1103
      %1105 = vrot.lane.b32.xlu0 %v1100, 110
      %v1106 = vpop.permute.xlu0 %1105
      %v1107 = vsel %vm941, %v1104, %v1106
      %v1110 = vadd.f32 %v1093, %v1107
      %v1111 = vadd.f32 %v1094, %v1106
      %1112 = vset.pattern.permute.xlu0 15
      %1113 = vperm.xlu0 %1112, %v829
      %v1114 = vpop.permute.xlu0 %1113
      %v1116 = vmul.f32 %v1114, %v1018
      %v1117 = vmul.f32 %v1114, %v1022
      %1120 = vrot.lane.b32.xlu0 %v1116, 96
      %v1121 = vpop.permute.xlu0 %1120
      %1122 = vrot.lane.b32.xlu0 %v1117, 96
      %v1123 = vpop.permute.xlu0 %1122
      %v1124 = vsel %vm959, %v1121, %v1123
      %v1127 = vadd.f32 %v1110, %v1124
      %v1128 = vadd.f32 %v1111, %v1123
      %1129 = vset.pattern.permute.xlu0 16
      %1130 = vperm.xlu0 %1129, %v829
      %v1131 = vpop.permute.xlu0 %1130
      %v1133 = vmul.f32 %v1131, %v1018
      %v1134 = vmul.f32 %v1131, %v1022
      %1137 = vrot.lane.b32.xlu0 %v1133, 95
      %v1138 = vpop.permute.xlu0 %1137
      %1139 = vrot.lane.b32.xlu0 %v1134, 95
      %v1140 = vpop.permute.xlu0 %1139
      %v1141 = vsel %vm977, %v1138, %v1140
      %v1144 = vadd.f32 %v1127, %v1141
      %v1145 = vadd.f32 %v1128, %v1140
      %1146 = vset.pattern.permute.xlu0 17
      %1147 = vperm.xlu0 %1146, %v829
      %v1148 = vpop.permute.xlu0 %1147
      %v1150 = vmul.f32 %v1148, %v1018
      %v1151 = vmul.f32 %v1148, %v1022
      %1154 = vrot.lane.b32.xlu0 %v1150, 94
      %v1155 = vpop.permute.xlu0 %1154
      %1156 = vrot.lane.b32.xlu0 %v1151, 94
      %v1157 = vpop.permute.xlu0 %1156
      %v1158 = vsel %vm995, %v1155, %v1157
      %v1161 = vadd.f32 %v1144, %v1158
      %v1162 = vadd.f32 %v1145, %v1157
      %1163 = vset.pattern.permute.xlu0 18
      %1164 = vperm.xlu0 %1163, %v829
      %v1165 = vpop.permute.xlu0 %1164
      %v1167 = vlaneseq
      %v1168 = vshrl.u32 %v1167, 7
      %v1169 = vsub.s32 2, %v1168
      %v1170 = vrot.slane %v459, %v1169
      %v1171 = vlaneseq
      %v1172 = vshrl.u32 %v1171, 7
      %v1173 = vsub.s32 6, %v1172
      %v1174 = vrot.slane %v459, %v1173
      %v1177 = vlaneseq
      %v1178 = vshrl.u32 %v1177, 7
      %v1179 = vsub.s32 2, %v1178
      %v1180 = vrot.slane %v1170, %v1179
      %v1181 = vlaneseq
      %v1182 = vshrl.u32 %v1181, 7
      %v1183 = vsub.s32 2, %v1182
      %v1184 = vrot.slane %v1174, %v1183
      %v1185 = vmul.f32 %v1165, %v1180
      %v1186 = vmul.f32 %v1165, %v1184
      %v1187 = vadd.f32 %v1161, %v1185
      %v1188 = vadd.f32 %v1162, %v1186
      %1189 = vset.pattern.permute.xlu0 19
      %1190 = vperm.xlu0 %1189, %v829
      %v1191 = vpop.permute.xlu0 %1190
      %v1193 = vmul.f32 %v1191, %v1180
      %v1194 = vmul.f32 %v1191, %v1184
      %1197 = vrot.lane.b32.xlu0 %v1193, 127
      %v1198 = vpop.permute.xlu0 %1197
      %1199 = vrot.lane.b32.xlu0 %v1194, 127
      %v1200 = vpop.permute.xlu0 %1199
      %v1201 = vsel %vm869, %v1198, %v1200
      %v1204 = vadd.f32 %v1187, %v1201
      %v1205 = vadd.f32 %v1188, %v1200
      %1206 = vset.pattern.permute.xlu0 20
      %1207 = vperm.xlu0 %1206, %v829
      %v1208 = vpop.permute.xlu0 %1207
      %v1210 = vmul.f32 %v1208, %v1180
      %v1211 = vmul.f32 %v1208, %v1184
      %1214 = vrot.lane.b32.xlu0 %v1210, 126
      %v1215 = vpop.permute.xlu0 %1214
      %1216 = vrot.lane.b32.xlu0 %v1211, 126
      %v1217 = vpop.permute.xlu0 %1216
      %v1218 = vsel %vm887, %v1215, %v1217
      %v1221 = vadd.f32 %v1204, %v1218
      %v1222 = vadd.f32 %v1205, %v1217
      %1223 = vset.pattern.permute.xlu0 21
      %1224 = vperm.xlu0 %1223, %v829
      %v1225 = vpop.permute.xlu0 %1224
      %v1227 = vmul.f32 %v1225, %v1180
      %v1228 = vmul.f32 %v1225, %v1184
      %1231 = vrot.lane.b32.xlu0 %v1227, 112
      %v1232 = vpop.permute.xlu0 %1231
      %1233 = vrot.lane.b32.xlu0 %v1228, 112
      %v1234 = vpop.permute.xlu0 %1233
      %v1235 = vsel %vm905, %v1232, %v1234
      %v1238 = vadd.f32 %v1221, %v1235
      %v1239 = vadd.f32 %v1222, %v1234
      %1240 = vset.pattern.permute.xlu0 22
      %1241 = vperm.xlu0 %1240, %v829
      %v1242 = vpop.permute.xlu0 %1241
      %v1244 = vmul.f32 %v1242, %v1180
      %v1245 = vmul.f32 %v1242, %v1184
      %1248 = vrot.lane.b32.xlu0 %v1244, 111
      %v1249 = vpop.permute.xlu0 %1248
      %1250 = vrot.lane.b32.xlu0 %v1245, 111
      %v1251 = vpop.permute.xlu0 %1250
      %v1252 = vsel %vm923, %v1249, %v1251
      %v1255 = vadd.f32 %v1238, %v1252
      %v1256 = vadd.f32 %v1239, %v1251
      %1257 = vset.pattern.permute.xlu0 23
      %1258 = vperm.xlu0 %1257, %v829
      %v1259 = vpop.permute.xlu0 %1258
      %v1261 = vmul.f32 %v1259, %v1180
      %v1262 = vmul.f32 %v1259, %v1184
      %1265 = vrot.lane.b32.xlu0 %v1261, 110
      %v1266 = vpop.permute.xlu0 %1265
      %1267 = vrot.lane.b32.xlu0 %v1262, 110
      %v1268 = vpop.permute.xlu0 %1267
      %v1269 = vsel %vm941, %v1266, %v1268
      %v1272 = vadd.f32 %v1255, %v1269
      %v1273 = vadd.f32 %v1256, %v1268
      %1274 = vset.pattern.permute.xlu0 24
      %1275 = vperm.xlu0 %1274, %v829
      %v1276 = vpop.permute.xlu0 %1275
      %v1278 = vmul.f32 %v1276, %v1180
      %v1279 = vmul.f32 %v1276, %v1184
      %1282 = vrot.lane.b32.xlu0 %v1278, 96
      %v1283 = vpop.permute.xlu0 %1282
      %1284 = vrot.lane.b32.xlu0 %v1279, 96
      %v1285 = vpop.permute.xlu0 %1284
      %v1286 = vsel %vm959, %v1283, %v1285
      %v1289 = vadd.f32 %v1272, %v1286
      %v1290 = vadd.f32 %v1273, %v1285
      %1291 = vset.pattern.permute.xlu0 25
      %1292 = vperm.xlu0 %1291, %v829
      %v1293 = vpop.permute.xlu0 %1292
      %v1295 = vmul.f32 %v1293, %v1180
      %v1296 = vmul.f32 %v1293, %v1184
      %1299 = vrot.lane.b32.xlu0 %v1295, 95
      %v1300 = vpop.permute.xlu0 %1299
      %1301 = vrot.lane.b32.xlu0 %v1296, 95
      %v1302 = vpop.permute.xlu0 %1301
      %v1303 = vsel %vm977, %v1300, %v1302
      %v1306 = vadd.f32 %v1289, %v1303
      %v1307 = vadd.f32 %v1290, %v1302
      %1308 = vset.pattern.permute.xlu0 26
      %1309 = vperm.xlu0 %1308, %v829
      %v1310 = vpop.permute.xlu0 %1309
      %v1312 = vmul.f32 %v1310, %v1180
      %v1313 = vmul.f32 %v1310, %v1184
      %1316 = vrot.lane.b32.xlu0 %v1312, 94
      %v1317 = vpop.permute.xlu0 %1316
      %1318 = vrot.lane.b32.xlu0 %v1313, 94
      %v1319 = vpop.permute.xlu0 %1318
      %v1320 = vsel %vm995, %v1317, %v1319
      %v1323 = vadd.f32 %v1306, %v1320
      %v1324 = vadd.f32 %v1307, %v1319
      %1325 = vset.pattern.permute.xlu0 27
      %1326 = vperm.xlu0 %1325, %v829
      %v1327 = vpop.permute.xlu0 %1326
      %v1329 = vlaneseq
      %v1330 = vshrl.u32 %v1329, 7
      %v1331 = vsub.s32 3, %v1330
      %v1332 = vrot.slane %v459, %v1331
      %v1333 = vlaneseq
      %v1334 = vshrl.u32 %v1333, 7
      %v1335 = vsub.s32 7, %v1334
      %v1336 = vrot.slane %v459, %v1335
      %v1339 = vlaneseq
      %v1340 = vshrl.u32 %v1339, 7
      %v1341 = vsub.s32 3, %v1340
      %v1342 = vrot.slane %v1332, %v1341
      %v1343 = vlaneseq
      %v1344 = vshrl.u32 %v1343, 7
      %v1345 = vsub.s32 3, %v1344
      %v1346 = vrot.slane %v1336, %v1345
      %v1347 = vmul.f32 %v1327, %v1342
      %v1348 = vmul.f32 %v1327, %v1346
      %v1349 = vadd.f32 %v1323, %v1347
      %v1350 = vadd.f32 %v1324, %v1348
      %1351 = vset.pattern.permute.xlu0 28
      %1352 = vperm.xlu0 %1351, %v829
      %v1353 = vpop.permute.xlu0 %1352
      %v1355 = vmul.f32 %v1353, %v1342
      %v1356 = vmul.f32 %v1353, %v1346
      %1359 = vrot.lane.b32.xlu0 %v1355, 127
      %v1360 = vpop.permute.xlu0 %1359
      %1361 = vrot.lane.b32.xlu0 %v1356, 127
      %v1362 = vpop.permute.xlu0 %1361
      %v1363 = vsel %vm869, %v1360, %v1362
      %v1366 = vadd.f32 %v1349, %v1363
      %v1367 = vadd.f32 %v1350, %v1362
      %1368 = vset.pattern.permute.xlu0 29
      %1369 = vperm.xlu0 %1368, %v829
      %v1370 = vpop.permute.xlu0 %1369
      %v1372 = vmul.f32 %v1370, %v1342
      %v1373 = vmul.f32 %v1370, %v1346
      %1376 = vrot.lane.b32.xlu0 %v1372, 126
      %v1377 = vpop.permute.xlu0 %1376
      %1378 = vrot.lane.b32.xlu0 %v1373, 126
      %v1379 = vpop.permute.xlu0 %1378
      %v1380 = vsel %vm887, %v1377, %v1379
      %v1383 = vadd.f32 %v1366, %v1380
      %v1384 = vadd.f32 %v1367, %v1379
      %1385 = vset.pattern.permute.xlu0 30
      %1386 = vperm.xlu0 %1385, %v829
      %v1387 = vpop.permute.xlu0 %1386
      %v1389 = vmul.f32 %v1387, %v1342
      %v1390 = vmul.f32 %v1387, %v1346
      %1393 = vrot.lane.b32.xlu0 %v1389, 112
      %v1394 = vpop.permute.xlu0 %1393
      %1395 = vrot.lane.b32.xlu0 %v1390, 112
      %v1396 = vpop.permute.xlu0 %1395
      %v1397 = vsel %vm905, %v1394, %v1396
      %v1400 = vadd.f32 %v1383, %v1397
      %v1401 = vadd.f32 %v1384, %v1396
      %1402 = vset.pattern.permute.xlu0 31
      %1403 = vperm.xlu0 %1402, %v829
      %v1404 = vpop.permute.xlu0 %1403
      %v1406 = vmul.f32 %v1404, %v1342
      %v1407 = vmul.f32 %v1404, %v1346
      %1410 = vrot.lane.b32.xlu0 %v1406, 111
      %v1411 = vpop.permute.xlu0 %1410
      %1412 = vrot.lane.b32.xlu0 %v1407, 111
      %v1413 = vpop.permute.xlu0 %1412
      %v1414 = vsel %vm923, %v1411, %v1413
      %v1417 = vadd.f32 %v1400, %v1414
      %v1418 = vadd.f32 %v1401, %v1413
      %1419 = vset.pattern.permute.xlu0 32
      %1420 = vperm.xlu0 %1419, %v829
      %v1421 = vpop.permute.xlu0 %1420
      %v1423 = vmul.f32 %v1421, %v1342
      %v1424 = vmul.f32 %v1421, %v1346
      %1427 = vrot.lane.b32.xlu0 %v1423, 110
      %v1428 = vpop.permute.xlu0 %1427
      %1429 = vrot.lane.b32.xlu0 %v1424, 110
      %v1430 = vpop.permute.xlu0 %1429
      %v1431 = vsel %vm941, %v1428, %v1430
      %v1434 = vadd.f32 %v1417, %v1431
      %v1435 = vadd.f32 %v1418, %v1430
      %1436 = vset.pattern.permute.xlu0 33
      %1437 = vperm.xlu0 %1436, %v829
      %v1438 = vpop.permute.xlu0 %1437
      %v1440 = vmul.f32 %v1438, %v1342
      %v1441 = vmul.f32 %v1438, %v1346
      %1444 = vrot.lane.b32.xlu0 %v1440, 96
      %v1445 = vpop.permute.xlu0 %1444
      %1446 = vrot.lane.b32.xlu0 %v1441, 96
      %v1447 = vpop.permute.xlu0 %1446
      %v1448 = vsel %vm959, %v1445, %v1447
      %v1451 = vadd.f32 %v1434, %v1448
      %v1452 = vadd.f32 %v1435, %v1447
      %1453 = vset.pattern.permute.xlu0 34
      %1454 = vperm.xlu0 %1453, %v829
      %v1455 = vpop.permute.xlu0 %1454
      %v1457 = vmul.f32 %v1455, %v1342
      %v1458 = vmul.f32 %v1455, %v1346
      %1461 = vrot.lane.b32.xlu0 %v1457, 95
      %v1462 = vpop.permute.xlu0 %1461
      %1463 = vrot.lane.b32.xlu0 %v1458, 95
      %v1464 = vpop.permute.xlu0 %1463
      %v1465 = vsel %vm977, %v1462, %v1464
      %v1468 = vadd.f32 %v1451, %v1465
      %v1469 = vadd.f32 %v1452, %v1464
      %1470 = vset.pattern.permute.xlu0 35
      %1471 = vperm.xlu0 %1470, %v829
      %v1472 = vpop.permute.xlu0 %1471
      %v1474 = vmul.f32 %v1472, %v1342
      %v1475 = vmul.f32 %v1472, %v1346
      %1478 = vrot.lane.b32.xlu0 %v1474, 94
      %v1479 = vpop.permute.xlu0 %1478
      %1480 = vrot.lane.b32.xlu0 %v1475, 94
      %v1481 = vpop.permute.xlu0 %1480
      %v1482 = vsel %vm995, %v1479, %v1481
      %v1485 = vadd.f32 %v1468, %v1482
      %v1486 = vadd.f32 %v1469, %v1481
      %1488 = vset.pattern.permute.xlu0 0
      %1489 = vperm.xlu0 %1488, %v830
      %v1490 = vpop.permute.xlu0 %1489
      %v1492 = vadd.f32 %v1485, %v1490
      %v1493 = vadd.f32 %v1486, %v1490
      %v1494 = vmax.f32 %v1492, 0.0
      %v1495 = vmax.f32 %v1493, 0.0
      %1497 = vset.pattern.permute.xlu0 0
      %1498 = vperm.xlu0 %1497, %v828
      %v1499 = vpop.permute.xlu0 %1498
      %v1501 = vmul.f32 %v1499, %v1494
      %v1502 = vmul.f32 %v1499, %v1495
      %1503 = vset.pattern.permute.xlu0 1
      %1504 = vperm.xlu0 %1503, %v828
      %v1505 = vpop.permute.xlu0 %1504
      %v1507 = vmul.f32 %v1505, %v1494
      %v1508 = vmul.f32 %v1505, %v1495
      %1511 = vrot.lane.b32.xlu0 %v1507, 127
      %v1512 = vpop.permute.xlu0 %1511
      %1513 = vrot.lane.b32.xlu0 %v1508, 127
      %v1514 = vpop.permute.xlu0 %1513
      %v1515 = vsel %vm869, %v1512, %v1514
      %v1518 = vadd.f32 %v1501, %v1515
      %v1519 = vadd.f32 %v1502, %v1514
      %1520 = vset.pattern.permute.xlu0 2
      %1521 = vperm.xlu0 %1520, %v828
      %v1522 = vpop.permute.xlu0 %1521
      %v1524 = vmul.f32 %v1522, %v1494
      %v1525 = vmul.f32 %v1522, %v1495
      %1528 = vrot.lane.b32.xlu0 %v1524, 126
      %v1529 = vpop.permute.xlu0 %1528
      %1530 = vrot.lane.b32.xlu0 %v1525, 126
      %v1531 = vpop.permute.xlu0 %1530
      %v1532 = vsel %vm887, %v1529, %v1531
      %v1535 = vadd.f32 %v1518, %v1532
      %v1536 = vadd.f32 %v1519, %v1531
      %1537 = vset.pattern.permute.xlu0 3
      %1538 = vperm.xlu0 %1537, %v828
      %v1539 = vpop.permute.xlu0 %1538
      %v1541 = vmul.f32 %v1539, %v1494
      %v1542 = vmul.f32 %v1539, %v1495
      %1545 = vrot.lane.b32.xlu0 %v1541, 125
      %v1546 = vpop.permute.xlu0 %1545
      %1547 = vrot.lane.b32.xlu0 %v1542, 125
      %v1548 = vpop.permute.xlu0 %1547
      %vm1549 = vcmask 1022976
      %v1550 = vsel %vm1549, %v1546, %v1548
      %v1553 = vadd.f32 %v1535, %v1550
      %v1554 = vadd.f32 %v1536, %v1548
      %1555 = vset.pattern.permute.xlu0 4
      %1556 = vperm.xlu0 %1555, %v828
      %v1557 = vpop.permute.xlu0 %1556
      %v1559 = vmul.f32 %v1557, %v1494
      %v1560 = vmul.f32 %v1557, %v1495
      %1563 = vrot.lane.b32.xlu0 %v1559, 124
      %v1564 = vpop.permute.xlu0 %1563
      %1565 = vrot.lane.b32.xlu0 %v1560, 124
      %v1566 = vpop.permute.xlu0 %1565
      %vm1567 = vcmask 1014784
      %v1568 = vsel %vm1567, %v1564, %v1566
      %v1571 = vadd.f32 %v1553, %v1568
      %v1572 = vadd.f32 %v1554, %v1566
      %1573 = vset.pattern.permute.xlu0 5
      %1574 = vperm.xlu0 %1573, %v828
      %v1575 = vpop.permute.xlu0 %1574
      %v1577 = vmul.f32 %v1575, %v1494
      %v1578 = vmul.f32 %v1575, %v1495
      %1581 = vrot.lane.b32.xlu0 %v1577, 123
      %v1582 = vpop.permute.xlu0 %1581
      %1583 = vrot.lane.b32.xlu0 %v1578, 123
      %v1584 = vpop.permute.xlu0 %1583
      %vm1585 = vcmask 1006592
      %v1586 = vsel %vm1585, %v1582, %v1584
      %v1589 = vadd.f32 %v1571, %v1586
      %v1590 = vadd.f32 %v1572, %v1584
      %1591 = vset.pattern.permute.xlu0 8
      %1592 = vperm.xlu0 %1591, %v828
      %v1593 = vpop.permute.xlu0 %1592
      %v1595 = vmul.f32 %v1593, %v1494
      %v1596 = vmul.f32 %v1593, %v1495
      %1599 = vrot.lane.b32.xlu0 %v1595, 112
      %v1600 = vpop.permute.xlu0 %1599
      %1601 = vrot.lane.b32.xlu0 %v1596, 112
      %v1602 = vpop.permute.xlu0 %1601
      %v1603 = vsel %vm905, %v1600, %v1602
      %v1606 = vadd.f32 %v1589, %v1603
      %v1607 = vadd.f32 %v1590, %v1602
      %1608 = vset.pattern.permute.xlu0 9
      %1609 = vperm.xlu0 %1608, %v828
      %v1610 = vpop.permute.xlu0 %1609
      %v1612 = vmul.f32 %v1610, %v1494
      %v1613 = vmul.f32 %v1610, %v1495
      %1616 = vrot.lane.b32.xlu0 %v1612, 111
      %v1617 = vpop.permute.xlu0 %1616
      %1618 = vrot.lane.b32.xlu0 %v1613, 111
      %v1619 = vpop.permute.xlu0 %1618
      %v1620 = vsel %vm923, %v1617, %v1619
      %v1623 = vadd.f32 %v1606, %v1620
      %v1624 = vadd.f32 %v1607, %v1619
      %1625 = vset.pattern.permute.xlu0 10
      %1626 = vperm.xlu0 %1625, %v828
      %v1627 = vpop.permute.xlu0 %1626
      %v1629 = vmul.f32 %v1627, %v1494
      %v1630 = vmul.f32 %v1627, %v1495
      %1633 = vrot.lane.b32.xlu0 %v1629, 110
      %v1634 = vpop.permute.xlu0 %1633
      %1635 = vrot.lane.b32.xlu0 %v1630, 110
      %v1636 = vpop.permute.xlu0 %1635
      %v1637 = vsel %vm941, %v1634, %v1636
      %v1640 = vadd.f32 %v1623, %v1637
      %v1641 = vadd.f32 %v1624, %v1636
      %1642 = vset.pattern.permute.xlu0 11
      %1643 = vperm.xlu0 %1642, %v828
      %v1644 = vpop.permute.xlu0 %1643
      %v1646 = vmul.f32 %v1644, %v1494
      %v1647 = vmul.f32 %v1644, %v1495
      %1650 = vrot.lane.b32.xlu0 %v1646, 109
      %v1651 = vpop.permute.xlu0 %1650
      %1652 = vrot.lane.b32.xlu0 %v1647, 109
      %v1653 = vpop.permute.xlu0 %1652
      %vm1654 = vcmask 891904
      %v1655 = vsel %vm1654, %v1651, %v1653
      %v1658 = vadd.f32 %v1640, %v1655
      %v1659 = vadd.f32 %v1641, %v1653
      %1660 = vset.pattern.permute.xlu0 12
      %1661 = vperm.xlu0 %1660, %v828
      %v1662 = vpop.permute.xlu0 %1661
      %v1664 = vmul.f32 %v1662, %v1494
      %v1665 = vmul.f32 %v1662, %v1495
      %1668 = vrot.lane.b32.xlu0 %v1664, 108
      %v1669 = vpop.permute.xlu0 %1668
      %1670 = vrot.lane.b32.xlu0 %v1665, 108
      %v1671 = vpop.permute.xlu0 %1670
      %vm1672 = vcmask 883712
      %v1673 = vsel %vm1672, %v1669, %v1671
      %v1676 = vadd.f32 %v1658, %v1673
      %v1677 = vadd.f32 %v1659, %v1671
      %1678 = vset.pattern.permute.xlu0 13
      %1679 = vperm.xlu0 %1678, %v828
      %v1680 = vpop.permute.xlu0 %1679
      %v1682 = vmul.f32 %v1680, %v1494
      %v1683 = vmul.f32 %v1680, %v1495
      %1686 = vrot.lane.b32.xlu0 %v1682, 107
      %v1687 = vpop.permute.xlu0 %1686
      %1688 = vrot.lane.b32.xlu0 %v1683, 107
      %v1689 = vpop.permute.xlu0 %1688
      %vm1690 = vcmask 875520
      %v1691 = vsel %vm1690, %v1687, %v1689
      %v1694 = vadd.f32 %v1676, %v1691
      %v1695 = vadd.f32 %v1677, %v1689
      %1696 = vset.pattern.permute.xlu0 16
      %1697 = vperm.xlu0 %1696, %v828
      %v1698 = vpop.permute.xlu0 %1697
      %v1700 = vmul.f32 %v1698, %v1494
      %v1701 = vmul.f32 %v1698, %v1495
      %1704 = vrot.lane.b32.xlu0 %v1700, 96
      %v1705 = vpop.permute.xlu0 %1704
      %1706 = vrot.lane.b32.xlu0 %v1701, 96
      %v1707 = vpop.permute.xlu0 %1706
      %v1708 = vsel %vm959, %v1705, %v1707
      %v1711 = vadd.f32 %v1694, %v1708
      %v1712 = vadd.f32 %v1695, %v1707
      %1713 = vset.pattern.permute.xlu0 17
      %1714 = vperm.xlu0 %1713, %v828
      %v1715 = vpop.permute.xlu0 %1714
      %v1717 = vmul.f32 %v1715, %v1494
      %v1718 = vmul.f32 %v1715, %v1495
      %1721 = vrot.lane.b32.xlu0 %v1717, 95
      %v1722 = vpop.permute.xlu0 %1721
      %1723 = vrot.lane.b32.xlu0 %v1718, 95
      %v1724 = vpop.permute.xlu0 %1723
      %v1725 = vsel %vm977, %v1722, %v1724
      %v1728 = vadd.f32 %v1711, %v1725
      %v1729 = vadd.f32 %v1712, %v1724
      %1730 = vset.pattern.permute.xlu0 18
      %1731 = vperm.xlu0 %1730, %v828
      %v1732 = vpop.permute.xlu0 %1731
      %v1734 = vmul.f32 %v1732, %v1494
      %v1735 = vmul.f32 %v1732, %v1495
      %1738 = vrot.lane.b32.xlu0 %v1734, 94
      %v1739 = vpop.permute.xlu0 %1738
      %1740 = vrot.lane.b32.xlu0 %v1735, 94
      %v1741 = vpop.permute.xlu0 %1740
      %v1742 = vsel %vm995, %v1739, %v1741
      %v1745 = vadd.f32 %v1728, %v1742
      %v1746 = vadd.f32 %v1729, %v1741
      %1747 = vset.pattern.permute.xlu0 19
      %1748 = vperm.xlu0 %1747, %v828
      %v1749 = vpop.permute.xlu0 %1748
      %v1751 = vmul.f32 %v1749, %v1494
      %v1752 = vmul.f32 %v1749, %v1495
      %1755 = vrot.lane.b32.xlu0 %v1751, 93
      %v1756 = vpop.permute.xlu0 %1755
      %1757 = vrot.lane.b32.xlu0 %v1752, 93
      %v1758 = vpop.permute.xlu0 %1757
      %vm1759 = vcmask 760832
      %v1760 = vsel %vm1759, %v1756, %v1758
      %v1763 = vadd.f32 %v1745, %v1760
      %v1764 = vadd.f32 %v1746, %v1758
      %1765 = vset.pattern.permute.xlu0 20
      %1766 = vperm.xlu0 %1765, %v828
      %v1767 = vpop.permute.xlu0 %1766
      %v1769 = vmul.f32 %v1767, %v1494
      %v1770 = vmul.f32 %v1767, %v1495
      %1773 = vrot.lane.b32.xlu0 %v1769, 92
      %v1774 = vpop.permute.xlu0 %1773
      %1775 = vrot.lane.b32.xlu0 %v1770, 92
      %v1776 = vpop.permute.xlu0 %1775
      %vm1777 = vcmask 752640
      %v1778 = vsel %vm1777, %v1774, %v1776
      %v1781 = vadd.f32 %v1763, %v1778
      %v1782 = vadd.f32 %v1764, %v1776
      %1783 = vset.pattern.permute.xlu0 21
      %1784 = vperm.xlu0 %1783, %v828
      %v1785 = vpop.permute.xlu0 %1784
      %v1787 = vmul.f32 %v1785, %v1494
      %v1788 = vmul.f32 %v1785, %v1495
      %1791 = vrot.lane.b32.xlu0 %v1787, 91
      %v1792 = vpop.permute.xlu0 %1791
      %1793 = vrot.lane.b32.xlu0 %v1788, 91
      %v1794 = vpop.permute.xlu0 %1793
      %vm1795 = vcmask 744448
      %v1796 = vsel %vm1795, %v1792, %v1794
      %v1799 = vadd.f32 %v1781, %v1796
      %v1800 = vadd.f32 %v1782, %v1794
      %1801 = vset.pattern.permute.xlu0 24
      %1802 = vperm.xlu0 %1801, %v828
      %v1803 = vpop.permute.xlu0 %1802
      %v1805 = vmul.f32 %v1803, %v1494
      %v1806 = vmul.f32 %v1803, %v1495
      %1809 = vrot.lane.b32.xlu0 %v1805, 80
      %v1810 = vpop.permute.xlu0 %1809
      %1811 = vrot.lane.b32.xlu0 %v1806, 80
      %v1812 = vpop.permute.xlu0 %1811
      %vm1813 = vcmask 654336
      %v1814 = vsel %vm1813, %v1810, %v1812
      %v1817 = vadd.f32 %v1799, %v1814
      %v1818 = vadd.f32 %v1800, %v1812
      %1819 = vset.pattern.permute.xlu0 25
      %1820 = vperm.xlu0 %1819, %v828
      %v1821 = vpop.permute.xlu0 %1820
      %v1823 = vmul.f32 %v1821, %v1494
      %v1824 = vmul.f32 %v1821, %v1495
      %1827 = vrot.lane.b32.xlu0 %v1823, 79
      %v1828 = vpop.permute.xlu0 %1827
      %1829 = vrot.lane.b32.xlu0 %v1824, 79
      %v1830 = vpop.permute.xlu0 %1829
      %vm1831 = vcmask 646144
      %v1832 = vsel %vm1831, %v1828, %v1830
      %v1835 = vadd.f32 %v1817, %v1832
      %v1836 = vadd.f32 %v1818, %v1830
      %1837 = vset.pattern.permute.xlu0 26
      %1838 = vperm.xlu0 %1837, %v828
      %v1839 = vpop.permute.xlu0 %1838
      %v1841 = vmul.f32 %v1839, %v1494
      %v1842 = vmul.f32 %v1839, %v1495
      %1845 = vrot.lane.b32.xlu0 %v1841, 78
      %v1846 = vpop.permute.xlu0 %1845
      %1847 = vrot.lane.b32.xlu0 %v1842, 78
      %v1848 = vpop.permute.xlu0 %1847
      %vm1849 = vcmask 637952
      %v1850 = vsel %vm1849, %v1846, %v1848
      %v1853 = vadd.f32 %v1835, %v1850
      %v1854 = vadd.f32 %v1836, %v1848
      %1855 = vset.pattern.permute.xlu0 27
      %1856 = vperm.xlu0 %1855, %v828
      %v1857 = vpop.permute.xlu0 %1856
      %v1859 = vmul.f32 %v1857, %v1494
      %v1860 = vmul.f32 %v1857, %v1495
      %1863 = vrot.lane.b32.xlu0 %v1859, 77
      %v1864 = vpop.permute.xlu0 %1863
      %1865 = vrot.lane.b32.xlu0 %v1860, 77
      %v1866 = vpop.permute.xlu0 %1865
      %vm1867 = vcmask 629760
      %v1868 = vsel %vm1867, %v1864, %v1866
      %v1871 = vadd.f32 %v1853, %v1868
      %v1872 = vadd.f32 %v1854, %v1866
      %1873 = vset.pattern.permute.xlu0 28
      %1874 = vperm.xlu0 %1873, %v828
      %v1875 = vpop.permute.xlu0 %1874
      %v1877 = vmul.f32 %v1875, %v1494
      %v1878 = vmul.f32 %v1875, %v1495
      %1881 = vrot.lane.b32.xlu0 %v1877, 76
      %v1882 = vpop.permute.xlu0 %1881
      %1883 = vrot.lane.b32.xlu0 %v1878, 76
      %v1884 = vpop.permute.xlu0 %1883
      %vm1885 = vcmask 621568
      %v1886 = vsel %vm1885, %v1882, %v1884
      %v1889 = vadd.f32 %v1871, %v1886
      %v1890 = vadd.f32 %v1872, %v1884
      %1891 = vset.pattern.permute.xlu0 29
      %1892 = vperm.xlu0 %1891, %v828
      %v1893 = vpop.permute.xlu0 %1892
      %v1895 = vmul.f32 %v1893, %v1494
      %v1896 = vmul.f32 %v1893, %v1495
      %1899 = vrot.lane.b32.xlu0 %v1895, 75
      %v1900 = vpop.permute.xlu0 %1899
      %1901 = vrot.lane.b32.xlu0 %v1896, 75
      %v1902 = vpop.permute.xlu0 %1901
      %vm1903 = vcmask 613376
      %v1904 = vsel %vm1903, %v1900, %v1902
      %v1907 = vadd.f32 %v1889, %v1904
      %v1908 = vadd.f32 %v1890, %v1902
      %1909 = vset.pattern.permute.xlu0 32
      %1910 = vperm.xlu0 %1909, %v828
      %v1911 = vpop.permute.xlu0 %1910
      %v1913 = vmul.f32 %v1911, %v1494
      %v1914 = vmul.f32 %v1911, %v1495
      %1917 = vrot.lane.b32.xlu0 %v1913, 64
      %v1918 = vpop.permute.xlu0 %1917
      %1919 = vrot.lane.b32.xlu0 %v1914, 64
      %v1920 = vpop.permute.xlu0 %1919
      %vm1921 = vcmask 523264
      %v1922 = vsel %vm1921, %v1918, %v1920
      %v1925 = vadd.f32 %v1907, %v1922
      %v1926 = vadd.f32 %v1908, %v1920
      %1927 = vset.pattern.permute.xlu0 33
      %1928 = vperm.xlu0 %1927, %v828
      %v1929 = vpop.permute.xlu0 %1928
      %v1931 = vmul.f32 %v1929, %v1494
      %v1932 = vmul.f32 %v1929, %v1495
      %1935 = vrot.lane.b32.xlu0 %v1931, 63
      %v1936 = vpop.permute.xlu0 %1935
      %1937 = vrot.lane.b32.xlu0 %v1932, 63
      %v1938 = vpop.permute.xlu0 %1937
      %vm1939 = vcmask 515072
      %v1940 = vsel %vm1939, %v1936, %v1938
      %v1943 = vadd.f32 %v1925, %v1940
      %v1944 = vadd.f32 %v1926, %v1938
      %1945 = vset.pattern.permute.xlu0 34
      %1946 = vperm.xlu0 %1945, %v828
      %v1947 = vpop.permute.xlu0 %1946
      %v1949 = vmul.f32 %v1947, %v1494
      %v1950 = vmul.f32 %v1947, %v1495
      %1953 = vrot.lane.b32.xlu0 %v1949, 62
      %v1954 = vpop.permute.xlu0 %1953
      %1955 = vrot.lane.b32.xlu0 %v1950, 62
      %v1956 = vpop.permute.xlu0 %1955
      %vm1957 = vcmask 506880
      %v1958 = vsel %vm1957, %v1954, %v1956
      %v1961 = vadd.f32 %v1943, %v1958
      %v1962 = vadd.f32 %v1944, %v1956
      %1963 = vset.pattern.permute.xlu0 35
      %1964 = vperm.xlu0 %1963, %v828
      %v1965 = vpop.permute.xlu0 %1964
      %v1967 = vmul.f32 %v1965, %v1494
      %v1968 = vmul.f32 %v1965, %v1495
      %1971 = vrot.lane.b32.xlu0 %v1967, 61
      %v1972 = vpop.permute.xlu0 %1971
      %1973 = vrot.lane.b32.xlu0 %v1968, 61
      %v1974 = vpop.permute.xlu0 %1973
      %vm1975 = vcmask 498688
      %v1976 = vsel %vm1975, %v1972, %v1974
      %v1979 = vadd.f32 %v1961, %v1976
      %v1980 = vadd.f32 %v1962, %v1974
      %1981 = vset.pattern.permute.xlu0 36
      %1982 = vperm.xlu0 %1981, %v828
      %v1983 = vpop.permute.xlu0 %1982
      %v1985 = vmul.f32 %v1983, %v1494
      %v1986 = vmul.f32 %v1983, %v1495
      %1989 = vrot.lane.b32.xlu0 %v1985, 60
      %v1990 = vpop.permute.xlu0 %1989
      %1991 = vrot.lane.b32.xlu0 %v1986, 60
      %v1992 = vpop.permute.xlu0 %1991
      %vm1993 = vcmask 490496
      %v1994 = vsel %vm1993, %v1990, %v1992
      %v1997 = vadd.f32 %v1979, %v1994
      %v1998 = vadd.f32 %v1980, %v1992
      %1999 = vset.pattern.permute.xlu0 37
      %2000 = vperm.xlu0 %1999, %v828
      %v2001 = vpop.permute.xlu0 %2000
      %v2003 = vmul.f32 %v2001, %v1494
      %v2004 = vmul.f32 %v2001, %v1495
      %2007 = vrot.lane.b32.xlu0 %v2003, 59
      %v2008 = vpop.permute.xlu0 %2007
      %2009 = vrot.lane.b32.xlu0 %v2004, 59
      %v2010 = vpop.permute.xlu0 %2009
      %vm2011 = vcmask 482304
      %v2012 = vsel %vm2011, %v2008, %v2010
      %v2015 = vadd.f32 %v1997, %v2012
      %v2016 = vadd.f32 %v1998, %v2010
      %2017 = vset.pattern.permute.xlu0 40
      %2018 = vperm.xlu0 %2017, %v828
      %v2019 = vpop.permute.xlu0 %2018
      %v2021 = vmul.f32 %v2019, %v1494
      %v2022 = vmul.f32 %v2019, %v1495
      %2025 = vrot.lane.b32.xlu0 %v2021, 48
      %v2026 = vpop.permute.xlu0 %2025
      %2027 = vrot.lane.b32.xlu0 %v2022, 48
      %v2028 = vpop.permute.xlu0 %2027
      %vm2029 = vcmask 392192
      %v2030 = vsel %vm2029, %v2026, %v2028
      %v2033 = vadd.f32 %v2015, %v2030
      %v2034 = vadd.f32 %v2016, %v2028
      %2035 = vset.pattern.permute.xlu0 41
      %2036 = vperm.xlu0 %2035, %v828
      %v2037 = vpop.permute.xlu0 %2036
      %v2039 = vmul.f32 %v2037, %v1494
      %v2040 = vmul.f32 %v2037, %v1495
      %2043 = vrot.lane.b32.xlu0 %v2039, 47
      %v2044 = vpop.permute.xlu0 %2043
      %2045 = vrot.lane.b32.xlu0 %v2040, 47
      %v2046 = vpop.permute.xlu0 %2045
      %vm2047 = vcmask 384000
      %v2048 = vsel %vm2047, %v2044, %v2046
      %v2051 = vadd.f32 %v2033, %v2048
      %v2052 = vadd.f32 %v2034, %v2046
      %2053 = vset.pattern.permute.xlu0 42
      %2054 = vperm.xlu0 %2053, %v828
      %v2055 = vpop.permute.xlu0 %2054
      %v2057 = vmul.f32 %v2055, %v1494
      %v2058 = vmul.f32 %v2055, %v1495
      %2061 = vrot.lane.b32.xlu0 %v2057, 46
      %v2062 = vpop.permute.xlu0 %2061
      %2063 = vrot.lane.b32.xlu0 %v2058, 46
      %v2064 = vpop.permute.xlu0 %2063
      %vm2065 = vcmask 375808
      %v2066 = vsel %vm2065, %v2062, %v2064
      %v2069 = vadd.f32 %v2051, %v2066
      %v2070 = vadd.f32 %v2052, %v2064
      %2071 = vset.pattern.permute.xlu0 43
      %2072 = vperm.xlu0 %2071, %v828
      %v2073 = vpop.permute.xlu0 %2072
      %v2075 = vmul.f32 %v2073, %v1494
      %v2076 = vmul.f32 %v2073, %v1495
      %2079 = vrot.lane.b32.xlu0 %v2075, 45
      %v2080 = vpop.permute.xlu0 %2079
      %2081 = vrot.lane.b32.xlu0 %v2076, 45
      %v2082 = vpop.permute.xlu0 %2081
      %vm2083 = vcmask 367616
      %v2084 = vsel %vm2083, %v2080, %v2082
      %v2087 = vadd.f32 %v2069, %v2084
      %v2088 = vadd.f32 %v2070, %v2082
      %2089 = vset.pattern.permute.xlu0 44
      %2090 = vperm.xlu0 %2089, %v828
      %v2091 = vpop.permute.xlu0 %2090
      %v2093 = vmul.f32 %v2091, %v1494
      %v2094 = vmul.f32 %v2091, %v1495
      %2097 = vrot.lane.b32.xlu0 %v2093, 44
      %v2098 = vpop.permute.xlu0 %2097
      %2099 = vrot.lane.b32.xlu0 %v2094, 44
      %v2100 = vpop.permute.xlu0 %2099
      %vm2101 = vcmask 359424
      %v2102 = vsel %vm2101, %v2098, %v2100
      %v2105 = vadd.f32 %v2087, %v2102
      %v2106 = vadd.f32 %v2088, %v2100
      %2107 = vset.pattern.permute.xlu0 45
      %2108 = vperm.xlu0 %2107, %v828
      %v2109 = vpop.permute.xlu0 %2108
      %v2111 = vmul.f32 %v2109, %v1494
      %v2112 = vmul.f32 %v2109, %v1495
      %2115 = vrot.lane.b32.xlu0 %v2111, 43
      %v2116 = vpop.permute.xlu0 %2115
      %2117 = vrot.lane.b32.xlu0 %v2112, 43
      %v2118 = vpop.permute.xlu0 %2117
      %vm2119 = vcmask 351232
      %v2120 = vsel %vm2119, %v2116, %v2118
      %v2123 = vadd.f32 %v2105, %v2120
      %v2124 = vadd.f32 %v2106, %v2118
      %2126 = vrot.lane.b32.xlu0 %v2123, 121
      %v2127 = vpop.permute.xlu0 %2126
      %2129 = vrot.lane.b32.xlu0 %v2123, 114
      %v2130 = vpop.permute.xlu0 %2129
      %2132 = vrot.lane.b32.xlu0 %v2123, 107
      %v2133 = vpop.permute.xlu0 %2132
      %2135 = vrot.lane.b32.xlu0 %v2123, 100
      %v2136 = vpop.permute.xlu0 %2135
      %2138 = vrot.lane.b32.xlu0 %v2123, 93
      %v2139 = vpop.permute.xlu0 %2138
      %2141 = vrot.lane.b32.xlu0 %v2123, 86
      %v2142 = vpop.permute.xlu0 %2141
      %2144 = vrot.lane.b32.xlu0 %v2123, 79
      %v2145 = vpop.permute.xlu0 %2144
      %2148 = vrot.lane.b32.xlu0 %v2124, 72
      %v2149 = vpop.permute.xlu0 %2148
      %vm2151 = vcmask 72704
      %v2152 = vsel %vm2151, %v2123, %v2127
      %vm2153 = vcmask 146432
      %v2154 = vsel %vm2153, %v2152, %v2130
      %vm2155 = vcmask 220160
      %v2156 = vsel %vm2155, %v2154, %v2133
      %vm2157 = vcmask 293888
      %v2158 = vsel %vm2157, %v2156, %v2136
      %v2159 = vsel %vm2083, %v2158, %v2139
      %vm2160 = vcmask 441344
      %v2161 = vsel %vm2160, %v2159, %v2142
      %v2162 = vsel %vm1939, %v2161, %v2145
      %vm2163 = vcmask 588800
      %v2164 = vsel %vm2163, %v2162, %v2149
      %v2165 = vld [vmem:[%s6] sm:$0xf]
      %2167 = vset.pattern.permute.xlu0 0
      %2168 = vperm.xlu0 %2167, %v2165
      %v2169 = vpop.permute.xlu0 %2168
      %v2171 = vlaneseq
      %v2172 = vshrl.u32 %v2171, 7
      %v2173 = vsub.s32 0, %v2172
      %v2174 = vrot.slane %v2164, %v2173
      %v2175 = vmul.f32 %v2169, %v2174
      %2176 = vset.pattern.permute.xlu0 1
      %2177 = vperm.xlu0 %2176, %v2165
      %v2178 = vpop.permute.xlu0 %2177
      %v2180 = vlaneseq
      %v2181 = vshrl.u32 %v2180, 7
      %v2182 = vsub.s32 1, %v2181
      %v2183 = vrot.slane %v2164, %v2182
      %v2184 = vmul.f32 %v2178, %v2183
      %v2185 = vadd.f32 %v2175, %v2184
      %2186 = vset.pattern.permute.xlu0 2
      %2187 = vperm.xlu0 %2186, %v2165
      %v2188 = vpop.permute.xlu0 %2187
      %v2190 = vlaneseq
      %v2191 = vshrl.u32 %v2190, 7
      %v2192 = vsub.s32 2, %v2191
      %v2193 = vrot.slane %v2164, %v2192
      %v2194 = vmul.f32 %v2188, %v2193
      %v2195 = vadd.f32 %v2185, %v2194
      %2196 = vset.pattern.permute.xlu0 3
      %2197 = vperm.xlu0 %2196, %v2165
      %v2198 = vpop.permute.xlu0 %2197
      %v2200 = vlaneseq
      %v2201 = vshrl.u32 %v2200, 7
      %v2202 = vsub.s32 3, %v2201
      %v2203 = vrot.slane %v2164, %v2202
      %v2204 = vmul.f32 %v2198, %v2203
      %v2205 = vadd.f32 %v2195, %v2204
      %v2206 = vld [vmem:[%s7] sm:$0xf]
      %2208 = vset.pattern.permute.xlu0 0
      %2209 = vperm.xlu0 %2208, %v2206
      %v2210 = vpop.permute.xlu0 %2209
      %v2212 = vadd.f32 %v2205, %v2210
      %v2213 = vmax.f32 %v2212, 0.0
      %v2214 = vld [vmem:[%s8] sm:$0xff]
      %v2215 = vld [vmem:[%s8 + $0x8] sm:$0xff]
      %v2216 = vld [vmem:[%s8 + $0x10] sm:$0x3]
      %2218 = vset.pattern.permute.xlu0 0
      %2219 = vperm.xlu0 %2218, %v2214
      %v2220 = vpop.permute.xlu0 %2219
      %2223 = vset.pattern.permute.xlu0 0
      %2224 = vperm.xlu0 %2223, %v2215
      %v2225 = vpop.permute.xlu0 %2224
      %2228 = vset.pattern.permute.xlu0 0
      %2229 = vperm.xlu0 %2228, %v2216
      %v2230 = vpop.permute.xlu0 %2229
      %v2232 = vlaneseq
      %v2233 = vshrl.u32 %v2232, 7
      %v2234 = vsub.s32 0, %v2233
      %v2235 = vrot.slane %v2213, %v2234
      %v2236 = vmul.f32 %v2220, %v2235
      %v2237 = vmul.f32 %v2225, %v2235
      %v2238 = vmul.f32 %v2230, %v2235
      %2239 = vset.pattern.permute.xlu0 1
      %2240 = vperm.xlu0 %2239, %v2214
      %v2241 = vpop.permute.xlu0 %2240
      %2243 = vset.pattern.permute.xlu0 1
      %2244 = vperm.xlu0 %2243, %v2215
      %v2245 = vpop.permute.xlu0 %2244
      %2247 = vset.pattern.permute.xlu0 1
      %2248 = vperm.xlu0 %2247, %v2216
      %v2249 = vpop.permute.xlu0 %2248
      %v2251 = vlaneseq
      %v2252 = vshrl.u32 %v2251, 7
      %v2253 = vsub.s32 1, %v2252
      %v2254 = vrot.slane %v2213, %v2253
      %v2255 = vmul.f32 %v2241, %v2254
      %v2256 = vmul.f32 %v2245, %v2254
      %v2257 = vmul.f32 %v2249, %v2254
      %v2258 = vadd.f32 %v2236, %v2255
      %v2259 = vadd.f32 %v2237, %v2256
      %v2260 = vadd.f32 %v2238, %v2257
      %2261 = vset.pattern.permute.xlu0 2
      %2262 = vperm.xlu0 %2261, %v2214
      %v2263 = vpop.permute.xlu0 %2262
      %2265 = vset.pattern.permute.xlu0 2
      %2266 = vperm.xlu0 %2265, %v2215
      %v2267 = vpop.permute.xlu0 %2266
      %2269 = vset.pattern.permute.xlu0 2
      %2270 = vperm.xlu0 %2269, %v2216
      %v2271 = vpop.permute.xlu0 %2270
      %v2273 = vlaneseq
      %v2274 = vshrl.u32 %v2273, 7
      %v2275 = vsub.s32 2, %v2274
      %v2276 = vrot.slane %v2213, %v2275
      %v2277 = vmul.f32 %v2263, %v2276
      %v2278 = vmul.f32 %v2267, %v2276
      %v2279 = vmul.f32 %v2271, %v2276
      %v2280 = vadd.f32 %v2258, %v2277
      %v2281 = vadd.f32 %v2259, %v2278
      %v2282 = vadd.f32 %v2260, %v2279
      %2283 = vset.pattern.permute.xlu0 3
      %2284 = vperm.xlu0 %2283, %v2214
      %v2285 = vpop.permute.xlu0 %2284
      %2287 = vset.pattern.permute.xlu0 3
      %2288 = vperm.xlu0 %2287, %v2215
      %v2289 = vpop.permute.xlu0 %2288
      %2291 = vset.pattern.permute.xlu0 3
      %2292 = vperm.xlu0 %2291, %v2216
      %v2293 = vpop.permute.xlu0 %2292
      %v2295 = vlaneseq
      %v2296 = vshrl.u32 %v2295, 7
      %v2297 = vsub.s32 3, %v2296
      %v2298 = vrot.slane %v2213, %v2297
      %v2299 = vmul.f32 %v2285, %v2298
      %v2300 = vmul.f32 %v2289, %v2298
      %v2301 = vmul.f32 %v2293, %v2298
      %v2302 = vadd.f32 %v2280, %v2299
      %v2303 = vadd.f32 %v2281, %v2300
      %v2304 = vadd.f32 %v2282, %v2301
      %v2305 = vld [vmem:[%s9] sm:$0xff]
      %v2306 = vld [vmem:[%s9 + $0x8] sm:$0xff]
      %v2307 = vld [vmem:[%s9 + $0x10] sm:$0x3]
      %2309 = vset.pattern.permute.xlu0 0
      %2310 = vperm.xlu0 %2309, %v2305
      %v2311 = vpop.permute.xlu0 %2310
      %2314 = vset.pattern.permute.xlu0 0
      %2315 = vperm.xlu0 %2314, %v2306
      %v2316 = vpop.permute.xlu0 %2315
      %2319 = vset.pattern.permute.xlu0 0
      %2320 = vperm.xlu0 %2319, %v2307
      %v2321 = vpop.permute.xlu0 %2320
      %v2323 = vadd.f32 %v2302, %v2311
      %v2324 = vadd.f32 %v2303, %v2316
      %v2325 = vadd.f32 %v2304, %v2321
      %v2326 = vsub.f32 0.0, %v2323
      %v2327 = vsub.f32 0.0, %v2324
      %v2328 = vsub.f32 0.0, %v2325
      %v2329 = vmul.f32 %v2326, 1.442695
      %v2330 = vpow.pop %v2329
      %v2331 = vmul.f32 %v2327, 1.442695
      %v2332 = vpow.pop %v2331
      %v2333 = vmul.f32 %v2328, 1.442695
      %v2334 = vpow.pop %v2333
      %v2335 = vadd.f32 %v2330, 1.0
      %v2336 = vadd.f32 %v2332, 1.0
      %v2337 = vadd.f32 %v2334, 1.0
      %v2338 = vrcp.pop %v2335
      %v2339 = vrcp.pop %v2336
      %v2340 = vrcp.pop %v2337
      %v2341 = vmin.f32 %v2323, 80.0
      %v2342 = vmin.f32 %v2324, 80.0
      %v2343 = vmin.f32 %v2325, 80.0
      %v2344 = vmul.f32 %v2341, 1.442695
      %v2345 = vpow.pop %v2344
      %v2346 = vmul.f32 %v2342, 1.442695
      %v2347 = vpow.pop %v2346
      %v2348 = vmul.f32 %v2343, 1.442695
      %v2349 = vpow.pop %v2348
      %v2350 = vld [vmem:[%s12] sm:$0xff]
      %v2351 = vld [vmem:[%s12 + $0x8] sm:$0xff]
      %v2352 = vld [vmem:[%s12 + $0x10] sm:$0x3]
      %vm2353 = vcmp.gt.f32.partialorder %v2350, 0.5
      %vm2354 = vcmp.gt.f32.partialorder %v2351, 0.5
      %vm2355 = vcmp.gt.f32.partialorder %v2352, 0.5
      %v2356 = vsel %vm2353, 1, 0
      %v2357 = vsel %vm2354, 1, 0
      %v2358 = vsel %vm2355, 1, 0
      %2359 = vset.pattern.permute.xlu0 0
      %2360 = vperm.xlu0 %2359, %v2356
      %v2361 = vpop.permute.xlu0 %2360
      %2362 = vset.pattern.permute.xlu0 0
      %2363 = vperm.xlu0 %2362, %v2357
      %v2364 = vpop.permute.xlu0 %2363
      %2365 = vset.pattern.permute.xlu0 0
      %2366 = vperm.xlu0 %2365, %v2358
      %v2367 = vpop.permute.xlu0 %2366
      %vm2368 = vcmp.eq.s32.totalorder %v2361, 1
      %vm2369 = vcmp.eq.s32.totalorder %v2364, 1
      %vm2370 = vcmp.eq.s32.totalorder %v2367, 1
      %v2371 = vsel %vm2368, %v2345, %v2338
      %v2372 = vsel %vm2369, %v2347, %v2339
      %v2373 = vsel %vm2370, %v2349, %v2340
      %v2374 = vld [vmem:[%s10] sm:$0xff]
      %v2375 = vld [vmem:[%s10 + $0x8] sm:$0xff]
      %v2376 = vld [vmem:[%s10 + $0x10] sm:$0x3]
      %v2377 = vadd.f32 %v2371, %v2374
      %v2378 = vadd.f32 %v2372, %v2375
      %v2379 = vadd.f32 %v2373, %v2376
      %v2380 = vld [vmem:[%s11] sm:$0xff]
      %v2381 = vld [vmem:[%s11 + $0x8] sm:$0xff]
      %v2382 = vld [vmem:[%s11 + $0x10] sm:$0x3]
      %2384 = vset.pattern.permute.xlu0 0
      %2385 = vperm.xlu0 %2384, %v2380
      %v2386 = vpop.permute.xlu0 %2385
      %2389 = vset.pattern.permute.xlu0 0
      %2390 = vperm.xlu0 %2389, %v2381
      %v2391 = vpop.permute.xlu0 %2390
      %2394 = vset.pattern.permute.xlu0 0
      %2395 = vperm.xlu0 %2394, %v2382
      %v2396 = vpop.permute.xlu0 %2395
      %v2398 = vmul.f32 %v2377, %v2386
      %v2399 = vmul.f32 %v2378, %v2391
      %v2400 = vmul.f32 %v2379, %v2396
      %vm2401 = vcmask 662528
      %2402 = vst.msk [vmem:[%s457] sm:$0xff] %vm2401, %v2398
      %2403 = vst.msk [vmem:[%s457 + $0x8] sm:$0xff] %vm2401, %v2399
      %vm2404 = vcmask 656384
      %2405 = vst.msk [vmem:[%s457 + $0x10] sm:$0x3] %vm2404, %v2400
      %p2406 = scmp.lt.s32.totalorder %s24, 1
      %s2407 = scalar_select %p2406, %s24, 1
      %s2408 = smul.addr %s2407, 3
      %s2409 = smul.addr %s2408, 8
      %s2410 = scalar_lea.vmem %s13, %s2409
      // Predicated region
      $region73: #{run.1} parent=71 // pred_check
        %p2411 = pneg %p325
      $region74: #{run.1} parent=71 // pred_check_branch
        %2413 = sbr.rel (%p2411) target = $region76
      $region75: #{run.1} parent=71 // pred_region
        _
      $region76: #{run.1} parent=71 // pred_fallthru
        _
    $region72: #{run.1} parent=5 // pred_fallthru
      _
    %p2414 = scmp.le.s32.totalorder 2, %s19
    // Predicated region
    $region77: #{run.1} parent=5 // pred_check
      %p2415 = pneg %p2414
    $region78: #{run.1} parent=5 // pred_check_branch
      %2417 = sbr.rel (%p2415) target = $region80
    $region79: #{run.1} parent=5 // pred_region
      %s2418 = ssub.s32 %s19, 2
      // Predicated region
      $region81: #{run.1} parent=79 // pred_check
        %p2419 = pneg %p331
      $region82: #{run.1} parent=79 // pred_check_branch
        %2421 = sbr.rel (%p2419) target = $region84
      $region83: #{run.1} parent=79 // pred_region
        %p2422 = scmp.lt.s32.totalorder %s25, 1
        %s2423 = scalar_select %p2422, %s25, 1
        %s2424 = smul.addr %s2423, 3
        %s2425 = smul.addr %s2424, 8
        %s2426 = scalar_lea.vmem %s13, %s2425
      $region84: #{run.1} parent=79 // pred_fallthru
        _
    $region80: #{run.1} parent=5 // pred_fallthru
      _
  $region6: #{run.1} parent=0 // loop_footer
    %s23 = sadd.s32 1, %s19
  $region7: #{run.1} parent=0 // loop_footer_branch
    %18 = sbr.rel target = $region3
  $region8: #{run.1} parent=0 // loop_exit
    _

</llo_original>
